<compile_context>
chip_gen: v6e
topology: v6e:2x2x1
jax: 0.10.0
libtpu: 0.0.40
codegen_flags: <defaults>
</compile_context>

<pallas_src>
import functools

import jax
import jax.numpy as jnp
from jax import lax
from jax.experimental import pallas as pl
from jax.experimental.pallas import tpu as pltpu


# ----------------------------- config -------------------------------------
class Config:
    num_embeddings = 100
    embedding_size = 32
    rnn_state_size = 32
    rnn_depth = 1          # GRU num_layers
    attention_depth = 16
    attention_hops = 4
    dense_layer_size = 64


_LANE = 128
_SUBLANE = 8
_TILE_B = 8            # batch rows per grid step (one f32 sublane tile)


def _round_up(x, m):
    return ((x + m - 1) // m) * m


def _const_index_map(nd):
    return lambda i: (0,) * nd


# ------------------------- fused forward kernel ----------------------------
def safe_fused_kernel(tok_ref, emb_ref,
                      wih_f_ref, wih_b_ref, bih_f_ref, bih_b_ref,
                      whh_f_ref, whh_b_ref, bhh_f_ref, bhh_b_ref,
                      ws1_t_ref, ws2_t_ref,
                      w1_t_ref, b1_ref, w2_t_ref, b2_ref,
                      o_ref,
                      *, B, T, R, hops):
    # tok_ref : (1, T, B) int32 (time-major tile of the batch)
    # emb_ref : (Vpad, E) bf16
    # wih_*_t : (E, 3R) bf16 ; whh_*_t : (R, 3R) bf16 ; biases (1, 3R) f32
    # ws1_t : (2R, D) bf16 ; ws2_t : (D, hops) bf16
    # w1_t : (hops*2R, dense) bf16 ; w2_t : (dense, E) bf16
    f32 = jnp.float32
    bf16 = jnp.bfloat16
    TB = T * B
    vpad = emb_ref.shape[0]

    # ---- embedding gather as one-hot matmul (kept on-chip), time-major ----
    tok = tok_ref[0]                                               # (T, B) i32
    vlane = lax.broadcasted_iota(jnp.int32, (T, B, vpad), 2)
    onehot = jnp.where(vlane == tok[:, :, None], 1.0, 0.0).astype(bf16)
    onehot2 = onehot.reshape(TB, vpad)                             # (TB, Vpad)
    x = jnp.dot(onehot2, emb_ref[...],
                preferred_element_type=f32).astype(bf16)           # (TB, E)

    # ---- GRU input projections hoisted out of the time loop ----
    gi_f = (jnp.dot(x, wih_f_ref[...], preferred_element_type=f32)
            + bih_f_ref[...]).reshape(T, B, 3 * R)                 # (T, B, 3R)
    gi_b = (jnp.dot(x, wih_b_ref[...], preferred_element_type=f32)
            + bih_b_ref[...]).reshape(T, B, 3 * R)

    # hoisted recurrent weights / bias broadcasts (no per-step broadcast_in_dim)
    whh_f = whh_f_ref[...]
    whh_b = whh_b_ref[...]
    bhh_fb = jnp.broadcast_to(bhh_f_ref[...], (B, 3 * R))
    bhh_bb = jnp.broadcast_to(bhh_b_ref[...], (B, 3 * R))

    hf = jnp.zeros((B, R), f32)        # forward hidden state
    hb = jnp.zeros((B, R), f32)        # backward hidden state
    hs_f = [None] * T
    hs_b = [None] * T

    # ---- fully unrolled recurrence (T static & small) ----
    # PyTorch GRU gate order [r | z | n]; n = tanh(W_in x + b_in + r*(W_hn h + b_hn))
    for t in range(T):
        # forward direction, input position t
        ghf = jnp.dot(hf.astype(bf16), whh_f,
                      preferred_element_type=f32) + bhh_fb          # (B, 3R)
        gf = gi_f[t]
        sf = jax.nn.sigmoid(gf + ghf)        # full-slab sigmoid (EUP slot ~free)
        rf = sf[:, 0:R]
        zf = sf[:, R:2 * R]
        n_f = jnp.tanh(gf[:, 2 * R:] + rf * ghf[:, 2 * R:])
        hf = n_f + zf * (hf - n_f)           # == (1-z)*n + z*h
        hs_f[t] = hf

        # backward direction, input position T-1-t
        tb = T - 1 - t
        ghb = jnp.dot(hb.astype(bf16), whh_b,
                      preferred_element_type=f32) + bhh_bb
        gb = gi_b[tb]
        sb = jax.nn.sigmoid(gb + ghb)
        rb = sb[:, 0:R]
        zb = sb[:, R:2 * R]
        n_b = jnp.tanh(gb[:, 2 * R:] + rb * ghb[:, 2 * R:])
        hb = n_b + zb * (hb - n_b)
        hs_b[tb] = hb

    # ---- stack H in vregs (no VMEM scratch): (TB, 2R) time-major ----
    H = jnp.concatenate(
        [jnp.concatenate([hs_f[t], hs_b[t]], axis=1) for t in range(T)],
        axis=0)                                                     # (TB, 2R) f32

    # ---- structured self-attention ----
    hbf = H.astype(bf16)
    s1 = jnp.tanh(jnp.dot(hbf, ws1_t_ref[...], preferred_element_type=f32))
    s2 = jnp.dot(s1.astype(bf16), ws2_t_ref[...], preferred_element_type=f32)
    s3 = s2.reshape(T, B, hops)                  # softmax over the sequence axis
    s3 = s3 - jnp.max(s3, axis=0, keepdims=True)
    e = jnp.exp(s3)
    a = e * pl.reciprocal(jnp.sum(e, axis=0, keepdims=True), approx=True)

    # ---- M = A @ H assembled lane-dense, then ONE K = hops*2R dense_1 matmul ----
    h3 = H.reshape(T, B, 2 * R)
    m_parts = []
    for h in range(hops):
        acc = jnp.zeros((B, 2 * R), f32)
        for t in range(T):
            acc = acc + a[t, :, h:h + 1] * h3[t]
        m_parts.append(acc)
    flat_m = jnp.concatenate(m_parts, axis=1)                       # (B, hops*2R)

    d1 = jnp.dot(flat_m.astype(bf16), w1_t_ref[...],
                 preferred_element_type=f32) + b1_ref[...]
    d1 = jnp.maximum(d1, 0.0)                                       # ReLU
    y = jnp.dot(d1.astype(bf16), w2_t_ref[...],
                preferred_element_type=f32) + b2_ref[...]           # (B, E)

    # F.normalize(p=2, dim=1) via EUP rsqrt
    inv = lax.rsqrt(jnp.maximum(jnp.sum(y * y, axis=1, keepdims=True), 1e-24))
    o_ref[...] = y * inv


# ------------------------------ full forward --------------------------------
def safe_forward(tokens, params):
    B0, T = tokens.shape
    R = params['whh_f_t'].shape[0]
    hops = params['ws2_t'].shape[1]
    E = params['w2_t'].shape[1]

    TILE_B = _TILE_B
    Bpad = _round_up(max(B0, TILE_B), TILE_B)
    nb = Bpad // TILE_B

    tok = jnp.pad(tokens.astype(jnp.int32), ((0, Bpad - B0), (0, 0)))   # (Bpad, T)
    # per-tile, time-major token layout: (nb, T, TILE_B)
    tok_g = tok.reshape(nb, TILE_B, T).transpose(0, 2, 1)

    weight_names = ('emb', 'wih_f_t', 'wih_b_t', 'bih_f', 'bih_b',
                    'whh_f_t', 'whh_b_t', 'bhh_f', 'bhh_b',
                    'ws1_t', 'ws2_t', 'w1_t', 'b1', 'w2_t', 'b2')
    weights = [params[k] for k in weight_names]
    weight_specs = [pl.BlockSpec(w.shape, _const_index_map(w.ndim)) for w in weights]

    kernel = functools.partial(safe_fused_kernel, B=TILE_B, T=T, R=R, hops=hops)
    out = pl.pallas_call(
        kernel,
        grid=(nb,),
        out_shape=jax.ShapeDtypeStruct((Bpad, E), jnp.float32),
        in_specs=[pl.BlockSpec((1, T, TILE_B), lambda i: (i, 0, 0))] + weight_specs,
        out_specs=pl.BlockSpec((TILE_B, E), lambda i: (i, 0)),
        compiler_params=pltpu.CompilerParams(
            dimension_semantics=("parallel",)),
    )(tok_g, *weights)
    return out[:B0]


# --------------------------- deterministic params ---------------------------
def init_params(cfg, key):
    # TODO(synk): fused kernel implements a single bidirectional GRU layer
    # (matches Config.rnn_depth == 1); deeper stacks would need a layer loop.
    assert cfg.rnn_depth == 1

    keys = list(jax.random.split(key, 16))
    nxt = iter(keys)

    def rnd(shape, scale=0.1):
        return jax.random.normal(next(nxt), shape, jnp.float32) * scale

    E, R = cfg.embedding_size, cfg.rnn_state_size
    D, hops = cfg.attention_depth, cfg.attention_hops
    dense = cfg.dense_layer_size

    # PyTorch-layout parameters
    emb = rnd((cfg.num_embeddings, E))                      # Embedding.weight
    wih_f = rnd((3 * R, E)); whh_f = rnd((3 * R, R))        # weight_ih_l0 / hh_l0
    bih_f = rnd((3 * R,));   bhh_f = rnd((3 * R,))
    wih_b = rnd((3 * R, E)); whh_b = rnd((3 * R, R))        # *_reverse
    bih_b = rnd((3 * R,));   bhh_b = rnd((3 * R,))
    ws1 = rnd((D, 2 * R)); ws2 = rnd((hops, D))
    w1 = rnd((dense, 2 * hops * R)); b1 = rnd((dense,))
    w2 = rnd((E, dense)); b2 = rnd((E,))

    # kernel-ready layout: transposed, bf16 MXU operands, f32 biases
    vpad = _round_up(cfg.num_embeddings, _LANE)
    params = {
        'emb': jnp.pad(emb, ((0, vpad - cfg.num_embeddings), (0, 0))
                       ).astype(jnp.bfloat16),                      # (Vpad, E)
        'wih_f_t': wih_f.T.astype(jnp.bfloat16),                    # (E, 3R)
        'wih_b_t': wih_b.T.astype(jnp.bfloat16),
        'bih_f': bih_f.reshape(1, -1),
        'bih_b': bih_b.reshape(1, -1),
        'whh_f_t': whh_f.T.astype(jnp.bfloat16),                    # (R, 3R)
        'whh_b_t': whh_b.T.astype(jnp.bfloat16),
        'bhh_f': bhh_f.reshape(1, -1),
        'bhh_b': bhh_b.reshape(1, -1),
        'ws1_t': ws1.T.astype(jnp.bfloat16),                        # (2R, D)
        'ws2_t': ws2.T.astype(jnp.bfloat16),                        # (D, hops)
        'w1_t': w1.T.astype(jnp.bfloat16),                          # (hops*2R, dense)
        'b1': b1.reshape(1, -1),
        'w2_t': w2.T.astype(jnp.bfloat16),                          # (dense, E)
        'b2': b2.reshape(1, -1),
    }
    return params


if __name__ == "__main__":
    cfg = Config()
    key = jax.random.PRNGKey(0)
    pkey, dkey = jax.random.split(key)
    params = init_params(cfg, pkey)

    B, T = 2, 8
    instructions = jax.random.randint(dkey, (B, T), 0, cfg.num_embeddings,
                                      dtype=jnp.int32)

    fwd = jax.jit(safe_forward)
    out = fwd(instructions, params)
    out = jax.block_until_ready(out)

    assert out.shape == (B, cfg.embedding_size), out.shape
    assert bool(jnp.all(jnp.isfinite(out)))
    norms = jnp.linalg.norm(out, axis=1)
    assert bool(jnp.all(jnp.abs(norms - 1.0) < 1e-3)), norms
    print("KERNEL_OK")
</pallas_src>

<mosaic_0001>
module attributes {stable_mosaic.version = 11 : i64} {
  func.func @safe_fused_kernel(%arg0: i32, %arg1: memref<1x8x8xi32, #tpu.memory_space<vmem>>, %arg2: memref<128x32xbf16, #tpu.memory_space<vmem>>, %arg3: memref<32x96xbf16, #tpu.memory_space<vmem>>, %arg4: memref<32x96xbf16, #tpu.memory_space<vmem>>, %arg5: memref<1x96xf32, #tpu.memory_space<vmem>>, %arg6: memref<1x96xf32, #tpu.memory_space<vmem>>, %arg7: memref<32x96xbf16, #tpu.memory_space<vmem>>, %arg8: memref<32x96xbf16, #tpu.memory_space<vmem>>, %arg9: memref<1x96xf32, #tpu.memory_space<vmem>>, %arg10: memref<1x96xf32, #tpu.memory_space<vmem>>, %arg11: memref<64x16xbf16, #tpu.memory_space<vmem>>, %arg12: memref<16x4xbf16, #tpu.memory_space<vmem>>, %arg13: memref<256x64xbf16, #tpu.memory_space<vmem>>, %arg14: memref<1x64xf32, #tpu.memory_space<vmem>>, %arg15: memref<64x32xbf16, #tpu.memory_space<vmem>>, %arg16: memref<1x32xf32, #tpu.memory_space<vmem>>, %arg17: memref<8x32xf32, #tpu.memory_space<vmem>>) attributes {dimension_semantics = [#tpu.dimension_semantics<parallel>], iteration_bounds = array<i64: 1>, scalar_prefetch = 0 : i64, scratch_operands = 0 : i64, tpu.core_type = #tpu.core_type<tc>, window_params = [{transform_indices = @transform_0, window_bounds = array<i64: 1, 8, 8>}, {pipeline_mode = #tpu.pipeline_mode<synchronous>, transform_indices = @transform_1, window_bounds = array<i64: 128, 32>}, {pipeline_mode = #tpu.pipeline_mode<synchronous>, transform_indices = @transform_2, window_bounds = array<i64: 32, 96>}, {pipeline_mode = #tpu.pipeline_mode<synchronous>, transform_indices = @transform_3, window_bounds = array<i64: 32, 96>}, {pipeline_mode = #tpu.pipeline_mode<synchronous>, transform_indices = @transform_4, window_bounds = array<i64: 1, 96>}, {pipeline_mode = #tpu.pipeline_mode<synchronous>, transform_indices = @transform_5, window_bounds = array<i64: 1, 96>}, {pipeline_mode = #tpu.pipeline_mode<synchronous>, transform_indices = @transform_6, window_bounds = array<i64: 32, 96>}, {pipeline_mode = #tpu.pipeline_mode<synchronous>, transform_indices = @transform_7, window_bounds = array<i64: 32, 96>}, {pipeline_mode = #tpu.pipeline_mode<synchronous>, transform_indices = @transform_8, window_bounds = array<i64: 1, 96>}, {pipeline_mode = #tpu.pipeline_mode<synchronous>, transform_indices = @transform_9, window_bounds = array<i64: 1, 96>}, {pipeline_mode = #tpu.pipeline_mode<synchronous>, transform_indices = @transform_10, window_bounds = array<i64: 64, 16>}, {pipeline_mode = #tpu.pipeline_mode<synchronous>, transform_indices = @transform_11, window_bounds = array<i64: 16, 4>}, {pipeline_mode = #tpu.pipeline_mode<synchronous>, transform_indices = @transform_12, window_bounds = array<i64: 256, 64>}, {pipeline_mode = #tpu.pipeline_mode<synchronous>, transform_indices = @transform_13, window_bounds = array<i64: 1, 64>}, {pipeline_mode = #tpu.pipeline_mode<synchronous>, transform_indices = @transform_14, window_bounds = array<i64: 64, 32>}, {pipeline_mode = #tpu.pipeline_mode<synchronous>, transform_indices = @transform_15, window_bounds = array<i64: 1, 32>}, {transform_indices = @transform_16, window_bounds = array<i64: 8, 32>}]} {
    %c0 = arith.constant 0 : index
    %c0_0 = arith.constant 0 : index
    %c0_1 = arith.constant 0 : index
    %0 = vector.load %arg1[%c0, %c0_0, %c0_1] : memref<1x8x8xi32, #tpu.memory_space<vmem>>, vector<1x8x8xi32>
    %1 = vector.shape_cast %0 : vector<1x8x8xi32> to vector<8x8xi32>
    %2 = tpu.iota {dimensions = array<i32: 2>} : vector<8x8x128xi32>
    %3 = vector.shape_cast %1 : vector<8x8xi32> to vector<8x8x1xi32>
    %4 = vector.broadcast %3 : vector<8x8x1xi32> to vector<8x8x128xi32>
    %5 = arith.cmpi eq, %2, %4 : vector<8x8x128xi32>
    %cst = arith.constant 1.000000e+00 : f32
    %cst_2 = arith.constant 0.000000e+00 : f32
    %6 = vector.broadcast %cst : f32 to vector<8x8x128xf32>
    %7 = vector.broadcast %cst_2 : f32 to vector<8x8x128xf32>
    %8 = arith.select %5, %6, %7 : vector<8x8x128xi1>, vector<8x8x128xf32>
    %9 = arith.truncf %8 : vector<8x8x128xf32> to vector<8x8x128xbf16>
    %10 = vector.shape_cast %9 : vector<8x8x128xbf16> to vector<64x128xbf16>
    %c0_3 = arith.constant 0 : index
    %c0_4 = arith.constant 0 : index
    %11 = vector.load %arg2[%c0_3, %c0_4] : memref<128x32xbf16, #tpu.memory_space<vmem>>, vector<128x32xbf16>
    %cst_5 = arith.constant dense<0.000000e+00> : vector<64x32xf32>
    %12 = tpu.matmul %10, %11, %cst_5 {dimension_numbers = #tpu.dot_dimension_numbers<[1], [0], [0], [1], [0, 0, 1, 1], [], []>} : vector<64x128xbf16>, vector<128x32xbf16>, vector<64x32xf32> -> vector<64x32xf32>
    %13 = arith.truncf %12 : vector<64x32xf32> to vector<64x32xbf16>
    %c0_6 = arith.constant 0 : index
    %c0_7 = arith.constant 0 : index
    %14 = vector.load %arg3[%c0_6, %c0_7] : memref<32x96xbf16, #tpu.memory_space<vmem>>, vector<32x96xbf16>
    %cst_8 = arith.constant dense<0.000000e+00> : vector<64x96xf32>
    %15 = tpu.matmul %13, %14, %cst_8 {dimension_numbers = #tpu.dot_dimension_numbers<[1], [0], [0], [1], [0, 0, 1, 1], [], []>} : vector<64x32xbf16>, vector<32x96xbf16>, vector<64x96xf32> -> vector<64x96xf32>
    %c0_9 = arith.constant 0 : index
    %c0_10 = arith.constant 0 : index
    %16 = vector.load %arg5[%c0_9, %c0_10] : memref<1x96xf32, #tpu.memory_space<vmem>>, vector<1x96xf32>
    %17 = vector.broadcast %16 : vector<1x96xf32> to vector<64x96xf32>
    %18 = arith.addf %15, %17 : vector<64x96xf32>
    %19 = vector.shape_cast %18 : vector<64x96xf32> to vector<8x8x96xf32>
    %c0_11 = arith.constant 0 : index
    %c0_12 = arith.constant 0 : index
    %20 = vector.load %arg4[%c0_11, %c0_12] : memref<32x96xbf16, #tpu.memory_space<vmem>>, vector<32x96xbf16>
    %cst_13 = arith.constant dense<0.000000e+00> : vector<64x96xf32>
    %21 = tpu.matmul %13, %20, %cst_13 {dimension_numbers = #tpu.dot_dimension_numbers<[1], [0], [0], [1], [0, 0, 1, 1], [], []>} : vector<64x32xbf16>, vector<32x96xbf16>, vector<64x96xf32> -> vector<64x96xf32>
    %c0_14 = arith.constant 0 : index
    %c0_15 = arith.constant 0 : index
    %22 = vector.load %arg6[%c0_14, %c0_15] : memref<1x96xf32, #tpu.memory_space<vmem>>, vector<1x96xf32>
    %23 = vector.broadcast %22 : vector<1x96xf32> to vector<64x96xf32>
    %24 = arith.addf %21, %23 : vector<64x96xf32>
    %25 = vector.shape_cast %24 : vector<64x96xf32> to vector<8x8x96xf32>
    %c0_16 = arith.constant 0 : index
    %c0_17 = arith.constant 0 : index
    %26 = vector.load %arg7[%c0_16, %c0_17] : memref<32x96xbf16, #tpu.memory_space<vmem>>, vector<32x96xbf16>
    %c0_18 = arith.constant 0 : index
    %c0_19 = arith.constant 0 : index
    %27 = vector.load %arg8[%c0_18, %c0_19] : memref<32x96xbf16, #tpu.memory_space<vmem>>, vector<32x96xbf16>
    %c0_20 = arith.constant 0 : index
    %c0_21 = arith.constant 0 : index
    %28 = vector.load %arg9[%c0_20, %c0_21] : memref<1x96xf32, #tpu.memory_space<vmem>>, vector<1x96xf32>
    %29 = vector.shape_cast %28 : vector<1x96xf32> to vector<1x96xf32>
    %30 = vector.broadcast %29 : vector<1x96xf32> to vector<8x96xf32>
    %c0_22 = arith.constant 0 : index
    %c0_23 = arith.constant 0 : index
    %31 = vector.load %arg10[%c0_22, %c0_23] : memref<1x96xf32, #tpu.memory_space<vmem>>, vector<1x96xf32>
    %32 = vector.shape_cast %31 : vector<1x96xf32> to vector<1x96xf32>
    %33 = vector.broadcast %32 : vector<1x96xf32> to vector<8x96xf32>
    %cst_24 = arith.constant 0.000000e+00 : f32
    %34 = vector.broadcast %cst_24 : f32 to vector<8x32xf32>
    %cst_25 = arith.constant 0.000000e+00 : f32
    %35 = vector.broadcast %cst_25 : f32 to vector<8x32xf32>
    %36 = arith.truncf %34 : vector<8x32xf32> to vector<8x32xbf16>
    %cst_26 = arith.constant dense<0.000000e+00> : vector<8x96xf32>
    %37 = tpu.matmul %36, %26, %cst_26 {dimension_numbers = #tpu.dot_dimension_numbers<[1], [0], [0], [1], [0, 0, 1, 1], [], []>} : vector<8x32xbf16>, vector<32x96xbf16>, vector<8x96xf32> -> vector<8x96xf32>
    %38 = arith.addf %37, %30 : vector<8x96xf32>
    %39 = vector.extract_strided_slice %19 {offsets = [0, 0, 0], sizes = [1, 8, 96], strides = [1, 1, 1]} : vector<8x8x96xf32> to vector<1x8x96xf32>
    %40 = vector.shape_cast %39 : vector<1x8x96xf32> to vector<8x96xf32>
    %41 = arith.addf %40, %38 : vector<8x96xf32>
    %42 = arith.negf %41 : vector<8x96xf32>
    %43 = math.exp %42 : vector<8x96xf32>
    %cst_27 = arith.constant 1.000000e+00 : f32
    %44 = vector.broadcast %cst_27 : f32 to vector<8x96xf32>
    %45 = arith.addf %44, %43 : vector<8x96xf32>
    %46 = arith.divf %44, %45 : vector<8x96xf32>
    %47 = vector.extract_strided_slice %46 {offsets = [0, 0], sizes = [8, 32], strides = [1, 1]} : vector<8x96xf32> to vector<8x32xf32>
    %48 = vector.extract_strided_slice %46 {offsets = [0, 32], sizes = [8, 32], strides = [1, 1]} : vector<8x96xf32> to vector<8x32xf32>
    %49 = vector.extract_strided_slice %40 {offsets = [0, 64], sizes = [8, 32], strides = [1, 1]} : vector<8x96xf32> to vector<8x32xf32>
    %50 = vector.extract_strided_slice %38 {offsets = [0, 64], sizes = [8, 32], strides = [1, 1]} : vector<8x96xf32> to vector<8x32xf32>
    %51 = arith.mulf %47, %50 : vector<8x32xf32>
    %52 = arith.addf %49, %51 : vector<8x32xf32>
    %53 = math.tanh %52 : vector<8x32xf32>
    %54 = arith.subf %34, %53 : vector<8x32xf32>
    %55 = arith.mulf %48, %54 : vector<8x32xf32>
    %56 = arith.addf %53, %55 : vector<8x32xf32>
    %57 = arith.truncf %35 : vector<8x32xf32> to vector<8x32xbf16>
    %cst_28 = arith.constant dense<0.000000e+00> : vector<8x96xf32>
    %58 = tpu.matmul %57, %27, %cst_28 {dimension_numbers = #tpu.dot_dimension_numbers<[1], [0], [0], [1], [0, 0, 1, 1], [], []>} : vector<8x32xbf16>, vector<32x96xbf16>, vector<8x96xf32> -> vector<8x96xf32>
    %59 = arith.addf %58, %33 : vector<8x96xf32>
    %60 = vector.extract_strided_slice %25 {offsets = [7, 0, 0], sizes = [1, 8, 96], strides = [1, 1, 1]} : vector<8x8x96xf32> to vector<1x8x96xf32>
    %61 = vector.shape_cast %60 : vector<1x8x96xf32> to vector<8x96xf32>
    %62 = arith.addf %61, %59 : vector<8x96xf32>
    %63 = arith.negf %62 : vector<8x96xf32>
    %64 = math.exp %63 : vector<8x96xf32>
    %cst_29 = arith.constant 1.000000e+00 : f32
    %65 = vector.broadcast %cst_29 : f32 to vector<8x96xf32>
    %66 = arith.addf %65, %64 : vector<8x96xf32>
    %67 = arith.divf %65, %66 : vector<8x96xf32>
    %68 = vector.extract_strided_slice %67 {offsets = [0, 0], sizes = [8, 32], strides = [1, 1]} : vector<8x96xf32> to vector<8x32xf32>
    %69 = vector.extract_strided_slice %67 {offsets = [0, 32], sizes = [8, 32], strides = [1, 1]} : vector<8x96xf32> to vector<8x32xf32>
    %70 = vector.extract_strided_slice %61 {offsets = [0, 64], sizes = [8, 32], strides = [1, 1]} : vector<8x96xf32> to vector<8x32xf32>
    %71 = vector.extract_strided_slice %59 {offsets = [0, 64], sizes = [8, 32], strides = [1, 1]} : vector<8x96xf32> to vector<8x32xf32>
    %72 = arith.mulf %68, %71 : vector<8x32xf32>
    %73 = arith.addf %70, %72 : vector<8x32xf32>
    %74 = math.tanh %73 : vector<8x32xf32>
    %75 = arith.subf %35, %74 : vector<8x32xf32>
    %76 = arith.mulf %69, %75 : vector<8x32xf32>
    %77 = arith.addf %74, %76 : vector<8x32xf32>
    %78 = arith.truncf %56 : vector<8x32xf32> to vector<8x32xbf16>
    %cst_30 = arith.constant dense<0.000000e+00> : vector<8x96xf32>
    %79 = tpu.matmul %78, %26, %cst_30 {dimension_numbers = #tpu.dot_dimension_numbers<[1], [0], [0], [1], [0, 0, 1, 1], [], []>} : vector<8x32xbf16>, vector<32x96xbf16>, vector<8x96xf32> -> vector<8x96xf32>
    %80 = arith.addf %79, %30 : vector<8x96xf32>
    %81 = vector.extract_strided_slice %19 {offsets = [1, 0, 0], sizes = [1, 8, 96], strides = [1, 1, 1]} : vector<8x8x96xf32> to vector<1x8x96xf32>
    %82 = vector.shape_cast %81 : vector<1x8x96xf32> to vector<8x96xf32>
    %83 = arith.addf %82, %80 : vector<8x96xf32>
    %84 = arith.negf %83 : vector<8x96xf32>
    %85 = math.exp %84 : vector<8x96xf32>
    %cst_31 = arith.constant 1.000000e+00 : f32
    %86 = vector.broadcast %cst_31 : f32 to vector<8x96xf32>
    %87 = arith.addf %86, %85 : vector<8x96xf32>
    %88 = arith.divf %86, %87 : vector<8x96xf32>
    %89 = vector.extract_strided_slice %88 {offsets = [0, 0], sizes = [8, 32], strides = [1, 1]} : vector<8x96xf32> to vector<8x32xf32>
    %90 = vector.extract_strided_slice %88 {offsets = [0, 32], sizes = [8, 32], strides = [1, 1]} : vector<8x96xf32> to vector<8x32xf32>
    %91 = vector.extract_strided_slice %82 {offsets = [0, 64], sizes = [8, 32], strides = [1, 1]} : vector<8x96xf32> to vector<8x32xf32>
    %92 = vector.extract_strided_slice %80 {offsets = [0, 64], sizes = [8, 32], strides = [1, 1]} : vector<8x96xf32> to vector<8x32xf32>
    %93 = arith.mulf %89, %92 : vector<8x32xf32>
    %94 = arith.addf %91, %93 : vector<8x32xf32>
    %95 = math.tanh %94 : vector<8x32xf32>
    %96 = arith.subf %56, %95 : vector<8x32xf32>
    %97 = arith.mulf %90, %96 : vector<8x32xf32>
    %98 = arith.addf %95, %97 : vector<8x32xf32>
    %99 = arith.truncf %77 : vector<8x32xf32> to vector<8x32xbf16>
    %cst_32 = arith.constant dense<0.000000e+00> : vector<8x96xf32>
    %100 = tpu.matmul %99, %27, %cst_32 {dimension_numbers = #tpu.dot_dimension_numbers<[1], [0], [0], [1], [0, 0, 1, 1], [], []>} : vector<8x32xbf16>, vector<32x96xbf16>, vector<8x96xf32> -> vector<8x96xf32>
    %101 = arith.addf %100, %33 : vector<8x96xf32>
    %102 = vector.extract_strided_slice %25 {offsets = [6, 0, 0], sizes = [1, 8, 96], strides = [1, 1, 1]} : vector<8x8x96xf32> to vector<1x8x96xf32>
    %103 = vector.shape_cast %102 : vector<1x8x96xf32> to vector<8x96xf32>
    %104 = arith.addf %103, %101 : vector<8x96xf32>
    %105 = arith.negf %104 : vector<8x96xf32>
    %106 = math.exp %105 : vector<8x96xf32>
    %cst_33 = arith.constant 1.000000e+00 : f32
    %107 = vector.broadcast %cst_33 : f32 to vector<8x96xf32>
    %108 = arith.addf %107, %106 : vector<8x96xf32>
    %109 = arith.divf %107, %108 : vector<8x96xf32>
    %110 = vector.extract_strided_slice %109 {offsets = [0, 0], sizes = [8, 32], strides = [1, 1]} : vector<8x96xf32> to vector<8x32xf32>
    %111 = vector.extract_strided_slice %109 {offsets = [0, 32], sizes = [8, 32], strides = [1, 1]} : vector<8x96xf32> to vector<8x32xf32>
    %112 = vector.extract_strided_slice %103 {offsets = [0, 64], sizes = [8, 32], strides = [1, 1]} : vector<8x96xf32> to vector<8x32xf32>
    %113 = vector.extract_strided_slice %101 {offsets = [0, 64], sizes = [8, 32], strides = [1, 1]} : vector<8x96xf32> to vector<8x32xf32>
    %114 = arith.mulf %110, %113 : vector<8x32xf32>
    %115 = arith.addf %112, %114 : vector<8x32xf32>
    %116 = math.tanh %115 : vector<8x32xf32>
    %117 = arith.subf %77, %116 : vector<8x32xf32>
    %118 = arith.mulf %111, %117 : vector<8x32xf32>
    %119 = arith.addf %116, %118 : vector<8x32xf32>
    %120 = arith.truncf %98 : vector<8x32xf32> to vector<8x32xbf16>
    %cst_34 = arith.constant dense<0.000000e+00> : vector<8x96xf32>
    %121 = tpu.matmul %120, %26, %cst_34 {dimension_numbers = #tpu.dot_dimension_numbers<[1], [0], [0], [1], [0, 0, 1, 1], [], []>} : vector<8x32xbf16>, vector<32x96xbf16>, vector<8x96xf32> -> vector<8x96xf32>
    %122 = arith.addf %121, %30 : vector<8x96xf32>
    %123 = vector.extract_strided_slice %19 {offsets = [2, 0, 0], sizes = [1, 8, 96], strides = [1, 1, 1]} : vector<8x8x96xf32> to vector<1x8x96xf32>
    %124 = vector.shape_cast %123 : vector<1x8x96xf32> to vector<8x96xf32>
    %125 = arith.addf %124, %122 : vector<8x96xf32>
    %126 = arith.negf %125 : vector<8x96xf32>
    %127 = math.exp %126 : vector<8x96xf32>
    %cst_35 = arith.constant 1.000000e+00 : f32
    %128 = vector.broadcast %cst_35 : f32 to vector<8x96xf32>
    %129 = arith.addf %128, %127 : vector<8x96xf32>
    %130 = arith.divf %128, %129 : vector<8x96xf32>
    %131 = vector.extract_strided_slice %130 {offsets = [0, 0], sizes = [8, 32], strides = [1, 1]} : vector<8x96xf32> to vector<8x32xf32>
    %132 = vector.extract_strided_slice %130 {offsets = [0, 32], sizes = [8, 32], strides = [1, 1]} : vector<8x96xf32> to vector<8x32xf32>
    %133 = vector.extract_strided_slice %124 {offsets = [0, 64], sizes = [8, 32], strides = [1, 1]} : vector<8x96xf32> to vector<8x32xf32>
    %134 = vector.extract_strided_slice %122 {offsets = [0, 64], sizes = [8, 32], strides = [1, 1]} : vector<8x96xf32> to vector<8x32xf32>
    %135 = arith.mulf %131, %134 : vector<8x32xf32>
    %136 = arith.addf %133, %135 : vector<8x32xf32>
    %137 = math.tanh %136 : vector<8x32xf32>
    %138 = arith.subf %98, %137 : vector<8x32xf32>
    %139 = arith.mulf %132, %138 : vector<8x32xf32>
    %140 = arith.addf %137, %139 : vector<8x32xf32>
    %141 = arith.truncf %119 : vector<8x32xf32> to vector<8x32xbf16>
    %cst_36 = arith.constant dense<0.000000e+00> : vector<8x96xf32>
    %142 = tpu.matmul %141, %27, %cst_36 {dimension_numbers = #tpu.dot_dimension_numbers<[1], [0], [0], [1], [0, 0, 1, 1], [], []>} : vector<8x32xbf16>, vector<32x96xbf16>, vector<8x96xf32> -> vector<8x96xf32>
    %143 = arith.addf %142, %33 : vector<8x96xf32>
    %144 = vector.extract_strided_slice %25 {offsets = [5, 0, 0], sizes = [1, 8, 96], strides = [1, 1, 1]} : vector<8x8x96xf32> to vector<1x8x96xf32>
    %145 = vector.shape_cast %144 : vector<1x8x96xf32> to vector<8x96xf32>
    %146 = arith.addf %145, %143 : vector<8x96xf32>
    %147 = arith.negf %146 : vector<8x96xf32>
    %148 = math.exp %147 : vector<8x96xf32>
    %cst_37 = arith.constant 1.000000e+00 : f32
    %149 = vector.broadcast %cst_37 : f32 to vector<8x96xf32>
    %150 = arith.addf %149, %148 : vector<8x96xf32>
    %151 = arith.divf %149, %150 : vector<8x96xf32>
    %152 = vector.extract_strided_slice %151 {offsets = [0, 0], sizes = [8, 32], strides = [1, 1]} : vector<8x96xf32> to vector<8x32xf32>
    %153 = vector.extract_strided_slice %151 {offsets = [0, 32], sizes = [8, 32], strides = [1, 1]} : vector<8x96xf32> to vector<8x32xf32>
    %154 = vector.extract_strided_slice %145 {offsets = [0, 64], sizes = [8, 32], strides = [1, 1]} : vector<8x96xf32> to vector<8x32xf32>
    %155 = vector.extract_strided_slice %143 {offsets = [0, 64], sizes = [8, 32], strides = [1, 1]} : vector<8x96xf32> to vector<8x32xf32>
    %156 = arith.mulf %152, %155 : vector<8x32xf32>
    %157 = arith.addf %154, %156 : vector<8x32xf32>
    %158 = math.tanh %157 : vector<8x32xf32>
    %159 = arith.subf %119, %158 : vector<8x32xf32>
    %160 = arith.mulf %153, %159 : vector<8x32xf32>
    %161 = arith.addf %158, %160 : vector<8x32xf32>
    %162 = arith.truncf %140 : vector<8x32xf32> to vector<8x32xbf16>
    %cst_38 = arith.constant dense<0.000000e+00> : vector<8x96xf32>
    %163 = tpu.matmul %162, %26, %cst_38 {dimension_numbers = #tpu.dot_dimension_numbers<[1], [0], [0], [1], [0, 0, 1, 1], [], []>} : vector<8x32xbf16>, vector<32x96xbf16>, vector<8x96xf32> -> vector<8x96xf32>
    %164 = arith.addf %163, %30 : vector<8x96xf32>
    %165 = vector.extract_strided_slice %19 {offsets = [3, 0, 0], sizes = [1, 8, 96], strides = [1, 1, 1]} : vector<8x8x96xf32> to vector<1x8x96xf32>
    %166 = vector.shape_cast %165 : vector<1x8x96xf32> to vector<8x96xf32>
    %167 = arith.addf %166, %164 : vector<8x96xf32>
    %168 = arith.negf %167 : vector<8x96xf32>
    %169 = math.exp %168 : vector<8x96xf32>
    %cst_39 = arith.constant 1.000000e+00 : f32
    %170 = vector.broadcast %cst_39 : f32 to vector<8x96xf32>
    %171 = arith.addf %170, %169 : vector<8x96xf32>
    %172 = arith.divf %170, %171 : vector<8x96xf32>
    %173 = vector.extract_strided_slice %172 {offsets = [0, 0], sizes = [8, 32], strides = [1, 1]} : vector<8x96xf32> to vector<8x32xf32>
    %174 = vector.extract_strided_slice %172 {offsets = [0, 32], sizes = [8, 32], strides = [1, 1]} : vector<8x96xf32> to vector<8x32xf32>
    %175 = vector.extract_strided_slice %166 {offsets = [0, 64], sizes = [8, 32], strides = [1, 1]} : vector<8x96xf32> to vector<8x32xf32>
    %176 = vector.extract_strided_slice %164 {offsets = [0, 64], sizes = [8, 32], strides = [1, 1]} : vector<8x96xf32> to vector<8x32xf32>
    %177 = arith.mulf %173, %176 : vector<8x32xf32>
    %178 = arith.addf %175, %177 : vector<8x32xf32>
    %179 = math.tanh %178 : vector<8x32xf32>
    %180 = arith.subf %140, %179 : vector<8x32xf32>
    %181 = arith.mulf %174, %180 : vector<8x32xf32>
    %182 = arith.addf %179, %181 : vector<8x32xf32>
    %183 = arith.truncf %161 : vector<8x32xf32> to vector<8x32xbf16>
    %cst_40 = arith.constant dense<0.000000e+00> : vector<8x96xf32>
    %184 = tpu.matmul %183, %27, %cst_40 {dimension_numbers = #tpu.dot_dimension_numbers<[1], [0], [0], [1], [0, 0, 1, 1], [], []>} : vector<8x32xbf16>, vector<32x96xbf16>, vector<8x96xf32> -> vector<8x96xf32>
    %185 = arith.addf %184, %33 : vector<8x96xf32>
    %186 = vector.extract_strided_slice %25 {offsets = [4, 0, 0], sizes = [1, 8, 96], strides = [1, 1, 1]} : vector<8x8x96xf32> to vector<1x8x96xf32>
    %187 = vector.shape_cast %186 : vector<1x8x96xf32> to vector<8x96xf32>
    %188 = arith.addf %187, %185 : vector<8x96xf32>
    %189 = arith.negf %188 : vector<8x96xf32>
    %190 = math.exp %189 : vector<8x96xf32>
    %cst_41 = arith.constant 1.000000e+00 : f32
    %191 = vector.broadcast %cst_41 : f32 to vector<8x96xf32>
    %192 = arith.addf %191, %190 : vector<8x96xf32>
    %193 = arith.divf %191, %192 : vector<8x96xf32>
    %194 = vector.extract_strided_slice %193 {offsets = [0, 0], sizes = [8, 32], strides = [1, 1]} : vector<8x96xf32> to vector<8x32xf32>
    %195 = vector.extract_strided_slice %193 {offsets = [0, 32], sizes = [8, 32], strides = [1, 1]} : vector<8x96xf32> to vector<8x32xf32>
    %196 = vector.extract_strided_slice %187 {offsets = [0, 64], sizes = [8, 32], strides = [1, 1]} : vector<8x96xf32> to vector<8x32xf32>
    %197 = vector.extract_strided_slice %185 {offsets = [0, 64], sizes = [8, 32], strides = [1, 1]} : vector<8x96xf32> to vector<8x32xf32>
    %198 = arith.mulf %194, %197 : vector<8x32xf32>
    %199 = arith.addf %196, %198 : vector<8x32xf32>
    %200 = math.tanh %199 : vector<8x32xf32>
    %201 = arith.subf %161, %200 : vector<8x32xf32>
    %202 = arith.mulf %195, %201 : vector<8x32xf32>
    %203 = arith.addf %200, %202 : vector<8x32xf32>
    %204 = arith.truncf %182 : vector<8x32xf32> to vector<8x32xbf16>
    %cst_42 = arith.constant dense<0.000000e+00> : vector<8x96xf32>
    %205 = tpu.matmul %204, %26, %cst_42 {dimension_numbers = #tpu.dot_dimension_numbers<[1], [0], [0], [1], [0, 0, 1, 1], [], []>} : vector<8x32xbf16>, vector<32x96xbf16>, vector<8x96xf32> -> vector<8x96xf32>
    %206 = arith.addf %205, %30 : vector<8x96xf32>
    %207 = vector.extract_strided_slice %19 {offsets = [4, 0, 0], sizes = [1, 8, 96], strides = [1, 1, 1]} : vector<8x8x96xf32> to vector<1x8x96xf32>
    %208 = vector.shape_cast %207 : vector<1x8x96xf32> to vector<8x96xf32>
    %209 = arith.addf %208, %206 : vector<8x96xf32>
    %210 = arith.negf %209 : vector<8x96xf32>
    %211 = math.exp %210 : vector<8x96xf32>
    %cst_43 = arith.constant 1.000000e+00 : f32
    %212 = vector.broadcast %cst_43 : f32 to vector<8x96xf32>
    %213 = arith.addf %212, %211 : vector<8x96xf32>
    %214 = arith.divf %212, %213 : vector<8x96xf32>
    %215 = vector.extract_strided_slice %214 {offsets = [0, 0], sizes = [8, 32], strides = [1, 1]} : vector<8x96xf32> to vector<8x32xf32>
    %216 = vector.extract_strided_slice %214 {offsets = [0, 32], sizes = [8, 32], strides = [1, 1]} : vector<8x96xf32> to vector<8x32xf32>
    %217 = vector.extract_strided_slice %208 {offsets = [0, 64], sizes = [8, 32], strides = [1, 1]} : vector<8x96xf32> to vector<8x32xf32>
    %218 = vector.extract_strided_slice %206 {offsets = [0, 64], sizes = [8, 32], strides = [1, 1]} : vector<8x96xf32> to vector<8x32xf32>
    %219 = arith.mulf %215, %218 : vector<8x32xf32>
    %220 = arith.addf %217, %219 : vector<8x32xf32>
    %221 = math.tanh %220 : vector<8x32xf32>
    %222 = arith.subf %182, %221 : vector<8x32xf32>
    %223 = arith.mulf %216, %222 : vector<8x32xf32>
    %224 = arith.addf %221, %223 : vector<8x32xf32>
    %225 = arith.truncf %203 : vector<8x32xf32> to vector<8x32xbf16>
    %cst_44 = arith.constant dense<0.000000e+00> : vector<8x96xf32>
    %226 = tpu.matmul %225, %27, %cst_44 {dimension_numbers = #tpu.dot_dimension_numbers<[1], [0], [0], [1], [0, 0, 1, 1], [], []>} : vector<8x32xbf16>, vector<32x96xbf16>, vector<8x96xf32> -> vector<8x96xf32>
    %227 = arith.addf %226, %33 : vector<8x96xf32>
    %228 = vector.extract_strided_slice %25 {offsets = [3, 0, 0], sizes = [1, 8, 96], strides = [1, 1, 1]} : vector<8x8x96xf32> to vector<1x8x96xf32>
    %229 = vector.shape_cast %228 : vector<1x8x96xf32> to vector<8x96xf32>
    %230 = arith.addf %229, %227 : vector<8x96xf32>
    %231 = arith.negf %230 : vector<8x96xf32>
    %232 = math.exp %231 : vector<8x96xf32>
    %cst_45 = arith.constant 1.000000e+00 : f32
    %233 = vector.broadcast %cst_45 : f32 to vector<8x96xf32>
    %234 = arith.addf %233, %232 : vector<8x96xf32>
    %235 = arith.divf %233, %234 : vector<8x96xf32>
    %236 = vector.extract_strided_slice %235 {offsets = [0, 0], sizes = [8, 32], strides = [1, 1]} : vector<8x96xf32> to vector<8x32xf32>
    %237 = vector.extract_strided_slice %235 {offsets = [0, 32], sizes = [8, 32], strides = [1, 1]} : vector<8x96xf32> to vector<8x32xf32>
    %238 = vector.extract_strided_slice %229 {offsets = [0, 64], sizes = [8, 32], strides = [1, 1]} : vector<8x96xf32> to vector<8x32xf32>
    %239 = vector.extract_strided_slice %227 {offsets = [0, 64], sizes = [8, 32], strides = [1, 1]} : vector<8x96xf32> to vector<8x32xf32>
    %240 = arith.mulf %236, %239 : vector<8x32xf32>
    %241 = arith.addf %238, %240 : vector<8x32xf32>
    %242 = math.tanh %241 : vector<8x32xf32>
    %243 = arith.subf %203, %242 : vector<8x32xf32>
    %244 = arith.mulf %237, %243 : vector<8x32xf32>
    %245 = arith.addf %242, %244 : vector<8x32xf32>
    %246 = arith.truncf %224 : vector<8x32xf32> to vector<8x32xbf16>
    %cst_46 = arith.constant dense<0.000000e+00> : vector<8x96xf32>
    %247 = tpu.matmul %246, %26, %cst_46 {dimension_numbers = #tpu.dot_dimension_numbers<[1], [0], [0], [1], [0, 0, 1, 1], [], []>} : vector<8x32xbf16>, vector<32x96xbf16>, vector<8x96xf32> -> vector<8x96xf32>
    %248 = arith.addf %247, %30 : vector<8x96xf32>
    %249 = vector.extract_strided_slice %19 {offsets = [5, 0, 0], sizes = [1, 8, 96], strides = [1, 1, 1]} : vector<8x8x96xf32> to vector<1x8x96xf32>
    %250 = vector.shape_cast %249 : vector<1x8x96xf32> to vector<8x96xf32>
    %251 = arith.addf %250, %248 : vector<8x96xf32>
    %252 = arith.negf %251 : vector<8x96xf32>
    %253 = math.exp %252 : vector<8x96xf32>
    %cst_47 = arith.constant 1.000000e+00 : f32
    %254 = vector.broadcast %cst_47 : f32 to vector<8x96xf32>
    %255 = arith.addf %254, %253 : vector<8x96xf32>
    %256 = arith.divf %254, %255 : vector<8x96xf32>
    %257 = vector.extract_strided_slice %256 {offsets = [0, 0], sizes = [8, 32], strides = [1, 1]} : vector<8x96xf32> to vector<8x32xf32>
    %258 = vector.extract_strided_slice %256 {offsets = [0, 32], sizes = [8, 32], strides = [1, 1]} : vector<8x96xf32> to vector<8x32xf32>
    %259 = vector.extract_strided_slice %250 {offsets = [0, 64], sizes = [8, 32], strides = [1, 1]} : vector<8x96xf32> to vector<8x32xf32>
    %260 = vector.extract_strided_slice %248 {offsets = [0, 64], sizes = [8, 32], strides = [1, 1]} : vector<8x96xf32> to vector<8x32xf32>
    %261 = arith.mulf %257, %260 : vector<8x32xf32>
    %262 = arith.addf %259, %261 : vector<8x32xf32>
    %263 = math.tanh %262 : vector<8x32xf32>
    %264 = arith.subf %224, %263 : vector<8x32xf32>
    %265 = arith.mulf %258, %264 : vector<8x32xf32>
    %266 = arith.addf %263, %265 : vector<8x32xf32>
    %267 = arith.truncf %245 : vector<8x32xf32> to vector<8x32xbf16>
    %cst_48 = arith.constant dense<0.000000e+00> : vector<8x96xf32>
    %268 = tpu.matmul %267, %27, %cst_48 {dimension_numbers = #tpu.dot_dimension_numbers<[1], [0], [0], [1], [0, 0, 1, 1], [], []>} : vector<8x32xbf16>, vector<32x96xbf16>, vector<8x96xf32> -> vector<8x96xf32>
    %269 = arith.addf %268, %33 : vector<8x96xf32>
    %270 = vector.extract_strided_slice %25 {offsets = [2, 0, 0], sizes = [1, 8, 96], strides = [1, 1, 1]} : vector<8x8x96xf32> to vector<1x8x96xf32>
    %271 = vector.shape_cast %270 : vector<1x8x96xf32> to vector<8x96xf32>
    %272 = arith.addf %271, %269 : vector<8x96xf32>
    %273 = arith.negf %272 : vector<8x96xf32>
    %274 = math.exp %273 : vector<8x96xf32>
    %cst_49 = arith.constant 1.000000e+00 : f32
    %275 = vector.broadcast %cst_49 : f32 to vector<8x96xf32>
    %276 = arith.addf %275, %274 : vector<8x96xf32>
    %277 = arith.divf %275, %276 : vector<8x96xf32>
    %278 = vector.extract_strided_slice %277 {offsets = [0, 0], sizes = [8, 32], strides = [1, 1]} : vector<8x96xf32> to vector<8x32xf32>
    %279 = vector.extract_strided_slice %277 {offsets = [0, 32], sizes = [8, 32], strides = [1, 1]} : vector<8x96xf32> to vector<8x32xf32>
    %280 = vector.extract_strided_slice %271 {offsets = [0, 64], sizes = [8, 32], strides = [1, 1]} : vector<8x96xf32> to vector<8x32xf32>
    %281 = vector.extract_strided_slice %269 {offsets = [0, 64], sizes = [8, 32], strides = [1, 1]} : vector<8x96xf32> to vector<8x32xf32>
    %282 = arith.mulf %278, %281 : vector<8x32xf32>
    %283 = arith.addf %280, %282 : vector<8x32xf32>
    %284 = math.tanh %283 : vector<8x32xf32>
    %285 = arith.subf %245, %284 : vector<8x32xf32>
    %286 = arith.mulf %279, %285 : vector<8x32xf32>
    %287 = arith.addf %284, %286 : vector<8x32xf32>
    %288 = arith.truncf %266 : vector<8x32xf32> to vector<8x32xbf16>
    %cst_50 = arith.constant dense<0.000000e+00> : vector<8x96xf32>
    %289 = tpu.matmul %288, %26, %cst_50 {dimension_numbers = #tpu.dot_dimension_numbers<[1], [0], [0], [1], [0, 0, 1, 1], [], []>} : vector<8x32xbf16>, vector<32x96xbf16>, vector<8x96xf32> -> vector<8x96xf32>
    %290 = arith.addf %289, %30 : vector<8x96xf32>
    %291 = vector.extract_strided_slice %19 {offsets = [6, 0, 0], sizes = [1, 8, 96], strides = [1, 1, 1]} : vector<8x8x96xf32> to vector<1x8x96xf32>
    %292 = vector.shape_cast %291 : vector<1x8x96xf32> to vector<8x96xf32>
    %293 = arith.addf %292, %290 : vector<8x96xf32>
    %294 = arith.negf %293 : vector<8x96xf32>
    %295 = math.exp %294 : vector<8x96xf32>
    %cst_51 = arith.constant 1.000000e+00 : f32
    %296 = vector.broadcast %cst_51 : f32 to vector<8x96xf32>
    %297 = arith.addf %296, %295 : vector<8x96xf32>
    %298 = arith.divf %296, %297 : vector<8x96xf32>
    %299 = vector.extract_strided_slice %298 {offsets = [0, 0], sizes = [8, 32], strides = [1, 1]} : vector<8x96xf32> to vector<8x32xf32>
    %300 = vector.extract_strided_slice %298 {offsets = [0, 32], sizes = [8, 32], strides = [1, 1]} : vector<8x96xf32> to vector<8x32xf32>
    %301 = vector.extract_strided_slice %292 {offsets = [0, 64], sizes = [8, 32], strides = [1, 1]} : vector<8x96xf32> to vector<8x32xf32>
    %302 = vector.extract_strided_slice %290 {offsets = [0, 64], sizes = [8, 32], strides = [1, 1]} : vector<8x96xf32> to vector<8x32xf32>
    %303 = arith.mulf %299, %302 : vector<8x32xf32>
    %304 = arith.addf %301, %303 : vector<8x32xf32>
    %305 = math.tanh %304 : vector<8x32xf32>
    %306 = arith.subf %266, %305 : vector<8x32xf32>
    %307 = arith.mulf %300, %306 : vector<8x32xf32>
    %308 = arith.addf %305, %307 : vector<8x32xf32>
    %309 = arith.truncf %287 : vector<8x32xf32> to vector<8x32xbf16>
    %cst_52 = arith.constant dense<0.000000e+00> : vector<8x96xf32>
    %310 = tpu.matmul %309, %27, %cst_52 {dimension_numbers = #tpu.dot_dimension_numbers<[1], [0], [0], [1], [0, 0, 1, 1], [], []>} : vector<8x32xbf16>, vector<32x96xbf16>, vector<8x96xf32> -> vector<8x96xf32>
    %311 = arith.addf %310, %33 : vector<8x96xf32>
    %312 = vector.extract_strided_slice %25 {offsets = [1, 0, 0], sizes = [1, 8, 96], strides = [1, 1, 1]} : vector<8x8x96xf32> to vector<1x8x96xf32>
    %313 = vector.shape_cast %312 : vector<1x8x96xf32> to vector<8x96xf32>
    %314 = arith.addf %313, %311 : vector<8x96xf32>
    %315 = arith.negf %314 : vector<8x96xf32>
    %316 = math.exp %315 : vector<8x96xf32>
    %cst_53 = arith.constant 1.000000e+00 : f32
    %317 = vector.broadcast %cst_53 : f32 to vector<8x96xf32>
    %318 = arith.addf %317, %316 : vector<8x96xf32>
    %319 = arith.divf %317, %318 : vector<8x96xf32>
    %320 = vector.extract_strided_slice %319 {offsets = [0, 0], sizes = [8, 32], strides = [1, 1]} : vector<8x96xf32> to vector<8x32xf32>
    %321 = vector.extract_strided_slice %319 {offsets = [0, 32], sizes = [8, 32], strides = [1, 1]} : vector<8x96xf32> to vector<8x32xf32>
    %322 = vector.extract_strided_slice %313 {offsets = [0, 64], sizes = [8, 32], strides = [1, 1]} : vector<8x96xf32> to vector<8x32xf32>
    %323 = vector.extract_strided_slice %311 {offsets = [0, 64], sizes = [8, 32], strides = [1, 1]} : vector<8x96xf32> to vector<8x32xf32>
    %324 = arith.mulf %320, %323 : vector<8x32xf32>
    %325 = arith.addf %322, %324 : vector<8x32xf32>
    %326 = math.tanh %325 : vector<8x32xf32>
    %327 = arith.subf %287, %326 : vector<8x32xf32>
    %328 = arith.mulf %321, %327 : vector<8x32xf32>
    %329 = arith.addf %326, %328 : vector<8x32xf32>
    %330 = arith.truncf %308 : vector<8x32xf32> to vector<8x32xbf16>
    %cst_54 = arith.constant dense<0.000000e+00> : vector<8x96xf32>
    %331 = tpu.matmul %330, %26, %cst_54 {dimension_numbers = #tpu.dot_dimension_numbers<[1], [0], [0], [1], [0, 0, 1, 1], [], []>} : vector<8x32xbf16>, vector<32x96xbf16>, vector<8x96xf32> -> vector<8x96xf32>
    %332 = arith.addf %331, %30 : vector<8x96xf32>
    %333 = vector.extract_strided_slice %19 {offsets = [7, 0, 0], sizes = [1, 8, 96], strides = [1, 1, 1]} : vector<8x8x96xf32> to vector<1x8x96xf32>
    %334 = vector.shape_cast %333 : vector<1x8x96xf32> to vector<8x96xf32>
    %335 = arith.addf %334, %332 : vector<8x96xf32>
    %336 = arith.negf %335 : vector<8x96xf32>
    %337 = math.exp %336 : vector<8x96xf32>
    %cst_55 = arith.constant 1.000000e+00 : f32
    %338 = vector.broadcast %cst_55 : f32 to vector<8x96xf32>
    %339 = arith.addf %338, %337 : vector<8x96xf32>
    %340 = arith.divf %338, %339 : vector<8x96xf32>
    %341 = vector.extract_strided_slice %340 {offsets = [0, 0], sizes = [8, 32], strides = [1, 1]} : vector<8x96xf32> to vector<8x32xf32>
    %342 = vector.extract_strided_slice %340 {offsets = [0, 32], sizes = [8, 32], strides = [1, 1]} : vector<8x96xf32> to vector<8x32xf32>
    %343 = vector.extract_strided_slice %334 {offsets = [0, 64], sizes = [8, 32], strides = [1, 1]} : vector<8x96xf32> to vector<8x32xf32>
    %344 = vector.extract_strided_slice %332 {offsets = [0, 64], sizes = [8, 32], strides = [1, 1]} : vector<8x96xf32> to vector<8x32xf32>
    %345 = arith.mulf %341, %344 : vector<8x32xf32>
    %346 = arith.addf %343, %345 : vector<8x32xf32>
    %347 = math.tanh %346 : vector<8x32xf32>
    %348 = arith.subf %308, %347 : vector<8x32xf32>
    %349 = arith.mulf %342, %348 : vector<8x32xf32>
    %350 = arith.addf %347, %349 : vector<8x32xf32>
    %351 = arith.truncf %329 : vector<8x32xf32> to vector<8x32xbf16>
    %cst_56 = arith.constant dense<0.000000e+00> : vector<8x96xf32>
    %352 = tpu.matmul %351, %27, %cst_56 {dimension_numbers = #tpu.dot_dimension_numbers<[1], [0], [0], [1], [0, 0, 1, 1], [], []>} : vector<8x32xbf16>, vector<32x96xbf16>, vector<8x96xf32> -> vector<8x96xf32>
    %353 = arith.addf %352, %33 : vector<8x96xf32>
    %354 = vector.extract_strided_slice %25 {offsets = [0, 0, 0], sizes = [1, 8, 96], strides = [1, 1, 1]} : vector<8x8x96xf32> to vector<1x8x96xf32>
    %355 = vector.shape_cast %354 : vector<1x8x96xf32> to vector<8x96xf32>
    %356 = arith.addf %355, %353 : vector<8x96xf32>
    %357 = arith.negf %356 : vector<8x96xf32>
    %358 = math.exp %357 : vector<8x96xf32>
    %cst_57 = arith.constant 1.000000e+00 : f32
    %359 = vector.broadcast %cst_57 : f32 to vector<8x96xf32>
    %360 = arith.addf %359, %358 : vector<8x96xf32>
    %361 = arith.divf %359, %360 : vector<8x96xf32>
    %362 = vector.extract_strided_slice %361 {offsets = [0, 0], sizes = [8, 32], strides = [1, 1]} : vector<8x96xf32> to vector<8x32xf32>
    %363 = vector.extract_strided_slice %361 {offsets = [0, 32], sizes = [8, 32], strides = [1, 1]} : vector<8x96xf32> to vector<8x32xf32>
    %364 = vector.extract_strided_slice %355 {offsets = [0, 64], sizes = [8, 32], strides = [1, 1]} : vector<8x96xf32> to vector<8x32xf32>
    %365 = vector.extract_strided_slice %353 {offsets = [0, 64], sizes = [8, 32], strides = [1, 1]} : vector<8x96xf32> to vector<8x32xf32>
    %366 = arith.mulf %362, %365 : vector<8x32xf32>
    %367 = arith.addf %364, %366 : vector<8x32xf32>
    %368 = math.tanh %367 : vector<8x32xf32>
    %369 = arith.subf %329, %368 : vector<8x32xf32>
    %370 = arith.mulf %363, %369 : vector<8x32xf32>
    %371 = arith.addf %368, %370 : vector<8x32xf32>
    %372 = tpu.concatenate %56, %371 in 1 : vector<8x32xf32>, vector<8x32xf32> -> vector<8x64xf32>
    %373 = tpu.concatenate %98, %329 in 1 : vector<8x32xf32>, vector<8x32xf32> -> vector<8x64xf32>
    %374 = tpu.concatenate %140, %287 in 1 : vector<8x32xf32>, vector<8x32xf32> -> vector<8x64xf32>
    %375 = tpu.concatenate %182, %245 in 1 : vector<8x32xf32>, vector<8x32xf32> -> vector<8x64xf32>
    %376 = tpu.concatenate %224, %203 in 1 : vector<8x32xf32>, vector<8x32xf32> -> vector<8x64xf32>
    %377 = tpu.concatenate %266, %161 in 1 : vector<8x32xf32>, vector<8x32xf32> -> vector<8x64xf32>
    %378 = tpu.concatenate %308, %119 in 1 : vector<8x32xf32>, vector<8x32xf32> -> vector<8x64xf32>
    %379 = tpu.concatenate %350, %77 in 1 : vector<8x32xf32>, vector<8x32xf32> -> vector<8x64xf32>
    %380 = tpu.concatenate %372, %373, %374, %375, %376, %377, %378, %379 in 0 : vector<8x64xf32>, vector<8x64xf32>, vector<8x64xf32>, vector<8x64xf32>, vector<8x64xf32>, vector<8x64xf32>, vector<8x64xf32>, vector<8x64xf32> -> vector<64x64xf32>
    %381 = arith.truncf %380 : vector<64x64xf32> to vector<64x64xbf16>
    %c0_58 = arith.constant 0 : index
    %c0_59 = arith.constant 0 : index
    %382 = vector.load %arg11[%c0_58, %c0_59] : memref<64x16xbf16, #tpu.memory_space<vmem>>, vector<64x16xbf16>
    %cst_60 = arith.constant dense<0.000000e+00> : vector<64x16xf32>
    %383 = tpu.matmul %381, %382, %cst_60 {dimension_numbers = #tpu.dot_dimension_numbers<[1], [0], [0], [1], [0, 0, 1, 1], [], []>} : vector<64x64xbf16>, vector<64x16xbf16>, vector<64x16xf32> -> vector<64x16xf32>
    %384 = math.tanh %383 : vector<64x16xf32>
    %385 = arith.truncf %384 : vector<64x16xf32> to vector<64x16xbf16>
    %c0_61 = arith.constant 0 : index
    %c0_62 = arith.constant 0 : index
    %386 = vector.load %arg12[%c0_61, %c0_62] : memref<16x4xbf16, #tpu.memory_space<vmem>>, vector<16x4xbf16>
    %cst_63 = arith.constant dense<0.000000e+00> : vector<64x4xf32>
    %387 = tpu.matmul %385, %386, %cst_63 {dimension_numbers = #tpu.dot_dimension_numbers<[1], [0], [0], [1], [0, 0, 1, 1], [], []>} : vector<64x16xbf16>, vector<16x4xbf16>, vector<64x4xf32> -> vector<64x4xf32>
    %388 = vector.shape_cast %387 : vector<64x4xf32> to vector<8x8x4xf32>
    %cst_64 = arith.constant dense<0xFF800000> : vector<8x4xf32>
    %389 = vector.multi_reduction <maximumf>, %388, %cst_64 [0] : vector<8x8x4xf32> to vector<8x4xf32>
    %390 = vector.shape_cast %389 : vector<8x4xf32> to vector<1x8x4xf32>
    %391 = vector.broadcast %390 : vector<1x8x4xf32> to vector<8x8x4xf32>
    %392 = arith.subf %388, %391 : vector<8x8x4xf32>
    %393 = math.exp %392 : vector<8x8x4xf32>
    %cst_65 = arith.constant dense<0.000000e+00> : vector<8x4xf32>
    %394 = vector.multi_reduction <add>, %393, %cst_65 [0] : vector<8x8x4xf32> to vector<8x4xf32>
    %395 = vector.shape_cast %394 : vector<8x4xf32> to vector<1x8x4xf32>
    %396 = tpu.reciprocal %395 {approx = true} : vector<1x8x4xf32> -> vector<1x8x4xf32>
    %397 = vector.broadcast %396 : vector<1x8x4xf32> to vector<8x8x4xf32>
    %398 = arith.mulf %393, %397 : vector<8x8x4xf32>
    %399 = vector.shape_cast %380 : vector<64x64xf32> to vector<8x8x64xf32>
    %cst_66 = arith.constant 0.000000e+00 : f32
    %400 = vector.broadcast %cst_66 : f32 to vector<8x64xf32>
    %401 = vector.extract_strided_slice %398 {offsets = [0, 0, 0], sizes = [1, 8, 1], strides = [1, 1, 1]} : vector<8x8x4xf32> to vector<1x8x1xf32>
    %402 = vector.shape_cast %401 : vector<1x8x1xf32> to vector<8x1xf32>
    %403 = vector.extract_strided_slice %399 {offsets = [0, 0, 0], sizes = [1, 8, 64], strides = [1, 1, 1]} : vector<8x8x64xf32> to vector<1x8x64xf32>
    %404 = vector.shape_cast %403 : vector<1x8x64xf32> to vector<8x64xf32>
    %405 = vector.broadcast %402 : vector<8x1xf32> to vector<8x64xf32>
    %406 = arith.mulf %405, %404 : vector<8x64xf32>
    %407 = arith.addf %400, %406 : vector<8x64xf32>
    %408 = vector.extract_strided_slice %398 {offsets = [1, 0, 0], sizes = [1, 8, 1], strides = [1, 1, 1]} : vector<8x8x4xf32> to vector<1x8x1xf32>
    %409 = vector.shape_cast %408 : vector<1x8x1xf32> to vector<8x1xf32>
    %410 = vector.extract_strided_slice %399 {offsets = [1, 0, 0], sizes = [1, 8, 64], strides = [1, 1, 1]} : vector<8x8x64xf32> to vector<1x8x64xf32>
    %411 = vector.shape_cast %410 : vector<1x8x64xf32> to vector<8x64xf32>
    %412 = vector.broadcast %409 : vector<8x1xf32> to vector<8x64xf32>
    %413 = arith.mulf %412, %411 : vector<8x64xf32>
    %414 = arith.addf %407, %413 : vector<8x64xf32>
    %415 = vector.extract_strided_slice %398 {offsets = [2, 0, 0], sizes = [1, 8, 1], strides = [1, 1, 1]} : vector<8x8x4xf32> to vector<1x8x1xf32>
    %416 = vector.shape_cast %415 : vector<1x8x1xf32> to vector<8x1xf32>
    %417 = vector.extract_strided_slice %399 {offsets = [2, 0, 0], sizes = [1, 8, 64], strides = [1, 1, 1]} : vector<8x8x64xf32> to vector<1x8x64xf32>
    %418 = vector.shape_cast %417 : vector<1x8x64xf32> to vector<8x64xf32>
    %419 = vector.broadcast %416 : vector<8x1xf32> to vector<8x64xf32>
    %420 = arith.mulf %419, %418 : vector<8x64xf32>
    %421 = arith.addf %414, %420 : vector<8x64xf32>
    %422 = vector.extract_strided_slice %398 {offsets = [3, 0, 0], sizes = [1, 8, 1], strides = [1, 1, 1]} : vector<8x8x4xf32> to vector<1x8x1xf32>
    %423 = vector.shape_cast %422 : vector<1x8x1xf32> to vector<8x1xf32>
    %424 = vector.extract_strided_slice %399 {offsets = [3, 0, 0], sizes = [1, 8, 64], strides = [1, 1, 1]} : vector<8x8x64xf32> to vector<1x8x64xf32>
    %425 = vector.shape_cast %424 : vector<1x8x64xf32> to vector<8x64xf32>
    %426 = vector.broadcast %423 : vector<8x1xf32> to vector<8x64xf32>
    %427 = arith.mulf %426, %425 : vector<8x64xf32>
    %428 = arith.addf %421, %427 : vector<8x64xf32>
    %429 = vector.extract_strided_slice %398 {offsets = [4, 0, 0], sizes = [1, 8, 1], strides = [1, 1, 1]} : vector<8x8x4xf32> to vector<1x8x1xf32>
    %430 = vector.shape_cast %429 : vector<1x8x1xf32> to vector<8x1xf32>
    %431 = vector.extract_strided_slice %399 {offsets = [4, 0, 0], sizes = [1, 8, 64], strides = [1, 1, 1]} : vector<8x8x64xf32> to vector<1x8x64xf32>
    %432 = vector.shape_cast %431 : vector<1x8x64xf32> to vector<8x64xf32>
    %433 = vector.broadcast %430 : vector<8x1xf32> to vector<8x64xf32>
    %434 = arith.mulf %433, %432 : vector<8x64xf32>
    %435 = arith.addf %428, %434 : vector<8x64xf32>
    %436 = vector.extract_strided_slice %398 {offsets = [5, 0, 0], sizes = [1, 8, 1], strides = [1, 1, 1]} : vector<8x8x4xf32> to vector<1x8x1xf32>
    %437 = vector.shape_cast %436 : vector<1x8x1xf32> to vector<8x1xf32>
    %438 = vector.extract_strided_slice %399 {offsets = [5, 0, 0], sizes = [1, 8, 64], strides = [1, 1, 1]} : vector<8x8x64xf32> to vector<1x8x64xf32>
    %439 = vector.shape_cast %438 : vector<1x8x64xf32> to vector<8x64xf32>
    %440 = vector.broadcast %437 : vector<8x1xf32> to vector<8x64xf32>
    %441 = arith.mulf %440, %439 : vector<8x64xf32>
    %442 = arith.addf %435, %441 : vector<8x64xf32>
    %443 = vector.extract_strided_slice %398 {offsets = [6, 0, 0], sizes = [1, 8, 1], strides = [1, 1, 1]} : vector<8x8x4xf32> to vector<1x8x1xf32>
    %444 = vector.shape_cast %443 : vector<1x8x1xf32> to vector<8x1xf32>
    %445 = vector.extract_strided_slice %399 {offsets = [6, 0, 0], sizes = [1, 8, 64], strides = [1, 1, 1]} : vector<8x8x64xf32> to vector<1x8x64xf32>
    %446 = vector.shape_cast %445 : vector<1x8x64xf32> to vector<8x64xf32>
    %447 = vector.broadcast %444 : vector<8x1xf32> to vector<8x64xf32>
    %448 = arith.mulf %447, %446 : vector<8x64xf32>
    %449 = arith.addf %442, %448 : vector<8x64xf32>
    %450 = vector.extract_strided_slice %398 {offsets = [7, 0, 0], sizes = [1, 8, 1], strides = [1, 1, 1]} : vector<8x8x4xf32> to vector<1x8x1xf32>
    %451 = vector.shape_cast %450 : vector<1x8x1xf32> to vector<8x1xf32>
    %452 = vector.extract_strided_slice %399 {offsets = [7, 0, 0], sizes = [1, 8, 64], strides = [1, 1, 1]} : vector<8x8x64xf32> to vector<1x8x64xf32>
    %453 = vector.shape_cast %452 : vector<1x8x64xf32> to vector<8x64xf32>
    %454 = vector.broadcast %451 : vector<8x1xf32> to vector<8x64xf32>
    %455 = arith.mulf %454, %453 : vector<8x64xf32>
    %456 = arith.addf %449, %455 : vector<8x64xf32>
    %cst_67 = arith.constant 0.000000e+00 : f32
    %457 = vector.broadcast %cst_67 : f32 to vector<8x64xf32>
    %458 = vector.extract_strided_slice %398 {offsets = [0, 0, 1], sizes = [1, 8, 1], strides = [1, 1, 1]} : vector<8x8x4xf32> to vector<1x8x1xf32>
    %459 = vector.shape_cast %458 : vector<1x8x1xf32> to vector<8x1xf32>
    %460 = vector.extract_strided_slice %399 {offsets = [0, 0, 0], sizes = [1, 8, 64], strides = [1, 1, 1]} : vector<8x8x64xf32> to vector<1x8x64xf32>
    %461 = vector.shape_cast %460 : vector<1x8x64xf32> to vector<8x64xf32>
    %462 = vector.broadcast %459 : vector<8x1xf32> to vector<8x64xf32>
    %463 = arith.mulf %462, %461 : vector<8x64xf32>
    %464 = arith.addf %457, %463 : vector<8x64xf32>
    %465 = vector.extract_strided_slice %398 {offsets = [1, 0, 1], sizes = [1, 8, 1], strides = [1, 1, 1]} : vector<8x8x4xf32> to vector<1x8x1xf32>
    %466 = vector.shape_cast %465 : vector<1x8x1xf32> to vector<8x1xf32>
    %467 = vector.extract_strided_slice %399 {offsets = [1, 0, 0], sizes = [1, 8, 64], strides = [1, 1, 1]} : vector<8x8x64xf32> to vector<1x8x64xf32>
    %468 = vector.shape_cast %467 : vector<1x8x64xf32> to vector<8x64xf32>
    %469 = vector.broadcast %466 : vector<8x1xf32> to vector<8x64xf32>
    %470 = arith.mulf %469, %468 : vector<8x64xf32>
    %471 = arith.addf %464, %470 : vector<8x64xf32>
    %472 = vector.extract_strided_slice %398 {offsets = [2, 0, 1], sizes = [1, 8, 1], strides = [1, 1, 1]} : vector<8x8x4xf32> to vector<1x8x1xf32>
    %473 = vector.shape_cast %472 : vector<1x8x1xf32> to vector<8x1xf32>
    %474 = vector.extract_strided_slice %399 {offsets = [2, 0, 0], sizes = [1, 8, 64], strides = [1, 1, 1]} : vector<8x8x64xf32> to vector<1x8x64xf32>
    %475 = vector.shape_cast %474 : vector<1x8x64xf32> to vector<8x64xf32>
    %476 = vector.broadcast %473 : vector<8x1xf32> to vector<8x64xf32>
    %477 = arith.mulf %476, %475 : vector<8x64xf32>
    %478 = arith.addf %471, %477 : vector<8x64xf32>
    %479 = vector.extract_strided_slice %398 {offsets = [3, 0, 1], sizes = [1, 8, 1], strides = [1, 1, 1]} : vector<8x8x4xf32> to vector<1x8x1xf32>
    %480 = vector.shape_cast %479 : vector<1x8x1xf32> to vector<8x1xf32>
    %481 = vector.extract_strided_slice %399 {offsets = [3, 0, 0], sizes = [1, 8, 64], strides = [1, 1, 1]} : vector<8x8x64xf32> to vector<1x8x64xf32>
    %482 = vector.shape_cast %481 : vector<1x8x64xf32> to vector<8x64xf32>
    %483 = vector.broadcast %480 : vector<8x1xf32> to vector<8x64xf32>
    %484 = arith.mulf %483, %482 : vector<8x64xf32>
    %485 = arith.addf %478, %484 : vector<8x64xf32>
    %486 = vector.extract_strided_slice %398 {offsets = [4, 0, 1], sizes = [1, 8, 1], strides = [1, 1, 1]} : vector<8x8x4xf32> to vector<1x8x1xf32>
    %487 = vector.shape_cast %486 : vector<1x8x1xf32> to vector<8x1xf32>
    %488 = vector.extract_strided_slice %399 {offsets = [4, 0, 0], sizes = [1, 8, 64], strides = [1, 1, 1]} : vector<8x8x64xf32> to vector<1x8x64xf32>
    %489 = vector.shape_cast %488 : vector<1x8x64xf32> to vector<8x64xf32>
    %490 = vector.broadcast %487 : vector<8x1xf32> to vector<8x64xf32>
    %491 = arith.mulf %490, %489 : vector<8x64xf32>
    %492 = arith.addf %485, %491 : vector<8x64xf32>
    %493 = vector.extract_strided_slice %398 {offsets = [5, 0, 1], sizes = [1, 8, 1], strides = [1, 1, 1]} : vector<8x8x4xf32> to vector<1x8x1xf32>
    %494 = vector.shape_cast %493 : vector<1x8x1xf32> to vector<8x1xf32>
    %495 = vector.extract_strided_slice %399 {offsets = [5, 0, 0], sizes = [1, 8, 64], strides = [1, 1, 1]} : vector<8x8x64xf32> to vector<1x8x64xf32>
    %496 = vector.shape_cast %495 : vector<1x8x64xf32> to vector<8x64xf32>
    %497 = vector.broadcast %494 : vector<8x1xf32> to vector<8x64xf32>
    %498 = arith.mulf %497, %496 : vector<8x64xf32>
    %499 = arith.addf %492, %498 : vector<8x64xf32>
    %500 = vector.extract_strided_slice %398 {offsets = [6, 0, 1], sizes = [1, 8, 1], strides = [1, 1, 1]} : vector<8x8x4xf32> to vector<1x8x1xf32>
    %501 = vector.shape_cast %500 : vector<1x8x1xf32> to vector<8x1xf32>
    %502 = vector.extract_strided_slice %399 {offsets = [6, 0, 0], sizes = [1, 8, 64], strides = [1, 1, 1]} : vector<8x8x64xf32> to vector<1x8x64xf32>
    %503 = vector.shape_cast %502 : vector<1x8x64xf32> to vector<8x64xf32>
    %504 = vector.broadcast %501 : vector<8x1xf32> to vector<8x64xf32>
    %505 = arith.mulf %504, %503 : vector<8x64xf32>
    %506 = arith.addf %499, %505 : vector<8x64xf32>
    %507 = vector.extract_strided_slice %398 {offsets = [7, 0, 1], sizes = [1, 8, 1], strides = [1, 1, 1]} : vector<8x8x4xf32> to vector<1x8x1xf32>
    %508 = vector.shape_cast %507 : vector<1x8x1xf32> to vector<8x1xf32>
    %509 = vector.extract_strided_slice %399 {offsets = [7, 0, 0], sizes = [1, 8, 64], strides = [1, 1, 1]} : vector<8x8x64xf32> to vector<1x8x64xf32>
    %510 = vector.shape_cast %509 : vector<1x8x64xf32> to vector<8x64xf32>
    %511 = vector.broadcast %508 : vector<8x1xf32> to vector<8x64xf32>
    %512 = arith.mulf %511, %510 : vector<8x64xf32>
    %513 = arith.addf %506, %512 : vector<8x64xf32>
    %cst_68 = arith.constant 0.000000e+00 : f32
    %514 = vector.broadcast %cst_68 : f32 to vector<8x64xf32>
    %515 = vector.extract_strided_slice %398 {offsets = [0, 0, 2], sizes = [1, 8, 1], strides = [1, 1, 1]} : vector<8x8x4xf32> to vector<1x8x1xf32>
    %516 = vector.shape_cast %515 : vector<1x8x1xf32> to vector<8x1xf32>
    %517 = vector.extract_strided_slice %399 {offsets = [0, 0, 0], sizes = [1, 8, 64], strides = [1, 1, 1]} : vector<8x8x64xf32> to vector<1x8x64xf32>
    %518 = vector.shape_cast %517 : vector<1x8x64xf32> to vector<8x64xf32>
    %519 = vector.broadcast %516 : vector<8x1xf32> to vector<8x64xf32>
    %520 = arith.mulf %519, %518 : vector<8x64xf32>
    %521 = arith.addf %514, %520 : vector<8x64xf32>
    %522 = vector.extract_strided_slice %398 {offsets = [1, 0, 2], sizes = [1, 8, 1], strides = [1, 1, 1]} : vector<8x8x4xf32> to vector<1x8x1xf32>
    %523 = vector.shape_cast %522 : vector<1x8x1xf32> to vector<8x1xf32>
    %524 = vector.extract_strided_slice %399 {offsets = [1, 0, 0], sizes = [1, 8, 64], strides = [1, 1, 1]} : vector<8x8x64xf32> to vector<1x8x64xf32>
    %525 = vector.shape_cast %524 : vector<1x8x64xf32> to vector<8x64xf32>
    %526 = vector.broadcast %523 : vector<8x1xf32> to vector<8x64xf32>
    %527 = arith.mulf %526, %525 : vector<8x64xf32>
    %528 = arith.addf %521, %527 : vector<8x64xf32>
    %529 = vector.extract_strided_slice %398 {offsets = [2, 0, 2], sizes = [1, 8, 1], strides = [1, 1, 1]} : vector<8x8x4xf32> to vector<1x8x1xf32>
    %530 = vector.shape_cast %529 : vector<1x8x1xf32> to vector<8x1xf32>
    %531 = vector.extract_strided_slice %399 {offsets = [2, 0, 0], sizes = [1, 8, 64], strides = [1, 1, 1]} : vector<8x8x64xf32> to vector<1x8x64xf32>
    %532 = vector.shape_cast %531 : vector<1x8x64xf32> to vector<8x64xf32>
    %533 = vector.broadcast %530 : vector<8x1xf32> to vector<8x64xf32>
    %534 = arith.mulf %533, %532 : vector<8x64xf32>
    %535 = arith.addf %528, %534 : vector<8x64xf32>
    %536 = vector.extract_strided_slice %398 {offsets = [3, 0, 2], sizes = [1, 8, 1], strides = [1, 1, 1]} : vector<8x8x4xf32> to vector<1x8x1xf32>
    %537 = vector.shape_cast %536 : vector<1x8x1xf32> to vector<8x1xf32>
    %538 = vector.extract_strided_slice %399 {offsets = [3, 0, 0], sizes = [1, 8, 64], strides = [1, 1, 1]} : vector<8x8x64xf32> to vector<1x8x64xf32>
    %539 = vector.shape_cast %538 : vector<1x8x64xf32> to vector<8x64xf32>
    %540 = vector.broadcast %537 : vector<8x1xf32> to vector<8x64xf32>
    %541 = arith.mulf %540, %539 : vector<8x64xf32>
    %542 = arith.addf %535, %541 : vector<8x64xf32>
    %543 = vector.extract_strided_slice %398 {offsets = [4, 0, 2], sizes = [1, 8, 1], strides = [1, 1, 1]} : vector<8x8x4xf32> to vector<1x8x1xf32>
    %544 = vector.shape_cast %543 : vector<1x8x1xf32> to vector<8x1xf32>
    %545 = vector.extract_strided_slice %399 {offsets = [4, 0, 0], sizes = [1, 8, 64], strides = [1, 1, 1]} : vector<8x8x64xf32> to vector<1x8x64xf32>
    %546 = vector.shape_cast %545 : vector<1x8x64xf32> to vector<8x64xf32>
    %547 = vector.broadcast %544 : vector<8x1xf32> to vector<8x64xf32>
    %548 = arith.mulf %547, %546 : vector<8x64xf32>
    %549 = arith.addf %542, %548 : vector<8x64xf32>
    %550 = vector.extract_strided_slice %398 {offsets = [5, 0, 2], sizes = [1, 8, 1], strides = [1, 1, 1]} : vector<8x8x4xf32> to vector<1x8x1xf32>
    %551 = vector.shape_cast %550 : vector<1x8x1xf32> to vector<8x1xf32>
    %552 = vector.extract_strided_slice %399 {offsets = [5, 0, 0], sizes = [1, 8, 64], strides = [1, 1, 1]} : vector<8x8x64xf32> to vector<1x8x64xf32>
    %553 = vector.shape_cast %552 : vector<1x8x64xf32> to vector<8x64xf32>
    %554 = vector.broadcast %551 : vector<8x1xf32> to vector<8x64xf32>
    %555 = arith.mulf %554, %553 : vector<8x64xf32>
    %556 = arith.addf %549, %555 : vector<8x64xf32>
    %557 = vector.extract_strided_slice %398 {offsets = [6, 0, 2], sizes = [1, 8, 1], strides = [1, 1, 1]} : vector<8x8x4xf32> to vector<1x8x1xf32>
    %558 = vector.shape_cast %557 : vector<1x8x1xf32> to vector<8x1xf32>
    %559 = vector.extract_strided_slice %399 {offsets = [6, 0, 0], sizes = [1, 8, 64], strides = [1, 1, 1]} : vector<8x8x64xf32> to vector<1x8x64xf32>
    %560 = vector.shape_cast %559 : vector<1x8x64xf32> to vector<8x64xf32>
    %561 = vector.broadcast %558 : vector<8x1xf32> to vector<8x64xf32>
    %562 = arith.mulf %561, %560 : vector<8x64xf32>
    %563 = arith.addf %556, %562 : vector<8x64xf32>
    %564 = vector.extract_strided_slice %398 {offsets = [7, 0, 2], sizes = [1, 8, 1], strides = [1, 1, 1]} : vector<8x8x4xf32> to vector<1x8x1xf32>
    %565 = vector.shape_cast %564 : vector<1x8x1xf32> to vector<8x1xf32>
    %566 = vector.extract_strided_slice %399 {offsets = [7, 0, 0], sizes = [1, 8, 64], strides = [1, 1, 1]} : vector<8x8x64xf32> to vector<1x8x64xf32>
    %567 = vector.shape_cast %566 : vector<1x8x64xf32> to vector<8x64xf32>
    %568 = vector.broadcast %565 : vector<8x1xf32> to vector<8x64xf32>
    %569 = arith.mulf %568, %567 : vector<8x64xf32>
    %570 = arith.addf %563, %569 : vector<8x64xf32>
    %cst_69 = arith.constant 0.000000e+00 : f32
    %571 = vector.broadcast %cst_69 : f32 to vector<8x64xf32>
    %572 = vector.extract_strided_slice %398 {offsets = [0, 0, 3], sizes = [1, 8, 1], strides = [1, 1, 1]} : vector<8x8x4xf32> to vector<1x8x1xf32>
    %573 = vector.shape_cast %572 : vector<1x8x1xf32> to vector<8x1xf32>
    %574 = vector.extract_strided_slice %399 {offsets = [0, 0, 0], sizes = [1, 8, 64], strides = [1, 1, 1]} : vector<8x8x64xf32> to vector<1x8x64xf32>
    %575 = vector.shape_cast %574 : vector<1x8x64xf32> to vector<8x64xf32>
    %576 = vector.broadcast %573 : vector<8x1xf32> to vector<8x64xf32>
    %577 = arith.mulf %576, %575 : vector<8x64xf32>
    %578 = arith.addf %571, %577 : vector<8x64xf32>
    %579 = vector.extract_strided_slice %398 {offsets = [1, 0, 3], sizes = [1, 8, 1], strides = [1, 1, 1]} : vector<8x8x4xf32> to vector<1x8x1xf32>
    %580 = vector.shape_cast %579 : vector<1x8x1xf32> to vector<8x1xf32>
    %581 = vector.extract_strided_slice %399 {offsets = [1, 0, 0], sizes = [1, 8, 64], strides = [1, 1, 1]} : vector<8x8x64xf32> to vector<1x8x64xf32>
    %582 = vector.shape_cast %581 : vector<1x8x64xf32> to vector<8x64xf32>
    %583 = vector.broadcast %580 : vector<8x1xf32> to vector<8x64xf32>
    %584 = arith.mulf %583, %582 : vector<8x64xf32>
    %585 = arith.addf %578, %584 : vector<8x64xf32>
    %586 = vector.extract_strided_slice %398 {offsets = [2, 0, 3], sizes = [1, 8, 1], strides = [1, 1, 1]} : vector<8x8x4xf32> to vector<1x8x1xf32>
    %587 = vector.shape_cast %586 : vector<1x8x1xf32> to vector<8x1xf32>
    %588 = vector.extract_strided_slice %399 {offsets = [2, 0, 0], sizes = [1, 8, 64], strides = [1, 1, 1]} : vector<8x8x64xf32> to vector<1x8x64xf32>
    %589 = vector.shape_cast %588 : vector<1x8x64xf32> to vector<8x64xf32>
    %590 = vector.broadcast %587 : vector<8x1xf32> to vector<8x64xf32>
    %591 = arith.mulf %590, %589 : vector<8x64xf32>
    %592 = arith.addf %585, %591 : vector<8x64xf32>
    %593 = vector.extract_strided_slice %398 {offsets = [3, 0, 3], sizes = [1, 8, 1], strides = [1, 1, 1]} : vector<8x8x4xf32> to vector<1x8x1xf32>
    %594 = vector.shape_cast %593 : vector<1x8x1xf32> to vector<8x1xf32>
    %595 = vector.extract_strided_slice %399 {offsets = [3, 0, 0], sizes = [1, 8, 64], strides = [1, 1, 1]} : vector<8x8x64xf32> to vector<1x8x64xf32>
    %596 = vector.shape_cast %595 : vector<1x8x64xf32> to vector<8x64xf32>
    %597 = vector.broadcast %594 : vector<8x1xf32> to vector<8x64xf32>
    %598 = arith.mulf %597, %596 : vector<8x64xf32>
    %599 = arith.addf %592, %598 : vector<8x64xf32>
    %600 = vector.extract_strided_slice %398 {offsets = [4, 0, 3], sizes = [1, 8, 1], strides = [1, 1, 1]} : vector<8x8x4xf32> to vector<1x8x1xf32>
    %601 = vector.shape_cast %600 : vector<1x8x1xf32> to vector<8x1xf32>
    %602 = vector.extract_strided_slice %399 {offsets = [4, 0, 0], sizes = [1, 8, 64], strides = [1, 1, 1]} : vector<8x8x64xf32> to vector<1x8x64xf32>
    %603 = vector.shape_cast %602 : vector<1x8x64xf32> to vector<8x64xf32>
    %604 = vector.broadcast %601 : vector<8x1xf32> to vector<8x64xf32>
    %605 = arith.mulf %604, %603 : vector<8x64xf32>
    %606 = arith.addf %599, %605 : vector<8x64xf32>
    %607 = vector.extract_strided_slice %398 {offsets = [5, 0, 3], sizes = [1, 8, 1], strides = [1, 1, 1]} : vector<8x8x4xf32> to vector<1x8x1xf32>
    %608 = vector.shape_cast %607 : vector<1x8x1xf32> to vector<8x1xf32>
    %609 = vector.extract_strided_slice %399 {offsets = [5, 0, 0], sizes = [1, 8, 64], strides = [1, 1, 1]} : vector<8x8x64xf32> to vector<1x8x64xf32>
    %610 = vector.shape_cast %609 : vector<1x8x64xf32> to vector<8x64xf32>
    %611 = vector.broadcast %608 : vector<8x1xf32> to vector<8x64xf32>
    %612 = arith.mulf %611, %610 : vector<8x64xf32>
    %613 = arith.addf %606, %612 : vector<8x64xf32>
    %614 = vector.extract_strided_slice %398 {offsets = [6, 0, 3], sizes = [1, 8, 1], strides = [1, 1, 1]} : vector<8x8x4xf32> to vector<1x8x1xf32>
    %615 = vector.shape_cast %614 : vector<1x8x1xf32> to vector<8x1xf32>
    %616 = vector.extract_strided_slice %399 {offsets = [6, 0, 0], sizes = [1, 8, 64], strides = [1, 1, 1]} : vector<8x8x64xf32> to vector<1x8x64xf32>
    %617 = vector.shape_cast %616 : vector<1x8x64xf32> to vector<8x64xf32>
    %618 = vector.broadcast %615 : vector<8x1xf32> to vector<8x64xf32>
    %619 = arith.mulf %618, %617 : vector<8x64xf32>
    %620 = arith.addf %613, %619 : vector<8x64xf32>
    %621 = vector.extract_strided_slice %398 {offsets = [7, 0, 3], sizes = [1, 8, 1], strides = [1, 1, 1]} : vector<8x8x4xf32> to vector<1x8x1xf32>
    %622 = vector.shape_cast %621 : vector<1x8x1xf32> to vector<8x1xf32>
    %623 = vector.extract_strided_slice %399 {offsets = [7, 0, 0], sizes = [1, 8, 64], strides = [1, 1, 1]} : vector<8x8x64xf32> to vector<1x8x64xf32>
    %624 = vector.shape_cast %623 : vector<1x8x64xf32> to vector<8x64xf32>
    %625 = vector.broadcast %622 : vector<8x1xf32> to vector<8x64xf32>
    %626 = arith.mulf %625, %624 : vector<8x64xf32>
    %627 = arith.addf %620, %626 : vector<8x64xf32>
    %628 = tpu.concatenate %456, %513, %570, %627 in 1 : vector<8x64xf32>, vector<8x64xf32>, vector<8x64xf32>, vector<8x64xf32> -> vector<8x256xf32>
    %629 = arith.truncf %628 : vector<8x256xf32> to vector<8x256xbf16>
    %c0_70 = arith.constant 0 : index
    %c0_71 = arith.constant 0 : index
    %630 = vector.load %arg13[%c0_70, %c0_71] : memref<256x64xbf16, #tpu.memory_space<vmem>>, vector<256x64xbf16>
    %cst_72 = arith.constant dense<0.000000e+00> : vector<8x64xf32>
    %631 = tpu.matmul %629, %630, %cst_72 {dimension_numbers = #tpu.dot_dimension_numbers<[1], [0], [0], [1], [0, 0, 1, 1], [], []>} : vector<8x256xbf16>, vector<256x64xbf16>, vector<8x64xf32> -> vector<8x64xf32>
    %c0_73 = arith.constant 0 : index
    %c0_74 = arith.constant 0 : index
    %632 = vector.load %arg14[%c0_73, %c0_74] : memref<1x64xf32, #tpu.memory_space<vmem>>, vector<1x64xf32>
    %633 = vector.broadcast %632 : vector<1x64xf32> to vector<8x64xf32>
    %634 = arith.addf %631, %633 : vector<8x64xf32>
    %cst_75 = arith.constant 0.000000e+00 : f32
    %635 = vector.broadcast %cst_75 : f32 to vector<8x64xf32>
    %636 = arith.maximumf %634, %635 : vector<8x64xf32>
    %637 = arith.truncf %636 : vector<8x64xf32> to vector<8x64xbf16>
    %c0_76 = arith.constant 0 : index
    %c0_77 = arith.constant 0 : index
    %638 = vector.load %arg15[%c0_76, %c0_77] : memref<64x32xbf16, #tpu.memory_space<vmem>>, vector<64x32xbf16>
    %cst_78 = arith.constant dense<0.000000e+00> : vector<8x32xf32>
    %639 = tpu.matmul %637, %638, %cst_78 {dimension_numbers = #tpu.dot_dimension_numbers<[1], [0], [0], [1], [0, 0, 1, 1], [], []>} : vector<8x64xbf16>, vector<64x32xbf16>, vector<8x32xf32> -> vector<8x32xf32>
    %c0_79 = arith.constant 0 : index
    %c0_80 = arith.constant 0 : index
    %640 = vector.load %arg16[%c0_79, %c0_80] : memref<1x32xf32, #tpu.memory_space<vmem>>, vector<1x32xf32>
    %641 = vector.broadcast %640 : vector<1x32xf32> to vector<8x32xf32>
    %642 = arith.addf %639, %641 : vector<8x32xf32>
    %643 = arith.mulf %642, %642 : vector<8x32xf32>
    %cst_81 = arith.constant dense<0.000000e+00> : vector<8xf32>
    %644 = vector.multi_reduction <add>, %643, %cst_81 [1] : vector<8x32xf32> to vector<8xf32>
    %645 = vector.shape_cast %644 : vector<8xf32> to vector<8x1xf32>
    %cst_82 = arith.constant 1.000000e-24 : f32
    %646 = vector.broadcast %cst_82 : f32 to vector<8x1xf32>
    %647 = arith.maximumf %645, %646 : vector<8x1xf32>
    %648 = math.rsqrt %647 : vector<8x1xf32>
    %649 = vector.broadcast %648 : vector<8x1xf32> to vector<8x32xf32>
    %650 = arith.mulf %642, %649 : vector<8x32xf32>
    %c0_83 = arith.constant 0 : index
    %c0_84 = arith.constant 0 : index
    %651 = vector.load %arg17[%c0_83, %c0_84] : memref<8x32xf32, #tpu.memory_space<vmem>>, vector<8x32xf32>
    tpu.vector_store %arg17[%c0_83, %c0_84], %650 {strides = array<i32>} : memref<8x32xf32, #tpu.memory_space<vmem>>, vector<8x32xf32>,
    return
  }
  func.func @transform_0(%arg0: i32) -> (i32, i32, i32) {
    %c0_i32 = arith.constant 0 : i32
    %c0_i32_0 = arith.constant 0 : i32
    %c0_i32_1 = arith.constant 0 : i32
    return %arg0, %c0_i32, %c0_i32_0 : i32, i32, i32
  }
  func.func @transform_1(%arg0: i32) -> (i32, i32) {
    %c0_i32 = arith.constant 0 : i32
    %c0_i32_0 = arith.constant 0 : i32
    %c0_i32_1 = arith.constant 0 : i32
    return %c0_i32, %c0_i32_0 : i32, i32
  }
  func.func @transform_2(%arg0: i32) -> (i32, i32) {
    %c0_i32 = arith.constant 0 : i32
    %c0_i32_0 = arith.constant 0 : i32
    %c0_i32_1 = arith.constant 0 : i32
    return %c0_i32, %c0_i32_0 : i32, i32
  }
  func.func @transform_3(%arg0: i32) -> (i32, i32) {
    %c0_i32 = arith.constant 0 : i32
    %c0_i32_0 = arith.constant 0 : i32
    %c0_i32_1 = arith.constant 0 : i32
    return %c0_i32, %c0_i32_0 : i32, i32
  }
  func.func @transform_4(%arg0: i32) -> (i32, i32) {
    %c0_i32 = arith.constant 0 : i32
    %c0_i32_0 = arith.constant 0 : i32
    %c0_i32_1 = arith.constant 0 : i32
    return %c0_i32, %c0_i32_0 : i32, i32
  }
  func.func @transform_5(%arg0: i32) -> (i32, i32) {
    %c0_i32 = arith.constant 0 : i32
    %c0_i32_0 = arith.constant 0 : i32
    %c0_i32_1 = arith.constant 0 : i32
    return %c0_i32, %c0_i32_0 : i32, i32
  }
  func.func @transform_6(%arg0: i32) -> (i32, i32) {
    %c0_i32 = arith.constant 0 : i32
    %c0_i32_0 = arith.constant 0 : i32
    %c0_i32_1 = arith.constant 0 : i32
    return %c0_i32, %c0_i32_0 : i32, i32
  }
  func.func @transform_7(%arg0: i32) -> (i32, i32) {
    %c0_i32 = arith.constant 0 : i32
    %c0_i32_0 = arith.constant 0 : i32
    %c0_i32_1 = arith.constant 0 : i32
    return %c0_i32, %c0_i32_0 : i32, i32
  }
  func.func @transform_8(%arg0: i32) -> (i32, i32) {
    %c0_i32 = arith.constant 0 : i32
    %c0_i32_0 = arith.constant 0 : i32
    %c0_i32_1 = arith.constant 0 : i32
    return %c0_i32, %c0_i32_0 : i32, i32
  }
  func.func @transform_9(%arg0: i32) -> (i32, i32) {
    %c0_i32 = arith.constant 0 : i32
    %c0_i32_0 = arith.constant 0 : i32
    %c0_i32_1 = arith.constant 0 : i32
    return %c0_i32, %c0_i32_0 : i32, i32
  }
  func.func @transform_10(%arg0: i32) -> (i32, i32) {
    %c0_i32 = arith.constant 0 : i32
    %c0_i32_0 = arith.constant 0 : i32
    %c0_i32_1 = arith.constant 0 : i32
    return %c0_i32, %c0_i32_0 : i32, i32
  }
  func.func @transform_11(%arg0: i32) -> (i32, i32) {
    %c0_i32 = arith.constant 0 : i32
    %c0_i32_0 = arith.constant 0 : i32
    %c0_i32_1 = arith.constant 0 : i32
    return %c0_i32, %c0_i32_0 : i32, i32
  }
  func.func @transform_12(%arg0: i32) -> (i32, i32) {
    %c0_i32 = arith.constant 0 : i32
    %c0_i32_0 = arith.constant 0 : i32
    %c0_i32_1 = arith.constant 0 : i32
    return %c0_i32, %c0_i32_0 : i32, i32
  }
  func.func @transform_13(%arg0: i32) -> (i32, i32) {
    %c0_i32 = arith.constant 0 : i32
    %c0_i32_0 = arith.constant 0 : i32
    %c0_i32_1 = arith.constant 0 : i32
    return %c0_i32, %c0_i32_0 : i32, i32
  }
  func.func @transform_14(%arg0: i32) -> (i32, i32) {
    %c0_i32 = arith.constant 0 : i32
    %c0_i32_0 = arith.constant 0 : i32
    %c0_i32_1 = arith.constant 0 : i32
    return %c0_i32, %c0_i32_0 : i32, i32
  }
  func.func @transform_15(%arg0: i32) -> (i32, i32) {
    %c0_i32 = arith.constant 0 : i32
    %c0_i32_0 = arith.constant 0 : i32
    %c0_i32_1 = arith.constant 0 : i32
    return %c0_i32, %c0_i32_0 : i32, i32
  }
  func.func @transform_16(%arg0: i32) -> (i32, i32) {
    %c0_i32 = arith.constant 0 : i32
    %c0_i32_0 = arith.constant 0 : i32
    return %arg0, %c0_i32 : i32, i32
  }
}

</mosaic_0001>

<llo_original>
// kernel: safe_forward.1
$region0: #{safe_forward.1}
  #allocation0 [shape = 'u32[]', space=smem, size = 0x4, offset = 0x4, fixed_abs, tag = 'smem constant byte address 0x4 - core index']
  #allocation1 [shape = 'u32[144,128]{1,0:T(1,128)}', space=vmem, size = 0x12000, scoped, tag = 'internal scratch']
  %s0 = inlined_call_operand.vmem [shape: s32[1,8,8], index: 0, kind: input, shape index: {}]
  %s1 = inlined_call_operand.vmem [shape: bf16[128,32], index: 1, kind: input, shape index: {}]
  %s2 = inlined_call_operand.vmem [shape: bf16[32,96], index: 2, kind: input, shape index: {}]
  %s3 = inlined_call_operand.vmem [shape: bf16[32,96], index: 3, kind: input, shape index: {}]
  %s4 = inlined_call_operand.vmem [shape: f32[1,96], index: 4, kind: input, shape index: {}]
  %s5 = inlined_call_operand.vmem [shape: f32[1,96], index: 5, kind: input, shape index: {}]
  %s6 = inlined_call_operand.vmem [shape: bf16[32,96], index: 6, kind: input, shape index: {}]
  %s7 = inlined_call_operand.vmem [shape: bf16[32,96], index: 7, kind: input, shape index: {}]
  %s8 = inlined_call_operand.vmem [shape: f32[1,96], index: 8, kind: input, shape index: {}]
  %s9 = inlined_call_operand.vmem [shape: f32[1,96], index: 9, kind: input, shape index: {}]
  %s10 = inlined_call_operand.vmem [shape: bf16[64,16], index: 10, kind: input, shape index: {}]
  %s11 = inlined_call_operand.vmem [shape: bf16[16,4], index: 11, kind: input, shape index: {}]
  %s12 = inlined_call_operand.vmem [shape: bf16[256,64], index: 12, kind: input, shape index: {}]
  %s13 = inlined_call_operand.vmem [shape: f32[1,64], index: 13, kind: input, shape index: {}]
  %s14 = inlined_call_operand.vmem [shape: bf16[64,32], index: 14, kind: input, shape index: {}]
  %s15 = inlined_call_operand.vmem [shape: f32[1,32], index: 15, kind: input, shape index: {}]
  %s16 = inlined_call_operand.vmem [shape: f32[8,32], index: 16, kind: output, shape index: {}]
  %s17 = sld [smem:[#allocation0]]
  $region74: #{safe_forward.1} parent=0
    _
  %s19 = ssub.s32 1, %s17
  %s20 = scalar_select 0, %s19, %s17
  // Predicated region
  $region2: #{safe_forward.1} parent=0 // pred_check
    _
  $region3: #{safe_forward.1} parent=0 // pred_check_branch
    %22 = sbr.rel (0) target = $region5
  $region4: #{safe_forward.1} parent=0 // pred_region
    _
  $region5: #{safe_forward.1} parent=0 // pred_fallthru
    _
  // Predicated region
  $region6: #{safe_forward.1} parent=0 // pred_check
    _
  $region7: #{safe_forward.1} parent=0 // pred_check_branch
    %24 = sbr.rel (0) target = $region9
  $region8: #{safe_forward.1} parent=0 // pred_region
    _
  $region9: #{safe_forward.1} parent=0 // pred_fallthru
    _
  // Predicated region
  $region10: #{safe_forward.1} parent=0 // pred_check
    _
  $region11: #{safe_forward.1} parent=0 // pred_check_branch
    %26 = sbr.rel (0) target = $region13
  $region12: #{safe_forward.1} parent=0 // pred_region
    _
  $region13: #{safe_forward.1} parent=0 // pred_fallthru
    _
  // Predicated region
  $region14: #{safe_forward.1} parent=0 // pred_check
    _
  $region15: #{safe_forward.1} parent=0 // pred_check_branch
    %28 = sbr.rel (0) target = $region17
  $region16: #{safe_forward.1} parent=0 // pred_region
    _
  $region17: #{safe_forward.1} parent=0 // pred_fallthru
    _
  // Predicated region
  $region18: #{safe_forward.1} parent=0 // pred_check
    _
  $region19: #{safe_forward.1} parent=0 // pred_check_branch
    %30 = sbr.rel (0) target = $region21
  $region20: #{safe_forward.1} parent=0 // pred_region
    _
  $region21: #{safe_forward.1} parent=0 // pred_fallthru
    _
  // Predicated region
  $region22: #{safe_forward.1} parent=0 // pred_check
    _
  $region23: #{safe_forward.1} parent=0 // pred_check_branch
    %32 = sbr.rel (0) target = $region25
  $region24: #{safe_forward.1} parent=0 // pred_region
    _
  $region25: #{safe_forward.1} parent=0 // pred_fallthru
    _
  // Predicated region
  $region26: #{safe_forward.1} parent=0 // pred_check
    _
  $region27: #{safe_forward.1} parent=0 // pred_check_branch
    %34 = sbr.rel (0) target = $region29
  $region28: #{safe_forward.1} parent=0 // pred_region
    _
  $region29: #{safe_forward.1} parent=0 // pred_fallthru
    _
  // Predicated region
  $region30: #{safe_forward.1} parent=0 // pred_check
    _
  $region31: #{safe_forward.1} parent=0 // pred_check_branch
    %36 = sbr.rel (0) target = $region33
  $region32: #{safe_forward.1} parent=0 // pred_region
    _
  $region33: #{safe_forward.1} parent=0 // pred_fallthru
    _
  // Predicated region
  $region34: #{safe_forward.1} parent=0 // pred_check
    _
  $region35: #{safe_forward.1} parent=0 // pred_check_branch
    %38 = sbr.rel (0) target = $region37
  $region36: #{safe_forward.1} parent=0 // pred_region
    _
  $region37: #{safe_forward.1} parent=0 // pred_fallthru
    _
  // Predicated region
  $region38: #{safe_forward.1} parent=0 // pred_check
    _
  $region39: #{safe_forward.1} parent=0 // pred_check_branch
    %40 = sbr.rel (0) target = $region41
  $region40: #{safe_forward.1} parent=0 // pred_region
    _
  $region41: #{safe_forward.1} parent=0 // pred_fallthru
    _
  // Predicated region
  $region42: #{safe_forward.1} parent=0 // pred_check
    _
  $region43: #{safe_forward.1} parent=0 // pred_check_branch
    %42 = sbr.rel (0) target = $region45
  $region44: #{safe_forward.1} parent=0 // pred_region
    _
  $region45: #{safe_forward.1} parent=0 // pred_fallthru
    _
  // Predicated region
  $region46: #{safe_forward.1} parent=0 // pred_check
    _
  $region47: #{safe_forward.1} parent=0 // pred_check_branch
    %44 = sbr.rel (0) target = $region49
  $region48: #{safe_forward.1} parent=0 // pred_region
    _
  $region49: #{safe_forward.1} parent=0 // pred_fallthru
    _
  // Predicated region
  $region50: #{safe_forward.1} parent=0 // pred_check
    _
  $region51: #{safe_forward.1} parent=0 // pred_check_branch
    %46 = sbr.rel (0) target = $region53
  $region52: #{safe_forward.1} parent=0 // pred_region
    _
  $region53: #{safe_forward.1} parent=0 // pred_fallthru
    _
  // Predicated region
  $region54: #{safe_forward.1} parent=0 // pred_check
    _
  $region55: #{safe_forward.1} parent=0 // pred_check_branch
    %48 = sbr.rel (0) target = $region57
  $region56: #{safe_forward.1} parent=0 // pred_region
    _
  $region57: #{safe_forward.1} parent=0 // pred_fallthru
    _
  // Predicated region
  $region58: #{safe_forward.1} parent=0 // pred_check
    _
  $region59: #{safe_forward.1} parent=0 // pred_check_branch
    %50 = sbr.rel (0) target = $region61
  $region60: #{safe_forward.1} parent=0 // pred_region
    _
  $region61: #{safe_forward.1} parent=0 // pred_fallthru
    _
  // Predicated region
  $region62: #{safe_forward.1} parent=0 // pred_check
    _
  $region63: #{safe_forward.1} parent=0 // pred_check_branch
    %52 = sbr.rel (0) target = $region65
  $region64: #{safe_forward.1} parent=0 // pred_region
    _
  $region65: #{safe_forward.1} parent=0 // pred_fallthru
    _
  %v54 = vld [vmem:[%s0] sm:$0xff]
  %v55 = vlaneseq
  %v56 = vand.u32 %v55, 127
  %v57 = vlaneseq
  %v58 = vshrl.u32 %v57, 7
  %v59 = vsub.s32 0, %v58
  %v60 = vrot.slane %v54, %v59
  %62 = vbcast.lane.b32.xlu0 %v60, 256
  %v63 = vpop.permute.xlu0 %62
  %v64 = vlaneseq
  %v65 = vshrl.u32 %v64, 7
  %v66 = vsub.s32 1, %v65
  %v67 = vrot.slane %v54, %v66
  %69 = vbcast.lane.b32.xlu0 %v67, 256
  %v70 = vpop.permute.xlu0 %69
  %v71 = vlaneseq
  %v72 = vshrl.u32 %v71, 7
  %v73 = vsub.s32 2, %v72
  %v74 = vrot.slane %v54, %v73
  %76 = vbcast.lane.b32.xlu0 %v74, 256
  %v77 = vpop.permute.xlu0 %76
  %v78 = vlaneseq
  %v79 = vshrl.u32 %v78, 7
  %v80 = vsub.s32 3, %v79
  %v81 = vrot.slane %v54, %v80
  %83 = vbcast.lane.b32.xlu0 %v81, 256
  %v84 = vpop.permute.xlu0 %83
  %v85 = vlaneseq
  %v86 = vshrl.u32 %v85, 7
  %v87 = vsub.s32 4, %v86
  %v88 = vrot.slane %v54, %v87
  %90 = vbcast.lane.b32.xlu0 %v88, 256
  %v91 = vpop.permute.xlu0 %90
  %v92 = vlaneseq
  %v93 = vshrl.u32 %v92, 7
  %v94 = vsub.s32 5, %v93
  %v95 = vrot.slane %v54, %v94
  %97 = vbcast.lane.b32.xlu0 %v95, 256
  %v98 = vpop.permute.xlu0 %97
  %v99 = vlaneseq
  %v100 = vshrl.u32 %v99, 7
  %v101 = vsub.s32 6, %v100
  %v102 = vrot.slane %v54, %v101
  %104 = vbcast.lane.b32.xlu0 %v102, 256
  %v105 = vpop.permute.xlu0 %104
  %v106 = vlaneseq
  %v107 = vshrl.u32 %v106, 7
  %v108 = vsub.s32 7, %v107
  %v109 = vrot.slane %v54, %v108
  %111 = vbcast.lane.b32.xlu0 %v109, 256
  %v112 = vpop.permute.xlu0 %111
  %vm113 = vcmp.eq.s32.totalorder %v56, %v63
  %vm114 = vcmp.eq.s32.totalorder %v56, %v70
  %vm115 = vcmp.eq.s32.totalorder %v56, %v77
  %vm116 = vcmp.eq.s32.totalorder %v56, %v84
  %vm117 = vcmp.eq.s32.totalorder %v56, %v91
  %vm118 = vcmp.eq.s32.totalorder %v56, %v98
  %vm119 = vcmp.eq.s32.totalorder %v56, %v105
  %vm120 = vcmp.eq.s32.totalorder %v56, %v112
  %v121 = vsel %vm113, 1.0, 0.0
  %v122 = vsel %vm114, 1.0, 0.0
  %v123 = vsel %vm115, 1.0, 0.0
  %v124 = vsel %vm116, 1.0, 0.0
  %v125 = vsel %vm117, 1.0, 0.0
  %v126 = vsel %vm118, 1.0, 0.0
  %v127 = vsel %vm119, 1.0, 0.0
  %v128 = vsel %vm120, 1.0, 0.0
  %v129 = vpack.c.bf16 %v121, %v121
  %v130 = vpack.c.bf16 %v122, %v122
  %v131 = vpack.c.bf16 %v123, %v123
  %v132 = vpack.c.bf16 %v124, %v124
  %v133 = vpack.c.bf16 %v125, %v125
  %v134 = vpack.c.bf16 %v126, %v126
  %v135 = vpack.c.bf16 %v127, %v127
  %v136 = vpack.c.bf16 %v128, %v128
  %v137 = vld [vmem:[%s1] sm:$0xf]
  %v138 = vld [vmem:[%s1 + $0x4] sm:$0xf]
  %v139 = vld [vmem:[%s1 + $0x8] sm:$0xf]
  %v140 = vld [vmem:[%s1 + $0xc] sm:$0xf]
  %v141 = vld [vmem:[%s1 + $0x10] sm:$0xf]
  %v142 = vld [vmem:[%s1 + $0x14] sm:$0xf]
  %v143 = vld [vmem:[%s1 + $0x18] sm:$0xf]
  %v144 = vld [vmem:[%s1 + $0x1c] sm:$0xf]
  %v145 = vld [vmem:[%s1 + $0x20] sm:$0xf]
  %v146 = vld [vmem:[%s1 + $0x24] sm:$0xf]
  %v147 = vld [vmem:[%s1 + $0x28] sm:$0xf]
  %v148 = vld [vmem:[%s1 + $0x2c] sm:$0xf]
  %v149 = vld [vmem:[%s1 + $0x30] sm:$0xf]
  %v150 = vld [vmem:[%s1 + $0x34] sm:$0xf]
  %v151 = vld [vmem:[%s1 + $0x38] sm:$0xf]
  %v152 = vld [vmem:[%s1 + $0x3c] sm:$0xf]
  %v161 = vunpack.c.l.b16 %v129
  %v162 = vunpack.c.l.b16 %v130
  %v163 = vunpack.c.l.b16 %v131
  %v164 = vunpack.c.l.b16 %v132
  %v165 = vunpack.c.l.b16 %v133
  %v166 = vunpack.c.l.b16 %v134
  %v167 = vunpack.c.l.b16 %v135
  %v168 = vunpack.c.l.b16 %v136
  %v169 = vpack.c.b16 %v162, %v161
  %v170 = vpack.c.b16 %v164, %v163
  %v171 = vpack.c.b16 %v166, %v165
  %v172 = vpack.c.b16 %v168, %v167
  %v193 = vunpack.c.l.b16 %v137
  %v194 = vunpack.c.l.b16 %v138
  %v195 = vunpack.c.l.b16 %v139
  %v196 = vunpack.c.l.b16 %v140
  %v197 = vunpack.c.l.b16 %v141
  %v198 = vunpack.c.l.b16 %v142
  %v199 = vunpack.c.l.b16 %v143
  %v200 = vunpack.c.l.b16 %v144
  %v201 = vunpack.c.l.b16 %v145
  %v202 = vunpack.c.l.b16 %v146
  %v203 = vunpack.c.l.b16 %v147
  %v204 = vunpack.c.l.b16 %v148
  %v205 = vunpack.c.l.b16 %v149
  %v206 = vunpack.c.l.b16 %v150
  %v207 = vunpack.c.l.b16 %v151
  %v208 = vunpack.c.l.b16 %v152
  %v209 = vpack.c.b16 %v194, %v193
  %v210 = vpack.c.b16 %v196, %v195
  %v211 = vpack.c.b16 %v198, %v197
  %v212 = vpack.c.b16 %v200, %v199
  %v213 = vpack.c.b16 %v202, %v201
  %v214 = vpack.c.b16 %v204, %v203
  %v215 = vpack.c.b16 %v206, %v205
  %v216 = vpack.c.b16 %v208, %v207
  %225 = vmatprep.subr.bf16.mxu0 0
  %226 = vmatpush1.bf16.msra.mxu0 %v216
  %227 = vmatprep.subr.bf16.mxu0 0
  %228 = vmatpush1.bf16.msra.mxu0 %v215
  %229 = vmatprep.subr.bf16.mxu0 0
  %230 = vmatpush1.bf16.msra.mxu0 %v214
  %231 = vmatprep.subr.bf16.mxu0 0
  %232 = vmatpush1.bf16.msra.mxu0 %v213
  %233 = vmatprep.subr.bf16.mxu0 0
  %234 = vmatpush1.bf16.msra.mxu0 %v212
  %235 = vmatprep.subr.bf16.mxu0 0
  %236 = vmatpush1.bf16.msra.mxu0 %v211
  %237 = vmatprep.subr.bf16.mxu0 0
  %238 = vmatpush1.bf16.msra.mxu0 %v210
  %239 = vmatprep.subr.bf16.mxu0 0
  %240 = vmatpush1.bf16.msra.mxu0 %v209
  %241 = vmatprep.subr.bf16.mxu0 0
  %242 = vmatpush2.bf16.msra.mxu0 0
  %243 = vmatprep.subr.bf16.mxu0 0
  %244 = vmatpush2.bf16.msra.mxu0 0
  %245 = vmatprep.subr.bf16.mxu0 0
  %246 = vmatpush2.bf16.msra.mxu0 0
  %247 = vmatprep.subr.bf16.mxu0 0
  %248 = vmatpush2.bf16.msra.mxu0 0
  %249 = vmatprep.subr.bf16.mxu0 0
  %250 = vmatpush2.bf16.msra.mxu0 0
  %251 = vmatprep.subr.bf16.mxu0 0
  %252 = vmatpush2.bf16.msra.mxu0 0
  %253 = vmatprep.subr.bf16.mxu0 0
  %254 = vmatpush2.bf16.msra.mxu0 0
  %255 = vmatprep.subr.bf16.mxu0 0
  %256 = vmatpush2.bf16.msra.mxu0 0
  %257 = vmatprep.mubr.bf16.mxu0 0
  %258 = vmatmul.mubr.bf16.gmra.mxu0 %v169
  %v259 = vpop.f32.mrf.mxu0
  %v260 = vadd.f32 0.0, %v259
  %v261 = vpop.f32.mrf.mxu0
  %v262 = vpop.f32.mrf.mxu0
  %v263 = vadd.f32 0.0, %v262
  %v264 = vpop.f32.mrf.mxu0
  %265 = vmatprep.mubr.bf16.mxu0 0
  %266 = vmatmul.mubr.bf16.gmra.mxu0 %v170
  %v267 = vpop.f32.mrf.mxu0
  %v268 = vadd.f32 0.0, %v267
  %v269 = vpop.f32.mrf.mxu0
  %v270 = vpop.f32.mrf.mxu0
  %v271 = vadd.f32 0.0, %v270
  %v272 = vpop.f32.mrf.mxu0
  %273 = vmatprep.mubr.bf16.mxu0 0
  %274 = vmatmul.mubr.bf16.gmra.mxu0 %v171
  %v275 = vpop.f32.mrf.mxu0
  %v276 = vadd.f32 0.0, %v275
  %v277 = vpop.f32.mrf.mxu0
  %v278 = vpop.f32.mrf.mxu0
  %v279 = vadd.f32 0.0, %v278
  %v280 = vpop.f32.mrf.mxu0
  %281 = vmatprep.mubr.bf16.mxu0 0
  %282 = vmatmul.mubr.bf16.gmra.mxu0 %v172
  %v283 = vpop.f32.mrf.mxu0
  %v284 = vadd.f32 0.0, %v283
  %v285 = vpop.f32.mrf.mxu0
  %v286 = vpop.f32.mrf.mxu0
  %v287 = vadd.f32 0.0, %v286
  %v288 = vpop.f32.mrf.mxu0
  %289 = vdwg.mxu0
  %v290 = vpack.c.bf16 %v263, %v260
  %v291 = vpack.c.bf16 %v271, %v268
  %v292 = vpack.c.bf16 %v279, %v276
  %v293 = vpack.c.bf16 %v287, %v284
  %v294 = vld [vmem:[%s2] sm:$0xf]
  %v295 = vld [vmem:[%s2 + $0x4] sm:$0xf]
  %v296 = vld [vmem:[%s2 + $0x8] sm:$0xf]
  %v297 = vld [vmem:[%s2 + $0xc] sm:$0xf]
  %v298 = vld [vmem:[%s4] sm:$0x1]
  %v300 = vlaneseq
  %v301 = vshrl.u32 %v300, 7
  %v302 = vsub.s32 0, %v301
  %v303 = vrot.slane %v298, %v302
  %v309 = vunpack.c.l.b16 %v294
  %v310 = vunpack.c.l.b16 %v295
  %v311 = vunpack.c.l.b16 %v296
  %v312 = vunpack.c.l.b16 %v297
  %v313 = vpack.c.b16 %v310, %v309
  %v314 = vpack.c.b16 %v312, %v311
  %vm317 = vcmask 261120
  %v319 = vsel %vm317, %v290, 0
  %v322 = vsel %vm317, %v291, 0
  %v325 = vsel %vm317, %v292, 0
  %v328 = vsel %vm317, %v293, 0
  %330 = vmatprep.subr.bf16.mxu0 0
  %331 = vmatpush1.bf16.msra.mxu0 0
  %332 = vmatprep.subr.bf16.mxu0 0
  %333 = vmatpush1.bf16.msra.mxu0 0
  %334 = vmatprep.subr.bf16.mxu0 0
  %335 = vmatpush1.bf16.msra.mxu0 0
  %336 = vmatprep.subr.bf16.mxu0 0
  %337 = vmatpush1.bf16.msra.mxu0 0
  %338 = vmatprep.subr.bf16.mxu0 0
  %339 = vmatpush1.bf16.msra.mxu0 0
  %340 = vmatprep.subr.bf16.mxu0 0
  %341 = vmatpush1.bf16.msra.mxu0 0
  %342 = vmatprep.subr.bf16.mxu0 0
  %343 = vmatpush1.bf16.msra.mxu0 %v314
  %344 = vmatprep.subr.bf16.mxu0 0
  %345 = vmatpush1.bf16.msra.mxu0 %v313
  %346 = vmatprep.subr.bf16.mxu0 0
  %347 = vmatpush2.bf16.msra.mxu0 0
  %348 = vmatprep.subr.bf16.mxu0 0
  %349 = vmatpush2.bf16.msra.mxu0 0
  %350 = vmatprep.subr.bf16.mxu0 0
  %351 = vmatpush2.bf16.msra.mxu0 0
  %352 = vmatprep.subr.bf16.mxu0 0
  %353 = vmatpush2.bf16.msra.mxu0 0
  %354 = vmatprep.subr.bf16.mxu0 0
  %355 = vmatpush2.bf16.msra.mxu0 0
  %356 = vmatprep.subr.bf16.mxu0 0
  %357 = vmatpush2.bf16.msra.mxu0 0
  %358 = vmatprep.subr.bf16.mxu0 0
  %359 = vmatpush2.bf16.msra.mxu0 0
  %360 = vmatprep.subr.bf16.mxu0 0
  %361 = vmatpush2.bf16.msra.mxu0 0
  %362 = vmatprep.mubr.bf16.mxu0 0
  %363 = vmatmul.mubr.bf16.gmra.mxu0 %v319
  %v364 = vpop.f32.mrf.mxu0
  %v365 = vadd.f32 %v303, %v364
  %v366 = vpop.f32.mrf.mxu0
  %v367 = vpop.f32.mrf.mxu0
  %v368 = vadd.f32 %v303, %v367
  %v369 = vpop.f32.mrf.mxu0
  %370 = vmatprep.mubr.bf16.mxu0 0
  %371 = vmatmul.mubr.bf16.gmra.mxu0 %v322
  %v372 = vpop.f32.mrf.mxu0
  %v373 = vadd.f32 %v303, %v372
  %v374 = vpop.f32.mrf.mxu0
  %v375 = vpop.f32.mrf.mxu0
  %v376 = vadd.f32 %v303, %v375
  %v377 = vpop.f32.mrf.mxu0
  %378 = vmatprep.mubr.bf16.mxu0 0
  %379 = vmatmul.mubr.bf16.gmra.mxu0 %v325
  %v380 = vpop.f32.mrf.mxu0
  %v381 = vadd.f32 %v303, %v380
  %v382 = vpop.f32.mrf.mxu0
  %v383 = vpop.f32.mrf.mxu0
  %v384 = vadd.f32 %v303, %v383
  %v385 = vpop.f32.mrf.mxu0
  %386 = vmatprep.mubr.bf16.mxu0 0
  %387 = vmatmul.mubr.bf16.gmra.mxu0 %v328
  %v388 = vpop.f32.mrf.mxu0
  %v389 = vadd.f32 %v303, %v388
  %v390 = vpop.f32.mrf.mxu0
  %v391 = vpop.f32.mrf.mxu0
  %v392 = vadd.f32 %v303, %v391
  %v393 = vpop.f32.mrf.mxu0
  %394 = vdwg.mxu0
  %v395 = vld [vmem:[%s3] sm:$0xf]
  %v396 = vld [vmem:[%s3 + $0x4] sm:$0xf]
  %v397 = vld [vmem:[%s3 + $0x8] sm:$0xf]
  %v398 = vld [vmem:[%s3 + $0xc] sm:$0xf]
  %v399 = vld [vmem:[%s5] sm:$0x1]
  %v401 = vlaneseq
  %v402 = vshrl.u32 %v401, 7
  %v403 = vsub.s32 0, %v402
  %v404 = vrot.slane %v399, %v403
  %v410 = vunpack.c.l.b16 %v395
  %v411 = vunpack.c.l.b16 %v396
  %v412 = vunpack.c.l.b16 %v397
  %v413 = vunpack.c.l.b16 %v398
  %v414 = vpack.c.b16 %v411, %v410
  %v415 = vpack.c.b16 %v413, %v412
  %418 = vmatprep.subr.bf16.mxu0 0
  %419 = vmatpush1.bf16.msra.mxu0 0
  %420 = vmatprep.subr.bf16.mxu0 0
  %421 = vmatpush1.bf16.msra.mxu0 0
  %422 = vmatprep.subr.bf16.mxu0 0
  %423 = vmatpush1.bf16.msra.mxu0 0
  %424 = vmatprep.subr.bf16.mxu0 0
  %425 = vmatpush1.bf16.msra.mxu0 0
  %426 = vmatprep.subr.bf16.mxu0 0
  %427 = vmatpush1.bf16.msra.mxu0 0
  %428 = vmatprep.subr.bf16.mxu0 0
  %429 = vmatpush1.bf16.msra.mxu0 0
  %430 = vmatprep.subr.bf16.mxu0 0
  %431 = vmatpush1.bf16.msra.mxu0 %v415
  %432 = vmatprep.subr.bf16.mxu0 0
  %433 = vmatpush1.bf16.msra.mxu0 %v414
  %434 = vmatprep.subr.bf16.mxu0 0
  %435 = vmatpush2.bf16.msra.mxu0 0
  %436 = vmatprep.subr.bf16.mxu0 0
  %437 = vmatpush2.bf16.msra.mxu0 0
  %438 = vmatprep.subr.bf16.mxu0 0
  %439 = vmatpush2.bf16.msra.mxu0 0
  %440 = vmatprep.subr.bf16.mxu0 0
  %441 = vmatpush2.bf16.msra.mxu0 0
  %442 = vmatprep.subr.bf16.mxu0 0
  %443 = vmatpush2.bf16.msra.mxu0 0
  %444 = vmatprep.subr.bf16.mxu0 0
  %445 = vmatpush2.bf16.msra.mxu0 0
  %446 = vmatprep.subr.bf16.mxu0 0
  %447 = vmatpush2.bf16.msra.mxu0 0
  %448 = vmatprep.subr.bf16.mxu0 0
  %449 = vmatpush2.bf16.msra.mxu0 0
  %450 = vmatprep.mubr.bf16.mxu0 0
  %451 = vmatmul.mubr.bf16.gmra.mxu0 %v319
  %v452 = vpop.f32.mrf.mxu0
  %v453 = vadd.f32 %v404, %v452
  %v454 = vpop.f32.mrf.mxu0
  %v455 = vpop.f32.mrf.mxu0
  %v456 = vadd.f32 %v404, %v455
  %v457 = vpop.f32.mrf.mxu0
  %458 = vmatprep.mubr.bf16.mxu0 0
  %459 = vmatmul.mubr.bf16.gmra.mxu0 %v322
  %v460 = vpop.f32.mrf.mxu0
  %v461 = vadd.f32 %v404, %v460
  %v462 = vpop.f32.mrf.mxu0
  %v463 = vpop.f32.mrf.mxu0
  %v464 = vadd.f32 %v404, %v463
  %v465 = vpop.f32.mrf.mxu0
  %466 = vmatprep.mubr.bf16.mxu0 0
  %467 = vmatmul.mubr.bf16.gmra.mxu0 %v325
  %v468 = vpop.f32.mrf.mxu0
  %v469 = vadd.f32 %v404, %v468
  %v470 = vpop.f32.mrf.mxu0
  %v471 = vpop.f32.mrf.mxu0
  %v472 = vadd.f32 %v404, %v471
  %v473 = vpop.f32.mrf.mxu0
  %474 = vmatprep.mubr.bf16.mxu0 0
  %475 = vmatmul.mubr.bf16.gmra.mxu0 %v328
  %v476 = vpop.f32.mrf.mxu0
  %v477 = vadd.f32 %v404, %v476
  %v478 = vpop.f32.mrf.mxu0
  %v479 = vpop.f32.mrf.mxu0
  %v480 = vadd.f32 %v404, %v479
  %v481 = vpop.f32.mrf.mxu0
  %482 = vdwg.mxu0
  %v483 = vld [vmem:[%s6] sm:$0xf]
  %v484 = vld [vmem:[%s6 + $0x4] sm:$0xf]
  %v485 = vld [vmem:[%s6 + $0x8] sm:$0xf]
  %v486 = vld [vmem:[%s6 + $0xc] sm:$0xf]
  %v487 = vld [vmem:[%s7] sm:$0xf]
  %v488 = vld [vmem:[%s7 + $0x4] sm:$0xf]
  %v489 = vld [vmem:[%s7 + $0x8] sm:$0xf]
  %v490 = vld [vmem:[%s7 + $0xc] sm:$0xf]
  %v491 = vld [vmem:[%s8] sm:$0x1]
  %v493 = vlaneseq
  %v494 = vshrl.u32 %v493, 7
  %v495 = vsub.s32 0, %v494
  %v496 = vrot.slane %v491, %v495
  %v498 = vld [vmem:[%s9] sm:$0x1]
  %v500 = vlaneseq
  %v501 = vshrl.u32 %v500, 7
  %v502 = vsub.s32 0, %v501
  %v503 = vrot.slane %v498, %v502
  %v509 = vunpack.c.l.b16 %v483
  %v510 = vunpack.c.l.b16 %v484
  %v511 = vunpack.c.l.b16 %v485
  %v512 = vunpack.c.l.b16 %v486
  %v513 = vpack.c.b16 %v510, %v509
  %v514 = vpack.c.b16 %v512, %v511
  %v518 = vsel %vm317, 0, 0
  %520 = vmatprep.subr.bf16.mxu0 0
  %521 = vmatpush1.bf16.msra.mxu0 0
  %522 = vmatprep.subr.bf16.mxu0 0
  %523 = vmatpush1.bf16.msra.mxu0 0
  %524 = vmatprep.subr.bf16.mxu0 0
  %525 = vmatpush1.bf16.msra.mxu0 0
  %526 = vmatprep.subr.bf16.mxu0 0
  %527 = vmatpush1.bf16.msra.mxu0 0
  %528 = vmatprep.subr.bf16.mxu0 0
  %529 = vmatpush1.bf16.msra.mxu0 0
  %530 = vmatprep.subr.bf16.mxu0 0
  %531 = vmatpush1.bf16.msra.mxu0 0
  %532 = vmatprep.subr.bf16.mxu0 0
  %533 = vmatpush1.bf16.msra.mxu0 %v514
  %534 = vmatprep.subr.bf16.mxu0 0
  %535 = vmatpush1.bf16.msra.mxu0 %v513
  %536 = vmatprep.subr.bf16.mxu0 0
  %537 = vmatpush2.bf16.msra.mxu0 0
  %538 = vmatprep.subr.bf16.mxu0 0
  %539 = vmatpush2.bf16.msra.mxu0 0
  %540 = vmatprep.subr.bf16.mxu0 0
  %541 = vmatpush2.bf16.msra.mxu0 0
  %542 = vmatprep.subr.bf16.mxu0 0
  %543 = vmatpush2.bf16.msra.mxu0 0
  %544 = vmatprep.subr.bf16.mxu0 0
  %545 = vmatpush2.bf16.msra.mxu0 0
  %546 = vmatprep.subr.bf16.mxu0 0
  %547 = vmatpush2.bf16.msra.mxu0 0
  %548 = vmatprep.subr.bf16.mxu0 0
  %549 = vmatpush2.bf16.msra.mxu0 0
  %550 = vmatprep.subr.bf16.mxu0 0
  %551 = vmatpush2.bf16.msra.mxu0 0
  %552 = vmatprep.mubr.bf16.mxu0 0
  %553 = vmatmul.mubr.bf16.gmra.mxu0 %v518
  %v554 = vpop.f32.mrf.mxu0
  %v555 = vadd.f32 %v496, %v554
  %v556 = vpop.f32.mrf.mxu0
  %v557 = vpop.f32.mrf.mxu0
  %v558 = vpop.f32.mrf.mxu0
  %559 = vdwg.mxu0
  %v560 = vadd.f32 %v365, %v555
  %v561 = vxor.u32 %v560, 2147483648
  %v562 = vmul.f32 %v561, 1.442695
  %v563 = vpow.pop %v562
  %v564 = vadd.f32 %v563, 1.0
  %v565 = vrcp.pop %v564
  %v566 = vmul.f32 1.0, %v565
  %568 = vrot.lane.b32.xlu0 %v555, 64
  %v569 = vpop.permute.xlu0 %568
  %v571 = vmul.f32 %v566, %v569
  %573 = vrot.lane.b32.xlu0 %v571, 64
  %v574 = vpop.permute.xlu0 %573
  %v576 = vadd.f32 %v365, %v574
  %v577 = vtanh.pop %v576
  %v578 = vsub.f32 0.0, %v577
  %580 = vrot.lane.b32.xlu0 %v578, 96
  %v581 = vpop.permute.xlu0 %580
  %v583 = vmul.f32 %v566, %v581
  %585 = vrot.lane.b32.xlu0 %v583, 32
  %v586 = vpop.permute.xlu0 %585
  %v588 = vadd.f32 %v577, %v586
  %v593 = vunpack.c.l.b16 %v487
  %v594 = vunpack.c.l.b16 %v488
  %v595 = vunpack.c.l.b16 %v489
  %v596 = vunpack.c.l.b16 %v490
  %v597 = vpack.c.b16 %v594, %v593
  %v598 = vpack.c.b16 %v596, %v595
  %601 = vmatprep.subr.bf16.mxu0 0
  %602 = vmatpush1.bf16.msra.mxu0 0
  %603 = vmatprep.subr.bf16.mxu0 0
  %604 = vmatpush1.bf16.msra.mxu0 0
  %605 = vmatprep.subr.bf16.mxu0 0
  %606 = vmatpush1.bf16.msra.mxu0 0
  %607 = vmatprep.subr.bf16.mxu0 0
  %608 = vmatpush1.bf16.msra.mxu0 0
  %609 = vmatprep.subr.bf16.mxu0 0
  %610 = vmatpush1.bf16.msra.mxu0 0
  %611 = vmatprep.subr.bf16.mxu0 0
  %612 = vmatpush1.bf16.msra.mxu0 0
  %613 = vmatprep.subr.bf16.mxu0 0
  %614 = vmatpush1.bf16.msra.mxu0 %v598
  %615 = vmatprep.subr.bf16.mxu0 0
  %616 = vmatpush1.bf16.msra.mxu0 %v597
  %617 = vmatprep.subr.bf16.mxu0 0
  %618 = vmatpush2.bf16.msra.mxu0 0
  %619 = vmatprep.subr.bf16.mxu0 0
  %620 = vmatpush2.bf16.msra.mxu0 0
  %621 = vmatprep.subr.bf16.mxu0 0
  %622 = vmatpush2.bf16.msra.mxu0 0
  %623 = vmatprep.subr.bf16.mxu0 0
  %624 = vmatpush2.bf16.msra.mxu0 0
  %625 = vmatprep.subr.bf16.mxu0 0
  %626 = vmatpush2.bf16.msra.mxu0 0
  %627 = vmatprep.subr.bf16.mxu0 0
  %628 = vmatpush2.bf16.msra.mxu0 0
  %629 = vmatprep.subr.bf16.mxu0 0
  %630 = vmatpush2.bf16.msra.mxu0 0
  %631 = vmatprep.subr.bf16.mxu0 0
  %632 = vmatpush2.bf16.msra.mxu0 0
  %633 = vmatprep.mubr.bf16.mxu0 0
  %634 = vmatmul.mubr.bf16.gmra.mxu0 %v518
  %v635 = vpop.f32.mrf.mxu0
  %v636 = vadd.f32 %v503, %v635
  %v637 = vpop.f32.mrf.mxu0
  %v638 = vpop.f32.mrf.mxu0
  %v639 = vpop.f32.mrf.mxu0
  %640 = vdwg.mxu0
  %v641 = vadd.f32 %v480, %v636
  %v642 = vxor.u32 %v641, 2147483648
  %v643 = vmul.f32 %v642, 1.442695
  %v644 = vpow.pop %v643
  %v645 = vadd.f32 %v644, 1.0
  %v646 = vrcp.pop %v645
  %v647 = vmul.f32 1.0, %v646
  %649 = vrot.lane.b32.xlu0 %v636, 64
  %v650 = vpop.permute.xlu0 %649
  %v652 = vmul.f32 %v647, %v650
  %654 = vrot.lane.b32.xlu0 %v652, 64
  %v655 = vpop.permute.xlu0 %654
  %v657 = vadd.f32 %v480, %v655
  %v658 = vtanh.pop %v657
  %v659 = vsub.f32 0.0, %v658
  %661 = vrot.lane.b32.xlu0 %v659, 96
  %v662 = vpop.permute.xlu0 %661
  %v664 = vmul.f32 %v647, %v662
  %666 = vrot.lane.b32.xlu0 %v664, 32
  %v667 = vpop.permute.xlu0 %666
  %v669 = vadd.f32 %v658, %v667
  %v670 = vpack.c.bf16 %v588, %v588
  %672 = vrot.lane.b32.xlu0 %v670, 64
  %v673 = vpop.permute.xlu0 %672
  %v675 = vsel %vm317, %v673, 0
  %677 = vmatprep.subr.bf16.mxu0 0
  %678 = vmatpush1.bf16.msra.mxu0 0
  %679 = vmatprep.subr.bf16.mxu0 0
  %680 = vmatpush1.bf16.msra.mxu0 0
  %681 = vmatprep.subr.bf16.mxu0 0
  %682 = vmatpush1.bf16.msra.mxu0 0
  %683 = vmatprep.subr.bf16.mxu0 0
  %684 = vmatpush1.bf16.msra.mxu0 0
  %685 = vmatprep.subr.bf16.mxu0 0
  %686 = vmatpush1.bf16.msra.mxu0 0
  %687 = vmatprep.subr.bf16.mxu0 0
  %688 = vmatpush1.bf16.msra.mxu0 0
  %689 = vmatprep.subr.bf16.mxu0 0
  %690 = vmatpush1.bf16.msra.mxu0 %v514
  %691 = vmatprep.subr.bf16.mxu0 0
  %692 = vmatpush1.bf16.msra.mxu0 %v513
  %693 = vmatprep.subr.bf16.mxu0 0
  %694 = vmatpush2.bf16.msra.mxu0 0
  %695 = vmatprep.subr.bf16.mxu0 0
  %696 = vmatpush2.bf16.msra.mxu0 0
  %697 = vmatprep.subr.bf16.mxu0 0
  %698 = vmatpush2.bf16.msra.mxu0 0
  %699 = vmatprep.subr.bf16.mxu0 0
  %700 = vmatpush2.bf16.msra.mxu0 0
  %701 = vmatprep.subr.bf16.mxu0 0
  %702 = vmatpush2.bf16.msra.mxu0 0
  %703 = vmatprep.subr.bf16.mxu0 0
  %704 = vmatpush2.bf16.msra.mxu0 0
  %705 = vmatprep.subr.bf16.mxu0 0
  %706 = vmatpush2.bf16.msra.mxu0 0
  %707 = vmatprep.subr.bf16.mxu0 0
  %708 = vmatpush2.bf16.msra.mxu0 0
  %709 = vmatprep.mubr.bf16.mxu0 0
  %710 = vmatmul.mubr.bf16.gmra.mxu0 %v675
  %v711 = vpop.f32.mrf.mxu0
  %v712 = vadd.f32 %v496, %v711
  %v713 = vpop.f32.mrf.mxu0
  %v714 = vpop.f32.mrf.mxu0
  %v715 = vpop.f32.mrf.mxu0
  %716 = vdwg.mxu0
  %v717 = vadd.f32 %v368, %v712
  %v718 = vxor.u32 %v717, 2147483648
  %v719 = vmul.f32 %v718, 1.442695
  %v720 = vpow.pop %v719
  %v721 = vadd.f32 %v720, 1.0
  %v722 = vrcp.pop %v721
  %v723 = vmul.f32 1.0, %v722
  %725 = vrot.lane.b32.xlu0 %v712, 64
  %v726 = vpop.permute.xlu0 %725
  %v728 = vmul.f32 %v723, %v726
  %730 = vrot.lane.b32.xlu0 %v728, 64
  %v731 = vpop.permute.xlu0 %730
  %v733 = vadd.f32 %v368, %v731
  %v734 = vtanh.pop %v733
  %v735 = vsub.f32 %v588, %v734
  %737 = vrot.lane.b32.xlu0 %v735, 96
  %v738 = vpop.permute.xlu0 %737
  %v740 = vmul.f32 %v723, %v738
  %742 = vrot.lane.b32.xlu0 %v740, 32
  %v743 = vpop.permute.xlu0 %742
  %v745 = vadd.f32 %v734, %v743
  %v746 = vpack.c.bf16 %v669, %v669
  %748 = vrot.lane.b32.xlu0 %v746, 64
  %v749 = vpop.permute.xlu0 %748
  %v751 = vsel %vm317, %v749, 0
  %753 = vmatprep.subr.bf16.mxu0 0
  %754 = vmatpush1.bf16.msra.mxu0 0
  %755 = vmatprep.subr.bf16.mxu0 0
  %756 = vmatpush1.bf16.msra.mxu0 0
  %757 = vmatprep.subr.bf16.mxu0 0
  %758 = vmatpush1.bf16.msra.mxu0 0
  %759 = vmatprep.subr.bf16.mxu0 0
  %760 = vmatpush1.bf16.msra.mxu0 0
  %761 = vmatprep.subr.bf16.mxu0 0
  %762 = vmatpush1.bf16.msra.mxu0 0
  %763 = vmatprep.subr.bf16.mxu0 0
  %764 = vmatpush1.bf16.msra.mxu0 0
  %765 = vmatprep.subr.bf16.mxu0 0
  %766 = vmatpush1.bf16.msra.mxu0 %v598
  %767 = vmatprep.subr.bf16.mxu0 0
  %768 = vmatpush1.bf16.msra.mxu0 %v597
  %769 = vmatprep.subr.bf16.mxu0 0
  %770 = vmatpush2.bf16.msra.mxu0 0
  %771 = vmatprep.subr.bf16.mxu0 0
  %772 = vmatpush2.bf16.msra.mxu0 0
  %773 = vmatprep.subr.bf16.mxu0 0
  %774 = vmatpush2.bf16.msra.mxu0 0
  %775 = vmatprep.subr.bf16.mxu0 0
  %776 = vmatpush2.bf16.msra.mxu0 0
  %777 = vmatprep.subr.bf16.mxu0 0
  %778 = vmatpush2.bf16.msra.mxu0 0
  %779 = vmatprep.subr.bf16.mxu0 0
  %780 = vmatpush2.bf16.msra.mxu0 0
  %781 = vmatprep.subr.bf16.mxu0 0
  %782 = vmatpush2.bf16.msra.mxu0 0
  %783 = vmatprep.subr.bf16.mxu0 0
  %784 = vmatpush2.bf16.msra.mxu0 0
  %785 = vmatprep.mubr.bf16.mxu0 0
  %786 = vmatmul.mubr.bf16.gmra.mxu0 %v751
  %v787 = vpop.f32.mrf.mxu0
  %v788 = vadd.f32 %v503, %v787
  %v789 = vpop.f32.mrf.mxu0
  %v790 = vpop.f32.mrf.mxu0
  %v791 = vpop.f32.mrf.mxu0
  %792 = vdwg.mxu0
  %v793 = vadd.f32 %v477, %v788
  %v794 = vxor.u32 %v793, 2147483648
  %v795 = vmul.f32 %v794, 1.442695
  %v796 = vpow.pop %v795
  %v797 = vadd.f32 %v796, 1.0
  %v798 = vrcp.pop %v797
  %v799 = vmul.f32 1.0, %v798
  %801 = vrot.lane.b32.xlu0 %v788, 64
  %v802 = vpop.permute.xlu0 %801
  %v804 = vmul.f32 %v799, %v802
  %806 = vrot.lane.b32.xlu0 %v804, 64
  %v807 = vpop.permute.xlu0 %806
  %v809 = vadd.f32 %v477, %v807
  %v810 = vtanh.pop %v809
  %v811 = vsub.f32 %v669, %v810
  %813 = vrot.lane.b32.xlu0 %v811, 96
  %v814 = vpop.permute.xlu0 %813
  %v816 = vmul.f32 %v799, %v814
  %818 = vrot.lane.b32.xlu0 %v816, 32
  %v819 = vpop.permute.xlu0 %818
  %v821 = vadd.f32 %v810, %v819
  %v822 = vpack.c.bf16 %v745, %v745
  %824 = vrot.lane.b32.xlu0 %v822, 64
  %v825 = vpop.permute.xlu0 %824
  %v827 = vsel %vm317, %v825, 0
  %829 = vmatprep.subr.bf16.mxu0 0
  %830 = vmatpush1.bf16.msra.mxu0 0
  %831 = vmatprep.subr.bf16.mxu0 0
  %832 = vmatpush1.bf16.msra.mxu0 0
  %833 = vmatprep.subr.bf16.mxu0 0
  %834 = vmatpush1.bf16.msra.mxu0 0
  %835 = vmatprep.subr.bf16.mxu0 0
  %836 = vmatpush1.bf16.msra.mxu0 0
  %837 = vmatprep.subr.bf16.mxu0 0
  %838 = vmatpush1.bf16.msra.mxu0 0
  %839 = vmatprep.subr.bf16.mxu0 0
  %840 = vmatpush1.bf16.msra.mxu0 0
  %841 = vmatprep.subr.bf16.mxu0 0
  %842 = vmatpush1.bf16.msra.mxu0 %v514
  %843 = vmatprep.subr.bf16.mxu0 0
  %844 = vmatpush1.bf16.msra.mxu0 %v513
  %845 = vmatprep.subr.bf16.mxu0 0
  %846 = vmatpush2.bf16.msra.mxu0 0
  %847 = vmatprep.subr.bf16.mxu0 0
  %848 = vmatpush2.bf16.msra.mxu0 0
  %849 = vmatprep.subr.bf16.mxu0 0
  %850 = vmatpush2.bf16.msra.mxu0 0
  %851 = vmatprep.subr.bf16.mxu0 0
  %852 = vmatpush2.bf16.msra.mxu0 0
  %853 = vmatprep.subr.bf16.mxu0 0
  %854 = vmatpush2.bf16.msra.mxu0 0
  %855 = vmatprep.subr.bf16.mxu0 0
  %856 = vmatpush2.bf16.msra.mxu0 0
  %857 = vmatprep.subr.bf16.mxu0 0
  %858 = vmatpush2.bf16.msra.mxu0 0
  %859 = vmatprep.subr.bf16.mxu0 0
  %860 = vmatpush2.bf16.msra.mxu0 0
  %861 = vmatprep.mubr.bf16.mxu0 0
  %862 = vmatmul.mubr.bf16.gmra.mxu0 %v827
  %v863 = vpop.f32.mrf.mxu0
  %v864 = vadd.f32 %v496, %v863
  %v865 = vpop.f32.mrf.mxu0
  %v866 = vpop.f32.mrf.mxu0
  %v867 = vpop.f32.mrf.mxu0
  %868 = vdwg.mxu0
  %v869 = vadd.f32 %v373, %v864
  %v870 = vxor.u32 %v869, 2147483648
  %v871 = vmul.f32 %v870, 1.442695
  %v872 = vpow.pop %v871
  %v873 = vadd.f32 %v872, 1.0
  %v874 = vrcp.pop %v873
  %v875 = vmul.f32 1.0, %v874
  %877 = vrot.lane.b32.xlu0 %v864, 64
  %v878 = vpop.permute.xlu0 %877
  %v880 = vmul.f32 %v875, %v878
  %882 = vrot.lane.b32.xlu0 %v880, 64
  %v883 = vpop.permute.xlu0 %882
  %v885 = vadd.f32 %v373, %v883
  %v886 = vtanh.pop %v885
  %v887 = vsub.f32 %v745, %v886
  %889 = vrot.lane.b32.xlu0 %v887, 96
  %v890 = vpop.permute.xlu0 %889
  %v892 = vmul.f32 %v875, %v890
  %894 = vrot.lane.b32.xlu0 %v892, 32
  %v895 = vpop.permute.xlu0 %894
  %v897 = vadd.f32 %v886, %v895
  %v898 = vpack.c.bf16 %v821, %v821
  %900 = vrot.lane.b32.xlu0 %v898, 64
  %v901 = vpop.permute.xlu0 %900
  %v903 = vsel %vm317, %v901, 0
  %905 = vmatprep.subr.bf16.mxu0 0
  %906 = vmatpush1.bf16.msra.mxu0 0
  %907 = vmatprep.subr.bf16.mxu0 0
  %908 = vmatpush1.bf16.msra.mxu0 0
  %909 = vmatprep.subr.bf16.mxu0 0
  %910 = vmatpush1.bf16.msra.mxu0 0
  %911 = vmatprep.subr.bf16.mxu0 0
  %912 = vmatpush1.bf16.msra.mxu0 0
  %913 = vmatprep.subr.bf16.mxu0 0
  %914 = vmatpush1.bf16.msra.mxu0 0
  %915 = vmatprep.subr.bf16.mxu0 0
  %916 = vmatpush1.bf16.msra.mxu0 0
  %917 = vmatprep.subr.bf16.mxu0 0
  %918 = vmatpush1.bf16.msra.mxu0 %v598
  %919 = vmatprep.subr.bf16.mxu0 0
  %920 = vmatpush1.bf16.msra.mxu0 %v597
  %921 = vmatprep.subr.bf16.mxu0 0
  %922 = vmatpush2.bf16.msra.mxu0 0
  %923 = vmatprep.subr.bf16.mxu0 0
  %924 = vmatpush2.bf16.msra.mxu0 0
  %925 = vmatprep.subr.bf16.mxu0 0
  %926 = vmatpush2.bf16.msra.mxu0 0
  %927 = vmatprep.subr.bf16.mxu0 0
  %928 = vmatpush2.bf16.msra.mxu0 0
  %929 = vmatprep.subr.bf16.mxu0 0
  %930 = vmatpush2.bf16.msra.mxu0 0
  %931 = vmatprep.subr.bf16.mxu0 0
  %932 = vmatpush2.bf16.msra.mxu0 0
  %933 = vmatprep.subr.bf16.mxu0 0
  %934 = vmatpush2.bf16.msra.mxu0 0
  %935 = vmatprep.subr.bf16.mxu0 0
  %936 = vmatpush2.bf16.msra.mxu0 0
  %937 = vmatprep.mubr.bf16.mxu0 0
  %938 = vmatmul.mubr.bf16.gmra.mxu0 %v903
  %v939 = vpop.f32.mrf.mxu0
  %v940 = vadd.f32 %v503, %v939
  %v941 = vpop.f32.mrf.mxu0
  %v942 = vpop.f32.mrf.mxu0
  %v943 = vpop.f32.mrf.mxu0
  %944 = vdwg.mxu0
  %v945 = vadd.f32 %v472, %v940
  %v946 = vxor.u32 %v945, 2147483648
  %v947 = vmul.f32 %v946, 1.442695
  %v948 = vpow.pop %v947
  %v949 = vadd.f32 %v948, 1.0
  %v950 = vrcp.pop %v949
  %v951 = vmul.f32 1.0, %v950
  %953 = vrot.lane.b32.xlu0 %v940, 64
  %v954 = vpop.permute.xlu0 %953
  %v956 = vmul.f32 %v951, %v954
  %958 = vrot.lane.b32.xlu0 %v956, 64
  %v959 = vpop.permute.xlu0 %958
  %v961 = vadd.f32 %v472, %v959
  %v962 = vtanh.pop %v961
  %v963 = vsub.f32 %v821, %v962
  %965 = vrot.lane.b32.xlu0 %v963, 96
  %v966 = vpop.permute.xlu0 %965
  %v968 = vmul.f32 %v951, %v966
  %970 = vrot.lane.b32.xlu0 %v968, 32
  %v971 = vpop.permute.xlu0 %970
  %v973 = vadd.f32 %v962, %v971
  %v974 = vpack.c.bf16 %v897, %v897
  %976 = vrot.lane.b32.xlu0 %v974, 64
  %v977 = vpop.permute.xlu0 %976
  %v979 = vsel %vm317, %v977, 0
  %981 = vmatprep.subr.bf16.mxu0 0
  %982 = vmatpush1.bf16.msra.mxu0 0
  %983 = vmatprep.subr.bf16.mxu0 0
  %984 = vmatpush1.bf16.msra.mxu0 0
  %985 = vmatprep.subr.bf16.mxu0 0
  %986 = vmatpush1.bf16.msra.mxu0 0
  %987 = vmatprep.subr.bf16.mxu0 0
  %988 = vmatpush1.bf16.msra.mxu0 0
  %989 = vmatprep.subr.bf16.mxu0 0
  %990 = vmatpush1.bf16.msra.mxu0 0
  %991 = vmatprep.subr.bf16.mxu0 0
  %992 = vmatpush1.bf16.msra.mxu0 0
  %993 = vmatprep.subr.bf16.mxu0 0
  %994 = vmatpush1.bf16.msra.mxu0 %v514
  %995 = vmatprep.subr.bf16.mxu0 0
  %996 = vmatpush1.bf16.msra.mxu0 %v513
  %997 = vmatprep.subr.bf16.mxu0 0
  %998 = vmatpush2.bf16.msra.mxu0 0
  %999 = vmatprep.subr.bf16.mxu0 0
  %1000 = vmatpush2.bf16.msra.mxu0 0
  %1001 = vmatprep.subr.bf16.mxu0 0
  %1002 = vmatpush2.bf16.msra.mxu0 0
  %1003 = vmatprep.subr.bf16.mxu0 0
  %1004 = vmatpush2.bf16.msra.mxu0 0
  %1005 = vmatprep.subr.bf16.mxu0 0
  %1006 = vmatpush2.bf16.msra.mxu0 0
  %1007 = vmatprep.subr.bf16.mxu0 0
  %1008 = vmatpush2.bf16.msra.mxu0 0
  %1009 = vmatprep.subr.bf16.mxu0 0
  %1010 = vmatpush2.bf16.msra.mxu0 0
  %1011 = vmatprep.subr.bf16.mxu0 0
  %1012 = vmatpush2.bf16.msra.mxu0 0
  %1013 = vmatprep.mubr.bf16.mxu0 0
  %1014 = vmatmul.mubr.bf16.gmra.mxu0 %v979
  %v1015 = vpop.f32.mrf.mxu0
  %v1016 = vadd.f32 %v496, %v1015
  %v1017 = vpop.f32.mrf.mxu0
  %v1018 = vpop.f32.mrf.mxu0
  %v1019 = vpop.f32.mrf.mxu0
  %1020 = vdwg.mxu0
  %v1021 = vadd.f32 %v376, %v1016
  %v1022 = vxor.u32 %v1021, 2147483648
  %v1023 = vmul.f32 %v1022, 1.442695
  %v1024 = vpow.pop %v1023
  %v1025 = vadd.f32 %v1024, 1.0
  %v1026 = vrcp.pop %v1025
  %v1027 = vmul.f32 1.0, %v1026
  %1029 = vrot.lane.b32.xlu0 %v1016, 64
  %v1030 = vpop.permute.xlu0 %1029
  %v1032 = vmul.f32 %v1027, %v1030
  %1034 = vrot.lane.b32.xlu0 %v1032, 64
  %v1035 = vpop.permute.xlu0 %1034
  %v1037 = vadd.f32 %v376, %v1035
  %v1038 = vtanh.pop %v1037
  %v1039 = vsub.f32 %v897, %v1038
  %1041 = vrot.lane.b32.xlu0 %v1039, 96
  %v1042 = vpop.permute.xlu0 %1041
  %v1044 = vmul.f32 %v1027, %v1042
  %1046 = vrot.lane.b32.xlu0 %v1044, 32
  %v1047 = vpop.permute.xlu0 %1046
  %v1049 = vadd.f32 %v1038, %v1047
  %v1050 = vpack.c.bf16 %v973, %v973
  %1052 = vrot.lane.b32.xlu0 %v1050, 64
  %v1053 = vpop.permute.xlu0 %1052
  %v1055 = vsel %vm317, %v1053, 0
  %1057 = vmatprep.subr.bf16.mxu0 0
  %1058 = vmatpush1.bf16.msra.mxu0 0
  %1059 = vmatprep.subr.bf16.mxu0 0
  %1060 = vmatpush1.bf16.msra.mxu0 0
  %1061 = vmatprep.subr.bf16.mxu0 0
  %1062 = vmatpush1.bf16.msra.mxu0 0
  %1063 = vmatprep.subr.bf16.mxu0 0
  %1064 = vmatpush1.bf16.msra.mxu0 0
  %1065 = vmatprep.subr.bf16.mxu0 0
  %1066 = vmatpush1.bf16.msra.mxu0 0
  %1067 = vmatprep.subr.bf16.mxu0 0
  %1068 = vmatpush1.bf16.msra.mxu0 0
  %1069 = vmatprep.subr.bf16.mxu0 0
  %1070 = vmatpush1.bf16.msra.mxu0 %v598
  %1071 = vmatprep.subr.bf16.mxu0 0
  %1072 = vmatpush1.bf16.msra.mxu0 %v597
  %1073 = vmatprep.subr.bf16.mxu0 0
  %1074 = vmatpush2.bf16.msra.mxu0 0
  %1075 = vmatprep.subr.bf16.mxu0 0
  %1076 = vmatpush2.bf16.msra.mxu0 0
  %1077 = vmatprep.subr.bf16.mxu0 0
  %1078 = vmatpush2.bf16.msra.mxu0 0
  %1079 = vmatprep.subr.bf16.mxu0 0
  %1080 = vmatpush2.bf16.msra.mxu0 0
  %1081 = vmatprep.subr.bf16.mxu0 0
  %1082 = vmatpush2.bf16.msra.mxu0 0
  %1083 = vmatprep.subr.bf16.mxu0 0
  %1084 = vmatpush2.bf16.msra.mxu0 0
  %1085 = vmatprep.subr.bf16.mxu0 0
  %1086 = vmatpush2.bf16.msra.mxu0 0
  %1087 = vmatprep.subr.bf16.mxu0 0
  %1088 = vmatpush2.bf16.msra.mxu0 0
  %1089 = vmatprep.mubr.bf16.mxu0 0
  %1090 = vmatmul.mubr.bf16.gmra.mxu0 %v1055
  %v1091 = vpop.f32.mrf.mxu0
  %v1092 = vadd.f32 %v503, %v1091
  %v1093 = vpop.f32.mrf.mxu0
  %v1094 = vpop.f32.mrf.mxu0
  %v1095 = vpop.f32.mrf.mxu0
  %1096 = vdwg.mxu0
  %v1097 = vadd.f32 %v469, %v1092
  %v1098 = vxor.u32 %v1097, 2147483648
  %v1099 = vmul.f32 %v1098, 1.442695
  %v1100 = vpow.pop %v1099
  %v1101 = vadd.f32 %v1100, 1.0
  %v1102 = vrcp.pop %v1101
  %v1103 = vmul.f32 1.0, %v1102
  %1105 = vrot.lane.b32.xlu0 %v1092, 64
  %v1106 = vpop.permute.xlu0 %1105
  %v1108 = vmul.f32 %v1103, %v1106
  %1110 = vrot.lane.b32.xlu0 %v1108, 64
  %v1111 = vpop.permute.xlu0 %1110
  %v1113 = vadd.f32 %v469, %v1111
  %v1114 = vtanh.pop %v1113
  %v1115 = vsub.f32 %v973, %v1114
  %1117 = vrot.lane.b32.xlu0 %v1115, 96
  %v1118 = vpop.permute.xlu0 %1117
  %v1120 = vmul.f32 %v1103, %v1118
  %1122 = vrot.lane.b32.xlu0 %v1120, 32
  %v1123 = vpop.permute.xlu0 %1122
  %v1125 = vadd.f32 %v1114, %v1123
  %v1126 = vpack.c.bf16 %v1049, %v1049
  %1128 = vrot.lane.b32.xlu0 %v1126, 64
  %v1129 = vpop.permute.xlu0 %1128
  %v1131 = vsel %vm317, %v1129, 0
  %1133 = vmatprep.subr.bf16.mxu0 0
  %1134 = vmatpush1.bf16.msra.mxu0 0
  %1135 = vmatprep.subr.bf16.mxu0 0
  %1136 = vmatpush1.bf16.msra.mxu0 0
  %1137 = vmatprep.subr.bf16.mxu0 0
  %1138 = vmatpush1.bf16.msra.mxu0 0
  %1139 = vmatprep.subr.bf16.mxu0 0
  %1140 = vmatpush1.bf16.msra.mxu0 0
  %1141 = vmatprep.subr.bf16.mxu0 0
  %1142 = vmatpush1.bf16.msra.mxu0 0
  %1143 = vmatprep.subr.bf16.mxu0 0
  %1144 = vmatpush1.bf16.msra.mxu0 0
  %1145 = vmatprep.subr.bf16.mxu0 0
  %1146 = vmatpush1.bf16.msra.mxu0 %v514
  %1147 = vmatprep.subr.bf16.mxu0 0
  %1148 = vmatpush1.bf16.msra.mxu0 %v513
  %1149 = vmatprep.subr.bf16.mxu0 0
  %1150 = vmatpush2.bf16.msra.mxu0 0
  %1151 = vmatprep.subr.bf16.mxu0 0
  %1152 = vmatpush2.bf16.msra.mxu0 0
  %1153 = vmatprep.subr.bf16.mxu0 0
  %1154 = vmatpush2.bf16.msra.mxu0 0
  %1155 = vmatprep.subr.bf16.mxu0 0
  %1156 = vmatpush2.bf16.msra.mxu0 0
  %1157 = vmatprep.subr.bf16.mxu0 0
  %1158 = vmatpush2.bf16.msra.mxu0 0
  %1159 = vmatprep.subr.bf16.mxu0 0
  %1160 = vmatpush2.bf16.msra.mxu0 0
  %1161 = vmatprep.subr.bf16.mxu0 0
  %1162 = vmatpush2.bf16.msra.mxu0 0
  %1163 = vmatprep.subr.bf16.mxu0 0
  %1164 = vmatpush2.bf16.msra.mxu0 0
  %1165 = vmatprep.mubr.bf16.mxu0 0
  %1166 = vmatmul.mubr.bf16.gmra.mxu0 %v1131
  %v1167 = vpop.f32.mrf.mxu0
  %v1168 = vadd.f32 %v496, %v1167
  %v1169 = vpop.f32.mrf.mxu0
  %v1170 = vpop.f32.mrf.mxu0
  %v1171 = vpop.f32.mrf.mxu0
  %1172 = vdwg.mxu0
  %v1173 = vadd.f32 %v381, %v1168
  %v1174 = vxor.u32 %v1173, 2147483648
  %v1175 = vmul.f32 %v1174, 1.442695
  %v1176 = vpow.pop %v1175
  %v1177 = vadd.f32 %v1176, 1.0
  %v1178 = vrcp.pop %v1177
  %v1179 = vmul.f32 1.0, %v1178
  %1181 = vrot.lane.b32.xlu0 %v1168, 64
  %v1182 = vpop.permute.xlu0 %1181
  %v1184 = vmul.f32 %v1179, %v1182
  %1186 = vrot.lane.b32.xlu0 %v1184, 64
  %v1187 = vpop.permute.xlu0 %1186
  %v1189 = vadd.f32 %v381, %v1187
  %v1190 = vtanh.pop %v1189
  %v1191 = vsub.f32 %v1049, %v1190
  %1193 = vrot.lane.b32.xlu0 %v1191, 96
  %v1194 = vpop.permute.xlu0 %1193
  %v1196 = vmul.f32 %v1179, %v1194
  %1198 = vrot.lane.b32.xlu0 %v1196, 32
  %v1199 = vpop.permute.xlu0 %1198
  %v1201 = vadd.f32 %v1190, %v1199
  %v1202 = vpack.c.bf16 %v1125, %v1125
  %1204 = vrot.lane.b32.xlu0 %v1202, 64
  %v1205 = vpop.permute.xlu0 %1204
  %v1207 = vsel %vm317, %v1205, 0
  %1209 = vmatprep.subr.bf16.mxu0 0
  %1210 = vmatpush1.bf16.msra.mxu0 0
  %1211 = vmatprep.subr.bf16.mxu0 0
  %1212 = vmatpush1.bf16.msra.mxu0 0
  %1213 = vmatprep.subr.bf16.mxu0 0
  %1214 = vmatpush1.bf16.msra.mxu0 0
  %1215 = vmatprep.subr.bf16.mxu0 0
  %1216 = vmatpush1.bf16.msra.mxu0 0
  %1217 = vmatprep.subr.bf16.mxu0 0
  %1218 = vmatpush1.bf16.msra.mxu0 0
  %1219 = vmatprep.subr.bf16.mxu0 0
  %1220 = vmatpush1.bf16.msra.mxu0 0
  %1221 = vmatprep.subr.bf16.mxu0 0
  %1222 = vmatpush1.bf16.msra.mxu0 %v598
  %1223 = vmatprep.subr.bf16.mxu0 0
  %1224 = vmatpush1.bf16.msra.mxu0 %v597
  %1225 = vmatprep.subr.bf16.mxu0 0
  %1226 = vmatpush2.bf16.msra.mxu0 0
  %1227 = vmatprep.subr.bf16.mxu0 0
  %1228 = vmatpush2.bf16.msra.mxu0 0
  %1229 = vmatprep.subr.bf16.mxu0 0
  %1230 = vmatpush2.bf16.msra.mxu0 0
  %1231 = vmatprep.subr.bf16.mxu0 0
  %1232 = vmatpush2.bf16.msra.mxu0 0
  %1233 = vmatprep.subr.bf16.mxu0 0
  %1234 = vmatpush2.bf16.msra.mxu0 0
  %1235 = vmatprep.subr.bf16.mxu0 0
  %1236 = vmatpush2.bf16.msra.mxu0 0
  %1237 = vmatprep.subr.bf16.mxu0 0
  %1238 = vmatpush2.bf16.msra.mxu0 0
  %1239 = vmatprep.subr.bf16.mxu0 0
  %1240 = vmatpush2.bf16.msra.mxu0 0
  %1241 = vmatprep.mubr.bf16.mxu0 0
  %1242 = vmatmul.mubr.bf16.gmra.mxu0 %v1207
  %v1243 = vpop.f32.mrf.mxu0
  %v1244 = vadd.f32 %v503, %v1243
  %v1245 = vpop.f32.mrf.mxu0
  %v1246 = vpop.f32.mrf.mxu0
  %v1247 = vpop.f32.mrf.mxu0
  %1248 = vdwg.mxu0
  %v1249 = vadd.f32 %v464, %v1244
  %v1250 = vxor.u32 %v1249, 2147483648
  %v1251 = vmul.f32 %v1250, 1.442695
  %v1252 = vpow.pop %v1251
  %v1253 = vadd.f32 %v1252, 1.0
  %v1254 = vrcp.pop %v1253
  %v1255 = vmul.f32 1.0, %v1254
  %1257 = vrot.lane.b32.xlu0 %v1244, 64
  %v1258 = vpop.permute.xlu0 %1257
  %v1260 = vmul.f32 %v1255, %v1258
  %1262 = vrot.lane.b32.xlu0 %v1260, 64
  %v1263 = vpop.permute.xlu0 %1262
  %v1265 = vadd.f32 %v464, %v1263
  %v1266 = vtanh.pop %v1265
  %v1267 = vsub.f32 %v1125, %v1266
  %1269 = vrot.lane.b32.xlu0 %v1267, 96
  %v1270 = vpop.permute.xlu0 %1269
  %v1272 = vmul.f32 %v1255, %v1270
  %1274 = vrot.lane.b32.xlu0 %v1272, 32
  %v1275 = vpop.permute.xlu0 %1274
  %v1277 = vadd.f32 %v1266, %v1275
  %v1278 = vpack.c.bf16 %v1201, %v1201
  %1280 = vrot.lane.b32.xlu0 %v1278, 64
  %v1281 = vpop.permute.xlu0 %1280
  %v1283 = vsel %vm317, %v1281, 0
  %1285 = vmatprep.subr.bf16.mxu0 0
  %1286 = vmatpush1.bf16.msra.mxu0 0
  %1287 = vmatprep.subr.bf16.mxu0 0
  %1288 = vmatpush1.bf16.msra.mxu0 0
  %1289 = vmatprep.subr.bf16.mxu0 0
  %1290 = vmatpush1.bf16.msra.mxu0 0
  %1291 = vmatprep.subr.bf16.mxu0 0
  %1292 = vmatpush1.bf16.msra.mxu0 0
  %1293 = vmatprep.subr.bf16.mxu0 0
  %1294 = vmatpush1.bf16.msra.mxu0 0
  %1295 = vmatprep.subr.bf16.mxu0 0
  %1296 = vmatpush1.bf16.msra.mxu0 0
  %1297 = vmatprep.subr.bf16.mxu0 0
  %1298 = vmatpush1.bf16.msra.mxu0 %v514
  %1299 = vmatprep.subr.bf16.mxu0 0
  %1300 = vmatpush1.bf16.msra.mxu0 %v513
  %1301 = vmatprep.subr.bf16.mxu0 0
  %1302 = vmatpush2.bf16.msra.mxu0 0
  %1303 = vmatprep.subr.bf16.mxu0 0
  %1304 = vmatpush2.bf16.msra.mxu0 0
  %1305 = vmatprep.subr.bf16.mxu0 0
  %1306 = vmatpush2.bf16.msra.mxu0 0
  %1307 = vmatprep.subr.bf16.mxu0 0
  %1308 = vmatpush2.bf16.msra.mxu0 0
  %1309 = vmatprep.subr.bf16.mxu0 0
  %1310 = vmatpush2.bf16.msra.mxu0 0
  %1311 = vmatprep.subr.bf16.mxu0 0
  %1312 = vmatpush2.bf16.msra.mxu0 0
  %1313 = vmatprep.subr.bf16.mxu0 0
  %1314 = vmatpush2.bf16.msra.mxu0 0
  %1315 = vmatprep.subr.bf16.mxu0 0
  %1316 = vmatpush2.bf16.msra.mxu0 0
  %1317 = vmatprep.mubr.bf16.mxu0 0
  %1318 = vmatmul.mubr.bf16.gmra.mxu0 %v1283
  %v1319 = vpop.f32.mrf.mxu0
  %v1320 = vadd.f32 %v496, %v1319
  %v1321 = vpop.f32.mrf.mxu0
  %v1322 = vpop.f32.mrf.mxu0
  %v1323 = vpop.f32.mrf.mxu0
  %1324 = vdwg.mxu0
  %v1325 = vadd.f32 %v384, %v1320
  %v1326 = vxor.u32 %v1325, 2147483648
  %v1327 = vmul.f32 %v1326, 1.442695
  %v1328 = vpow.pop %v1327
  %v1329 = vadd.f32 %v1328, 1.0
  %v1330 = vrcp.pop %v1329
  %v1331 = vmul.f32 1.0, %v1330
  %1333 = vrot.lane.b32.xlu0 %v1320, 64
  %v1334 = vpop.permute.xlu0 %1333
  %v1336 = vmul.f32 %v1331, %v1334
  %1338 = vrot.lane.b32.xlu0 %v1336, 64
  %v1339 = vpop.permute.xlu0 %1338
  %v1341 = vadd.f32 %v384, %v1339
  %v1342 = vtanh.pop %v1341
  %v1343 = vsub.f32 %v1201, %v1342
  %1345 = vrot.lane.b32.xlu0 %v1343, 96
  %v1346 = vpop.permute.xlu0 %1345
  %v1348 = vmul.f32 %v1331, %v1346
  %1350 = vrot.lane.b32.xlu0 %v1348, 32
  %v1351 = vpop.permute.xlu0 %1350
  %v1353 = vadd.f32 %v1342, %v1351
  %v1354 = vpack.c.bf16 %v1277, %v1277
  %1356 = vrot.lane.b32.xlu0 %v1354, 64
  %v1357 = vpop.permute.xlu0 %1356
  %v1359 = vsel %vm317, %v1357, 0
  %1361 = vmatprep.subr.bf16.mxu0 0
  %1362 = vmatpush1.bf16.msra.mxu0 0
  %1363 = vmatprep.subr.bf16.mxu0 0
  %1364 = vmatpush1.bf16.msra.mxu0 0
  %1365 = vmatprep.subr.bf16.mxu0 0
  %1366 = vmatpush1.bf16.msra.mxu0 0
  %1367 = vmatprep.subr.bf16.mxu0 0
  %1368 = vmatpush1.bf16.msra.mxu0 0
  %1369 = vmatprep.subr.bf16.mxu0 0
  %1370 = vmatpush1.bf16.msra.mxu0 0
  %1371 = vmatprep.subr.bf16.mxu0 0
  %1372 = vmatpush1.bf16.msra.mxu0 0
  %1373 = vmatprep.subr.bf16.mxu0 0
  %1374 = vmatpush1.bf16.msra.mxu0 %v598
  %1375 = vmatprep.subr.bf16.mxu0 0
  %1376 = vmatpush1.bf16.msra.mxu0 %v597
  %1377 = vmatprep.subr.bf16.mxu0 0
  %1378 = vmatpush2.bf16.msra.mxu0 0
  %1379 = vmatprep.subr.bf16.mxu0 0
  %1380 = vmatpush2.bf16.msra.mxu0 0
  %1381 = vmatprep.subr.bf16.mxu0 0
  %1382 = vmatpush2.bf16.msra.mxu0 0
  %1383 = vmatprep.subr.bf16.mxu0 0
  %1384 = vmatpush2.bf16.msra.mxu0 0
  %1385 = vmatprep.subr.bf16.mxu0 0
  %1386 = vmatpush2.bf16.msra.mxu0 0
  %1387 = vmatprep.subr.bf16.mxu0 0
  %1388 = vmatpush2.bf16.msra.mxu0 0
  %1389 = vmatprep.subr.bf16.mxu0 0
  %1390 = vmatpush2.bf16.msra.mxu0 0
  %1391 = vmatprep.subr.bf16.mxu0 0
  %1392 = vmatpush2.bf16.msra.mxu0 0
  %1393 = vmatprep.mubr.bf16.mxu0 0
  %1394 = vmatmul.mubr.bf16.gmra.mxu0 %v1359
  %v1395 = vpop.f32.mrf.mxu0
  %v1396 = vadd.f32 %v503, %v1395
  %v1397 = vpop.f32.mrf.mxu0
  %v1398 = vpop.f32.mrf.mxu0
  %v1399 = vpop.f32.mrf.mxu0
  %1400 = vdwg.mxu0
  %v1401 = vadd.f32 %v461, %v1396
  %v1402 = vxor.u32 %v1401, 2147483648
  %v1403 = vmul.f32 %v1402, 1.442695
  %v1404 = vpow.pop %v1403
  %v1405 = vadd.f32 %v1404, 1.0
  %v1406 = vrcp.pop %v1405
  %v1407 = vmul.f32 1.0, %v1406
  %1409 = vrot.lane.b32.xlu0 %v1396, 64
  %v1410 = vpop.permute.xlu0 %1409
  %v1412 = vmul.f32 %v1407, %v1410
  %1414 = vrot.lane.b32.xlu0 %v1412, 64
  %v1415 = vpop.permute.xlu0 %1414
  %v1417 = vadd.f32 %v461, %v1415
  %v1418 = vtanh.pop %v1417
  %v1419 = vsub.f32 %v1277, %v1418
  %1421 = vrot.lane.b32.xlu0 %v1419, 96
  %v1422 = vpop.permute.xlu0 %1421
  %v1424 = vmul.f32 %v1407, %v1422
  %1426 = vrot.lane.b32.xlu0 %v1424, 32
  %v1427 = vpop.permute.xlu0 %1426
  %v1429 = vadd.f32 %v1418, %v1427
  %v1430 = vpack.c.bf16 %v1353, %v1353
  %1432 = vrot.lane.b32.xlu0 %v1430, 64
  %v1433 = vpop.permute.xlu0 %1432
  %v1435 = vsel %vm317, %v1433, 0
  %1437 = vmatprep.subr.bf16.mxu0 0
  %1438 = vmatpush1.bf16.msra.mxu0 0
  %1439 = vmatprep.subr.bf16.mxu0 0
  %1440 = vmatpush1.bf16.msra.mxu0 0
  %1441 = vmatprep.subr.bf16.mxu0 0
  %1442 = vmatpush1.bf16.msra.mxu0 0
  %1443 = vmatprep.subr.bf16.mxu0 0
  %1444 = vmatpush1.bf16.msra.mxu0 0
  %1445 = vmatprep.subr.bf16.mxu0 0
  %1446 = vmatpush1.bf16.msra.mxu0 0
  %1447 = vmatprep.subr.bf16.mxu0 0
  %1448 = vmatpush1.bf16.msra.mxu0 0
  %1449 = vmatprep.subr.bf16.mxu0 0
  %1450 = vmatpush1.bf16.msra.mxu0 %v514
  %1451 = vmatprep.subr.bf16.mxu0 0
  %1452 = vmatpush1.bf16.msra.mxu0 %v513
  %1453 = vmatprep.subr.bf16.mxu0 0
  %1454 = vmatpush2.bf16.msra.mxu0 0
  %1455 = vmatprep.subr.bf16.mxu0 0
  %1456 = vmatpush2.bf16.msra.mxu0 0
  %1457 = vmatprep.subr.bf16.mxu0 0
  %1458 = vmatpush2.bf16.msra.mxu0 0
  %1459 = vmatprep.subr.bf16.mxu0 0
  %1460 = vmatpush2.bf16.msra.mxu0 0
  %1461 = vmatprep.subr.bf16.mxu0 0
  %1462 = vmatpush2.bf16.msra.mxu0 0
  %1463 = vmatprep.subr.bf16.mxu0 0
  %1464 = vmatpush2.bf16.msra.mxu0 0
  %1465 = vmatprep.subr.bf16.mxu0 0
  %1466 = vmatpush2.bf16.msra.mxu0 0
  %1467 = vmatprep.subr.bf16.mxu0 0
  %1468 = vmatpush2.bf16.msra.mxu0 0
  %1469 = vmatprep.mubr.bf16.mxu0 0
  %1470 = vmatmul.mubr.bf16.gmra.mxu0 %v1435
  %v1471 = vpop.f32.mrf.mxu0
  %v1472 = vadd.f32 %v496, %v1471
  %v1473 = vpop.f32.mrf.mxu0
  %v1474 = vpop.f32.mrf.mxu0
  %v1475 = vpop.f32.mrf.mxu0
  %1476 = vdwg.mxu0
  %v1477 = vadd.f32 %v389, %v1472
  %v1478 = vxor.u32 %v1477, 2147483648
  %v1479 = vmul.f32 %v1478, 1.442695
  %v1480 = vpow.pop %v1479
  %v1481 = vadd.f32 %v1480, 1.0
  %v1482 = vrcp.pop %v1481
  %v1483 = vmul.f32 1.0, %v1482
  %1485 = vrot.lane.b32.xlu0 %v1472, 64
  %v1486 = vpop.permute.xlu0 %1485
  %v1488 = vmul.f32 %v1483, %v1486
  %1490 = vrot.lane.b32.xlu0 %v1488, 64
  %v1491 = vpop.permute.xlu0 %1490
  %v1493 = vadd.f32 %v389, %v1491
  %v1494 = vtanh.pop %v1493
  %v1495 = vsub.f32 %v1353, %v1494
  %1497 = vrot.lane.b32.xlu0 %v1495, 96
  %v1498 = vpop.permute.xlu0 %1497
  %v1500 = vmul.f32 %v1483, %v1498
  %1502 = vrot.lane.b32.xlu0 %v1500, 32
  %v1503 = vpop.permute.xlu0 %1502
  %v1505 = vadd.f32 %v1494, %v1503
  %v1506 = vpack.c.bf16 %v1429, %v1429
  %1508 = vrot.lane.b32.xlu0 %v1506, 64
  %v1509 = vpop.permute.xlu0 %1508
  %v1511 = vsel %vm317, %v1509, 0
  %1513 = vmatprep.subr.bf16.mxu0 0
  %1514 = vmatpush1.bf16.msra.mxu0 0
  %1515 = vmatprep.subr.bf16.mxu0 0
  %1516 = vmatpush1.bf16.msra.mxu0 0
  %1517 = vmatprep.subr.bf16.mxu0 0
  %1518 = vmatpush1.bf16.msra.mxu0 0
  %1519 = vmatprep.subr.bf16.mxu0 0
  %1520 = vmatpush1.bf16.msra.mxu0 0
  %1521 = vmatprep.subr.bf16.mxu0 0
  %1522 = vmatpush1.bf16.msra.mxu0 0
  %1523 = vmatprep.subr.bf16.mxu0 0
  %1524 = vmatpush1.bf16.msra.mxu0 0
  %1525 = vmatprep.subr.bf16.mxu0 0
  %1526 = vmatpush1.bf16.msra.mxu0 %v598
  %1527 = vmatprep.subr.bf16.mxu0 0
  %1528 = vmatpush1.bf16.msra.mxu0 %v597
  %1529 = vmatprep.subr.bf16.mxu0 0
  %1530 = vmatpush2.bf16.msra.mxu0 0
  %1531 = vmatprep.subr.bf16.mxu0 0
  %1532 = vmatpush2.bf16.msra.mxu0 0
  %1533 = vmatprep.subr.bf16.mxu0 0
  %1534 = vmatpush2.bf16.msra.mxu0 0
  %1535 = vmatprep.subr.bf16.mxu0 0
  %1536 = vmatpush2.bf16.msra.mxu0 0
  %1537 = vmatprep.subr.bf16.mxu0 0
  %1538 = vmatpush2.bf16.msra.mxu0 0
  %1539 = vmatprep.subr.bf16.mxu0 0
  %1540 = vmatpush2.bf16.msra.mxu0 0
  %1541 = vmatprep.subr.bf16.mxu0 0
  %1542 = vmatpush2.bf16.msra.mxu0 0
  %1543 = vmatprep.subr.bf16.mxu0 0
  %1544 = vmatpush2.bf16.msra.mxu0 0
  %1545 = vmatprep.mubr.bf16.mxu0 0
  %1546 = vmatmul.mubr.bf16.gmra.mxu0 %v1511
  %v1547 = vpop.f32.mrf.mxu0
  %v1548 = vadd.f32 %v503, %v1547
  %v1549 = vpop.f32.mrf.mxu0
  %v1550 = vpop.f32.mrf.mxu0
  %v1551 = vpop.f32.mrf.mxu0
  %1552 = vdwg.mxu0
  %v1553 = vadd.f32 %v456, %v1548
  %v1554 = vxor.u32 %v1553, 2147483648
  %v1555 = vmul.f32 %v1554, 1.442695
  %v1556 = vpow.pop %v1555
  %v1557 = vadd.f32 %v1556, 1.0
  %v1558 = vrcp.pop %v1557
  %v1559 = vmul.f32 1.0, %v1558
  %1561 = vrot.lane.b32.xlu0 %v1548, 64
  %v1562 = vpop.permute.xlu0 %1561
  %v1564 = vmul.f32 %v1559, %v1562
  %1566 = vrot.lane.b32.xlu0 %v1564, 64
  %v1567 = vpop.permute.xlu0 %1566
  %v1569 = vadd.f32 %v456, %v1567
  %v1570 = vtanh.pop %v1569
  %v1571 = vsub.f32 %v1429, %v1570
  %1573 = vrot.lane.b32.xlu0 %v1571, 96
  %v1574 = vpop.permute.xlu0 %1573
  %v1576 = vmul.f32 %v1559, %v1574
  %1578 = vrot.lane.b32.xlu0 %v1576, 32
  %v1579 = vpop.permute.xlu0 %1578
  %v1581 = vadd.f32 %v1570, %v1579
  %v1582 = vpack.c.bf16 %v1505, %v1505
  %1584 = vrot.lane.b32.xlu0 %v1582, 64
  %v1585 = vpop.permute.xlu0 %1584
  %v1587 = vsel %vm317, %v1585, 0
  %1589 = vmatprep.subr.bf16.mxu0 0
  %1590 = vmatpush1.bf16.msra.mxu0 0
  %1591 = vmatprep.subr.bf16.mxu0 0
  %1592 = vmatpush1.bf16.msra.mxu0 0
  %1593 = vmatprep.subr.bf16.mxu0 0
  %1594 = vmatpush1.bf16.msra.mxu0 0
  %1595 = vmatprep.subr.bf16.mxu0 0
  %1596 = vmatpush1.bf16.msra.mxu0 0
  %1597 = vmatprep.subr.bf16.mxu0 0
  %1598 = vmatpush1.bf16.msra.mxu0 0
  %1599 = vmatprep.subr.bf16.mxu0 0
  %1600 = vmatpush1.bf16.msra.mxu0 0
  %1601 = vmatprep.subr.bf16.mxu0 0
  %1602 = vmatpush1.bf16.msra.mxu0 %v514
  %1603 = vmatprep.subr.bf16.mxu0 0
  %1604 = vmatpush1.bf16.msra.mxu0 %v513
  %1605 = vmatprep.subr.bf16.mxu0 0
  %1606 = vmatpush2.bf16.msra.mxu0 0
  %1607 = vmatprep.subr.bf16.mxu0 0
  %1608 = vmatpush2.bf16.msra.mxu0 0
  %1609 = vmatprep.subr.bf16.mxu0 0
  %1610 = vmatpush2.bf16.msra.mxu0 0
  %1611 = vmatprep.subr.bf16.mxu0 0
  %1612 = vmatpush2.bf16.msra.mxu0 0
  %1613 = vmatprep.subr.bf16.mxu0 0
  %1614 = vmatpush2.bf16.msra.mxu0 0
  %1615 = vmatprep.subr.bf16.mxu0 0
  %1616 = vmatpush2.bf16.msra.mxu0 0
  %1617 = vmatprep.subr.bf16.mxu0 0
  %1618 = vmatpush2.bf16.msra.mxu0 0
  %1619 = vmatprep.subr.bf16.mxu0 0
  %1620 = vmatpush2.bf16.msra.mxu0 0
  %1621 = vmatprep.mubr.bf16.mxu0 0
  %1622 = vmatmul.mubr.bf16.gmra.mxu0 %v1587
  %v1623 = vpop.f32.mrf.mxu0
  %v1624 = vadd.f32 %v496, %v1623
  %v1625 = vpop.f32.mrf.mxu0
  %v1626 = vpop.f32.mrf.mxu0
  %v1627 = vpop.f32.mrf.mxu0
  %1628 = vdwg.mxu0
  %v1629 = vadd.f32 %v392, %v1624
  %v1630 = vxor.u32 %v1629, 2147483648
  %v1631 = vmul.f32 %v1630, 1.442695
  %v1632 = vpow.pop %v1631
  %v1633 = vadd.f32 %v1632, 1.0
  %v1634 = vrcp.pop %v1633
  %v1635 = vmul.f32 1.0, %v1634
  %1637 = vrot.lane.b32.xlu0 %v1624, 64
  %v1638 = vpop.permute.xlu0 %1637
  %v1640 = vmul.f32 %v1635, %v1638
  %1642 = vrot.lane.b32.xlu0 %v1640, 64
  %v1643 = vpop.permute.xlu0 %1642
  %v1645 = vadd.f32 %v392, %v1643
  %v1646 = vtanh.pop %v1645
  %v1647 = vsub.f32 %v1505, %v1646
  %1649 = vrot.lane.b32.xlu0 %v1647, 96
  %v1650 = vpop.permute.xlu0 %1649
  %v1652 = vmul.f32 %v1635, %v1650
  %1654 = vrot.lane.b32.xlu0 %v1652, 32
  %v1655 = vpop.permute.xlu0 %1654
  %v1657 = vadd.f32 %v1646, %v1655
  %v1658 = vpack.c.bf16 %v1581, %v1581
  %1660 = vrot.lane.b32.xlu0 %v1658, 64
  %v1661 = vpop.permute.xlu0 %1660
  %v1663 = vsel %vm317, %v1661, 0
  %1665 = vmatprep.subr.bf16.mxu0 0
  %1666 = vmatpush1.bf16.msra.mxu0 0
  %1667 = vmatprep.subr.bf16.mxu0 0
  %1668 = vmatpush1.bf16.msra.mxu0 0
  %1669 = vmatprep.subr.bf16.mxu0 0
  %1670 = vmatpush1.bf16.msra.mxu0 0
  %1671 = vmatprep.subr.bf16.mxu0 0
  %1672 = vmatpush1.bf16.msra.mxu0 0
  %1673 = vmatprep.subr.bf16.mxu0 0
  %1674 = vmatpush1.bf16.msra.mxu0 0
  %1675 = vmatprep.subr.bf16.mxu0 0
  %1676 = vmatpush1.bf16.msra.mxu0 0
  %1677 = vmatprep.subr.bf16.mxu0 0
  %1678 = vmatpush1.bf16.msra.mxu0 %v598
  %1679 = vmatprep.subr.bf16.mxu0 0
  %1680 = vmatpush1.bf16.msra.mxu0 %v597
  %1681 = vmatprep.subr.bf16.mxu0 0
  %1682 = vmatpush2.bf16.msra.mxu0 0
  %1683 = vmatprep.subr.bf16.mxu0 0
  %1684 = vmatpush2.bf16.msra.mxu0 0
  %1685 = vmatprep.subr.bf16.mxu0 0
  %1686 = vmatpush2.bf16.msra.mxu0 0
  %1687 = vmatprep.subr.bf16.mxu0 0
  %1688 = vmatpush2.bf16.msra.mxu0 0
  %1689 = vmatprep.subr.bf16.mxu0 0
  %1690 = vmatpush2.bf16.msra.mxu0 0
  %1691 = vmatprep.subr.bf16.mxu0 0
  %1692 = vmatpush2.bf16.msra.mxu0 0
  %1693 = vmatprep.subr.bf16.mxu0 0
  %1694 = vmatpush2.bf16.msra.mxu0 0
  %1695 = vmatprep.subr.bf16.mxu0 0
  %1696 = vmatpush2.bf16.msra.mxu0 0
  %1697 = vmatprep.mubr.bf16.mxu0 0
  %1698 = vmatmul.mubr.bf16.gmra.mxu0 %v1663
  %v1699 = vpop.f32.mrf.mxu0
  %v1700 = vadd.f32 %v503, %v1699
  %v1701 = vpop.f32.mrf.mxu0
  %v1702 = vpop.f32.mrf.mxu0
  %v1703 = vpop.f32.mrf.mxu0
  %1704 = vdwg.mxu0
  %v1705 = vadd.f32 %v453, %v1700
  %v1706 = vxor.u32 %v1705, 2147483648
  %v1707 = vmul.f32 %v1706, 1.442695
  %v1708 = vpow.pop %v1707
  %v1709 = vadd.f32 %v1708, 1.0
  %v1710 = vrcp.pop %v1709
  %v1711 = vmul.f32 1.0, %v1710
  %1713 = vrot.lane.b32.xlu0 %v1700, 64
  %v1714 = vpop.permute.xlu0 %1713
  %v1716 = vmul.f32 %v1711, %v1714
  %1718 = vrot.lane.b32.xlu0 %v1716, 64
  %v1719 = vpop.permute.xlu0 %1718
  %v1721 = vadd.f32 %v453, %v1719
  %v1722 = vtanh.pop %v1721
  %v1723 = vsub.f32 %v1581, %v1722
  %1725 = vrot.lane.b32.xlu0 %v1723, 96
  %v1726 = vpop.permute.xlu0 %1725
  %v1728 = vmul.f32 %v1711, %v1726
  %1730 = vrot.lane.b32.xlu0 %v1728, 32
  %v1731 = vpop.permute.xlu0 %1730
  %v1733 = vadd.f32 %v1722, %v1731
  %1735 = vrot.lane.b32.xlu0 %v588, 64
  %v1736 = vpop.permute.xlu0 %1735
  %1739 = vrot.lane.b32.xlu0 %v1733, 96
  %v1740 = vpop.permute.xlu0 %1739
  %v1742 = vsel %vm317, %v1736, %v1740
  %1744 = vrot.lane.b32.xlu0 %v745, 64
  %v1745 = vpop.permute.xlu0 %1744
  %1748 = vrot.lane.b32.xlu0 %v1581, 96
  %v1749 = vpop.permute.xlu0 %1748
  %v1751 = vsel %vm317, %v1745, %v1749
  %1753 = vrot.lane.b32.xlu0 %v897, 64
  %v1754 = vpop.permute.xlu0 %1753
  %1757 = vrot.lane.b32.xlu0 %v1429, 96
  %v1758 = vpop.permute.xlu0 %1757
  %v1760 = vsel %vm317, %v1754, %v1758
  %1762 = vrot.lane.b32.xlu0 %v1049, 64
  %v1763 = vpop.permute.xlu0 %1762
  %1766 = vrot.lane.b32.xlu0 %v1277, 96
  %v1767 = vpop.permute.xlu0 %1766
  %v1769 = vsel %vm317, %v1763, %v1767
  %1771 = vrot.lane.b32.xlu0 %v1201, 64
  %v1772 = vpop.permute.xlu0 %1771
  %1775 = vrot.lane.b32.xlu0 %v1125, 96
  %v1776 = vpop.permute.xlu0 %1775
  %v1778 = vsel %vm317, %v1772, %v1776
  %1780 = vrot.lane.b32.xlu0 %v1353, 64
  %v1781 = vpop.permute.xlu0 %1780
  %1784 = vrot.lane.b32.xlu0 %v973, 96
  %v1785 = vpop.permute.xlu0 %1784
  %v1787 = vsel %vm317, %v1781, %v1785
  %1789 = vrot.lane.b32.xlu0 %v1505, 64
  %v1790 = vpop.permute.xlu0 %1789
  %1793 = vrot.lane.b32.xlu0 %v821, 96
  %v1794 = vpop.permute.xlu0 %1793
  %v1796 = vsel %vm317, %v1790, %v1794
  %1798 = vrot.lane.b32.xlu0 %v1657, 64
  %v1799 = vpop.permute.xlu0 %1798
  %1802 = vrot.lane.b32.xlu0 %v669, 96
  %v1803 = vpop.permute.xlu0 %1802
  %v1805 = vsel %vm317, %v1799, %v1803
  %v1806 = vpack.c.bf16 %v1751, %v1742
  %v1807 = vpack.c.bf16 %v1769, %v1760
  %v1808 = vpack.c.bf16 %v1787, %v1778
  %v1809 = vpack.c.bf16 %v1805, %v1796
  %v1810 = vld [vmem:[%s10] sm:$0xf]
  %v1811 = vld [vmem:[%s10 + $0x4] sm:$0xf]
  %v1812 = vld [vmem:[%s10 + $0x8] sm:$0xf]
  %v1813 = vld [vmem:[%s10 + $0xc] sm:$0xf]
  %v1814 = vld [vmem:[%s10 + $0x10] sm:$0xf]
  %v1815 = vld [vmem:[%s10 + $0x14] sm:$0xf]
  %v1816 = vld [vmem:[%s10 + $0x18] sm:$0xf]
  %v1817 = vld [vmem:[%s10 + $0x1c] sm:$0xf]
  %v1826 = vunpack.c.l.b16 %v1810
  %v1827 = vunpack.c.l.b16 %v1811
  %v1828 = vunpack.c.l.b16 %v1812
  %v1829 = vunpack.c.l.b16 %v1813
  %v1830 = vunpack.c.l.b16 %v1814
  %v1831 = vunpack.c.l.b16 %v1815
  %v1832 = vunpack.c.l.b16 %v1816
  %v1833 = vunpack.c.l.b16 %v1817
  %v1834 = vpack.c.b16 %v1827, %v1826
  %v1835 = vpack.c.b16 %v1829, %v1828
  %v1836 = vpack.c.b16 %v1831, %v1830
  %v1837 = vpack.c.b16 %v1833, %v1832
  %vm1842 = vcmask 523264
  %v1844 = vsel %vm1842, %v1806, 0
  %v1847 = vsel %vm1842, %v1807, 0
  %v1850 = vsel %vm1842, %v1808, 0
  %v1853 = vsel %vm1842, %v1809, 0
  %1855 = vmatprep.subr.bf16.mxu0 0
  %1856 = vmatpush1.bf16.msra.mxu0 0
  %1857 = vmatprep.subr.bf16.mxu0 0
  %1858 = vmatpush1.bf16.msra.mxu0 0
  %1859 = vmatprep.subr.bf16.mxu0 0
  %1860 = vmatpush1.bf16.msra.mxu0 0
  %1861 = vmatprep.subr.bf16.mxu0 0
  %1862 = vmatpush1.bf16.msra.mxu0 0
  %1863 = vmatprep.subr.bf16.mxu0 0
  %1864 = vmatpush1.bf16.msra.mxu0 %v1837
  %1865 = vmatprep.subr.bf16.mxu0 0
  %1866 = vmatpush1.bf16.msra.mxu0 %v1836
  %1867 = vmatprep.subr.bf16.mxu0 0
  %1868 = vmatpush1.bf16.msra.mxu0 %v1835
  %1869 = vmatprep.subr.bf16.mxu0 0
  %1870 = vmatpush1.bf16.msra.mxu0 %v1834
  %1871 = vmatprep.subr.bf16.mxu0 0
  %1872 = vmatpush2.bf16.msra.mxu0 0
  %1873 = vmatprep.subr.bf16.mxu0 0
  %1874 = vmatpush2.bf16.msra.mxu0 0
  %1875 = vmatprep.subr.bf16.mxu0 0
  %1876 = vmatpush2.bf16.msra.mxu0 0
  %1877 = vmatprep.subr.bf16.mxu0 0
  %1878 = vmatpush2.bf16.msra.mxu0 0
  %1879 = vmatprep.subr.bf16.mxu0 0
  %1880 = vmatpush2.bf16.msra.mxu0 0
  %1881 = vmatprep.subr.bf16.mxu0 0
  %1882 = vmatpush2.bf16.msra.mxu0 0
  %1883 = vmatprep.subr.bf16.mxu0 0
  %1884 = vmatpush2.bf16.msra.mxu0 0
  %1885 = vmatprep.subr.bf16.mxu0 0
  %1886 = vmatpush2.bf16.msra.mxu0 0
  %1887 = vmatprep.mubr.bf16.mxu0 0
  %1888 = vmatmul.mubr.bf16.gmra.mxu0 %v1844
  %v1889 = vpop.f32.mrf.mxu0
  %v1890 = vadd.f32 0.0, %v1889
  %v1891 = vpop.f32.mrf.mxu0
  %v1892 = vpop.f32.mrf.mxu0
  %v1893 = vadd.f32 0.0, %v1892
  %v1894 = vpop.f32.mrf.mxu0
  %1895 = vmatprep.mubr.bf16.mxu0 0
  %1896 = vmatmul.mubr.bf16.gmra.mxu0 %v1847
  %v1897 = vpop.f32.mrf.mxu0
  %v1898 = vadd.f32 0.0, %v1897
  %v1899 = vpop.f32.mrf.mxu0
  %v1900 = vpop.f32.mrf.mxu0
  %v1901 = vadd.f32 0.0, %v1900
  %v1902 = vpop.f32.mrf.mxu0
  %1903 = vmatprep.mubr.bf16.mxu0 0
  %1904 = vmatmul.mubr.bf16.gmra.mxu0 %v1850
  %v1905 = vpop.f32.mrf.mxu0
  %v1906 = vadd.f32 0.0, %v1905
  %v1907 = vpop.f32.mrf.mxu0
  %v1908 = vpop.f32.mrf.mxu0
  %v1909 = vadd.f32 0.0, %v1908
  %v1910 = vpop.f32.mrf.mxu0
  %1911 = vmatprep.mubr.bf16.mxu0 0
  %1912 = vmatmul.mubr.bf16.gmra.mxu0 %v1853
  %v1913 = vpop.f32.mrf.mxu0
  %v1914 = vadd.f32 0.0, %v1913
  %v1915 = vpop.f32.mrf.mxu0
  %v1916 = vpop.f32.mrf.mxu0
  %v1917 = vadd.f32 0.0, %v1916
  %v1918 = vpop.f32.mrf.mxu0
  %1919 = vdwg.mxu0
  %v1920 = vtanh.pop %v1890
  %v1921 = vtanh.pop %v1893
  %v1922 = vtanh.pop %v1898
  %v1923 = vtanh.pop %v1901
  %v1924 = vtanh.pop %v1906
  %v1925 = vtanh.pop %v1909
  %v1926 = vtanh.pop %v1914
  %v1927 = vtanh.pop %v1917
  %v1928 = vpack.c.bf16 %v1921, %v1920
  %v1929 = vpack.c.bf16 %v1923, %v1922
  %v1930 = vpack.c.bf16 %v1925, %v1924
  %v1931 = vpack.c.bf16 %v1927, %v1926
  %v1932 = vld [vmem:[%s11] sm:$0xf]
  %v1933 = vld [vmem:[%s11 + $0x4] sm:$0xf]
  %v1936 = vunpack.c.l.b16 %v1932
  %v1937 = vunpack.c.l.b16 %v1933
  %v1938 = vpack.c.b16 %v1937, %v1936
  %vm1940 = vcmask 130048
  %v1942 = vsel %vm1940, %v1928, 0
  %v1945 = vsel %vm1940, %v1929, 0
  %v1948 = vsel %vm1940, %v1930, 0
  %v1951 = vsel %vm1940, %v1931, 0
  %1953 = vmatprep.subr.bf16.mxu0 0
  %1954 = vmatpush1.bf16.msra.mxu0 0
  %1955 = vmatprep.subr.bf16.mxu0 0
  %1956 = vmatpush1.bf16.msra.mxu0 0
  %1957 = vmatprep.subr.bf16.mxu0 0
  %1958 = vmatpush1.bf16.msra.mxu0 0
  %1959 = vmatprep.subr.bf16.mxu0 0
  %1960 = vmatpush1.bf16.msra.mxu0 0
  %1961 = vmatprep.subr.bf16.mxu0 0
  %1962 = vmatpush1.bf16.msra.mxu0 0
  %1963 = vmatprep.subr.bf16.mxu0 0
  %1964 = vmatpush1.bf16.msra.mxu0 0
  %1965 = vmatprep.subr.bf16.mxu0 0
  %1966 = vmatpush1.bf16.msra.mxu0 0
  %1967 = vmatprep.subr.bf16.mxu0 0
  %1968 = vmatpush1.bf16.msra.mxu0 %v1938
  %1969 = vmatprep.subr.bf16.mxu0 0
  %1970 = vmatpush2.bf16.msra.mxu0 0
  %1971 = vmatprep.subr.bf16.mxu0 0
  %1972 = vmatpush2.bf16.msra.mxu0 0
  %1973 = vmatprep.subr.bf16.mxu0 0
  %1974 = vmatpush2.bf16.msra.mxu0 0
  %1975 = vmatprep.subr.bf16.mxu0 0
  %1976 = vmatpush2.bf16.msra.mxu0 0
  %1977 = vmatprep.subr.bf16.mxu0 0
  %1978 = vmatpush2.bf16.msra.mxu0 0
  %1979 = vmatprep.subr.bf16.mxu0 0
  %1980 = vmatpush2.bf16.msra.mxu0 0
  %1981 = vmatprep.subr.bf16.mxu0 0
  %1982 = vmatpush2.bf16.msra.mxu0 0
  %1983 = vmatprep.subr.bf16.mxu0 0
  %1984 = vmatpush2.bf16.msra.mxu0 0
  %1985 = vmatprep.mubr.bf16.mxu0 0
  %1986 = vmatmul.mubr.bf16.gmra.mxu0 %v1942
  %v1987 = vpop.f32.mrf.mxu0
  %v1988 = vadd.f32 0.0, %v1987
  %v1989 = vpop.f32.mrf.mxu0
  %v1990 = vpop.f32.mrf.mxu0
  %v1991 = vadd.f32 0.0, %v1990
  %v1992 = vpop.f32.mrf.mxu0
  %1993 = vmatprep.mubr.bf16.mxu0 0
  %1994 = vmatmul.mubr.bf16.gmra.mxu0 %v1945
  %v1995 = vpop.f32.mrf.mxu0
  %v1996 = vadd.f32 0.0, %v1995
  %v1997 = vpop.f32.mrf.mxu0
  %v1998 = vpop.f32.mrf.mxu0
  %v1999 = vadd.f32 0.0, %v1998
  %v2000 = vpop.f32.mrf.mxu0
  %2001 = vmatprep.mubr.bf16.mxu0 0
  %2002 = vmatmul.mubr.bf16.gmra.mxu0 %v1948
  %v2003 = vpop.f32.mrf.mxu0
  %v2004 = vadd.f32 0.0, %v2003
  %v2005 = vpop.f32.mrf.mxu0
  %v2006 = vpop.f32.mrf.mxu0
  %v2007 = vadd.f32 0.0, %v2006
  %v2008 = vpop.f32.mrf.mxu0
  %2009 = vmatprep.mubr.bf16.mxu0 0
  %2010 = vmatmul.mubr.bf16.gmra.mxu0 %v1951
  %v2011 = vpop.f32.mrf.mxu0
  %v2012 = vadd.f32 0.0, %v2011
  %v2013 = vpop.f32.mrf.mxu0
  %v2014 = vpop.f32.mrf.mxu0
  %v2015 = vadd.f32 0.0, %v2014
  %v2016 = vpop.f32.mrf.mxu0
  %2017 = vdwg.mxu0
  %vm2018 = vcmask 31744
  %v2019 = vsel %vm2018, %v1988, -inf
  %v2020 = vsel %vm2018, %v1991, -inf
  %v2021 = vsel %vm2018, %v1996, -inf
  %v2022 = vsel %vm2018, %v1999, -inf
  %v2023 = vsel %vm2018, %v2004, -inf
  %v2024 = vmax.f32 %v2019, %v2023
  %v2025 = vsel %vm2018, %v2007, -inf
  %v2026 = vmax.f32 %v2020, %v2025
  %v2027 = vsel %vm2018, %v2012, -inf
  %v2028 = vmax.f32 %v2021, %v2027
  %v2029 = vsel %vm2018, %v2015, -inf
  %v2030 = vmax.f32 %v2022, %v2029
  %v2031 = vmax.f32 %v2024, %v2026
  %v2032 = vmax.f32 %v2028, %v2030
  %v2033 = vmax.f32 %v2031, %v2032
  %v2034 = vsub.f32 %v1988, %v2033
  %v2035 = vsub.f32 %v1991, %v2033
  %v2036 = vsub.f32 %v1996, %v2033
  %v2037 = vsub.f32 %v1999, %v2033
  %v2038 = vsub.f32 %v2004, %v2033
  %v2039 = vsub.f32 %v2007, %v2033
  %v2040 = vsub.f32 %v2012, %v2033
  %v2041 = vsub.f32 %v2015, %v2033
  %v2042 = vmul.f32 %v2034, 1.442695
  %v2043 = vpow.pop %v2042
  %v2044 = vmul.f32 %v2035, 1.442695
  %v2045 = vpow.pop %v2044
  %v2046 = vmul.f32 %v2036, 1.442695
  %v2047 = vpow.pop %v2046
  %v2048 = vmul.f32 %v2037, 1.442695
  %v2049 = vpow.pop %v2048
  %v2050 = vmul.f32 %v2038, 1.442695
  %v2051 = vpow.pop %v2050
  %v2052 = vmul.f32 %v2039, 1.442695
  %v2053 = vpow.pop %v2052
  %v2054 = vmul.f32 %v2040, 1.442695
  %v2055 = vpow.pop %v2054
  %v2056 = vmul.f32 %v2041, 1.442695
  %v2057 = vpow.pop %v2056
  %v2058 = vsel %vm2018, %v2043, 0.0
  %v2059 = vsel %vm2018, %v2045, 0.0
  %v2060 = vadd.f32 %v2058, %v2059
  %v2061 = vsel %vm2018, %v2047, 0.0
  %v2062 = vadd.f32 %v2060, %v2061
  %v2063 = vsel %vm2018, %v2049, 0.0
  %v2064 = vadd.f32 %v2062, %v2063
  %v2065 = vsel %vm2018, %v2051, 0.0
  %v2066 = vadd.f32 %v2064, %v2065
  %v2067 = vsel %vm2018, %v2053, 0.0
  %v2068 = vadd.f32 %v2066, %v2067
  %v2069 = vsel %vm2018, %v2055, 0.0
  %v2070 = vadd.f32 %v2068, %v2069
  %v2071 = vsel %vm2018, %v2057, 0.0
  %v2072 = vadd.f32 %v2070, %v2071
  %v2073 = vrcp.pop %v2072
  %v2074 = vmul.f32 %v2043, %v2073
  %v2075 = vmul.f32 %v2045, %v2073
  %v2076 = vmul.f32 %v2047, %v2073
  %v2077 = vmul.f32 %v2049, %v2073
  %v2078 = vmul.f32 %v2051, %v2073
  %v2079 = vmul.f32 %v2053, %v2073
  %v2080 = vmul.f32 %v2055, %v2073
  %v2081 = vmul.f32 %v2057, %v2073
  %2083 = vset.pattern.permute.xlu0 0
  %2084 = vperm.xlu0 %2083, %v2074
  %v2085 = vpop.permute.xlu0 %2084
  %v2087 = vmul.f32 %v2085, %v1742
  %v2088 = vadd.f32 %v2087, 0.0
  %2090 = vset.pattern.permute.xlu0 0
  %2091 = vperm.xlu0 %2090, %v2075
  %v2092 = vpop.permute.xlu0 %2091
  %v2094 = vmul.f32 %v2092, %v1751
  %v2095 = vadd.f32 %v2088, %v2094
  %2097 = vset.pattern.permute.xlu0 0
  %2098 = vperm.xlu0 %2097, %v2076
  %v2099 = vpop.permute.xlu0 %2098
  %v2101 = vmul.f32 %v2099, %v1760
  %v2102 = vadd.f32 %v2095, %v2101
  %2104 = vset.pattern.permute.xlu0 0
  %2105 = vperm.xlu0 %2104, %v2077
  %v2106 = vpop.permute.xlu0 %2105
  %v2108 = vmul.f32 %v2106, %v1769
  %v2109 = vadd.f32 %v2102, %v2108
  %2111 = vset.pattern.permute.xlu0 0
  %2112 = vperm.xlu0 %2111, %v2078
  %v2113 = vpop.permute.xlu0 %2112
  %v2115 = vmul.f32 %v2113, %v1778
  %v2116 = vadd.f32 %v2109, %v2115
  %2118 = vset.pattern.permute.xlu0 0
  %2119 = vperm.xlu0 %2118, %v2079
  %v2120 = vpop.permute.xlu0 %2119
  %v2122 = vmul.f32 %v2120, %v1787
  %v2123 = vadd.f32 %v2116, %v2122
  %2125 = vset.pattern.permute.xlu0 0
  %2126 = vperm.xlu0 %2125, %v2080
  %v2127 = vpop.permute.xlu0 %2126
  %v2129 = vmul.f32 %v2127, %v1796
  %v2130 = vadd.f32 %v2123, %v2129
  %2132 = vset.pattern.permute.xlu0 0
  %2133 = vperm.xlu0 %2132, %v2081
  %v2134 = vpop.permute.xlu0 %2133
  %v2136 = vmul.f32 %v2134, %v1805
  %v2137 = vadd.f32 %v2130, %v2136
  %2138 = vset.pattern.permute.xlu0 1
  %2139 = vperm.xlu0 %2138, %v2074
  %v2140 = vpop.permute.xlu0 %2139
  %v2142 = vmul.f32 %v2140, %v1742
  %v2143 = vadd.f32 %v2142, 0.0
  %2144 = vset.pattern.permute.xlu0 1
  %2145 = vperm.xlu0 %2144, %v2075
  %v2146 = vpop.permute.xlu0 %2145
  %v2148 = vmul.f32 %v2146, %v1751
  %v2149 = vadd.f32 %v2143, %v2148
  %2150 = vset.pattern.permute.xlu0 1
  %2151 = vperm.xlu0 %2150, %v2076
  %v2152 = vpop.permute.xlu0 %2151
  %v2154 = vmul.f32 %v2152, %v1760
  %v2155 = vadd.f32 %v2149, %v2154
  %2156 = vset.pattern.permute.xlu0 1
  %2157 = vperm.xlu0 %2156, %v2077
  %v2158 = vpop.permute.xlu0 %2157
  %v2160 = vmul.f32 %v2158, %v1769
  %v2161 = vadd.f32 %v2155, %v2160
  %2162 = vset.pattern.permute.xlu0 1
  %2163 = vperm.xlu0 %2162, %v2078
  %v2164 = vpop.permute.xlu0 %2163
  %v2166 = vmul.f32 %v2164, %v1778
  %v2167 = vadd.f32 %v2161, %v2166
  %2168 = vset.pattern.permute.xlu0 1
  %2169 = vperm.xlu0 %2168, %v2079
  %v2170 = vpop.permute.xlu0 %2169
  %v2172 = vmul.f32 %v2170, %v1787
  %v2173 = vadd.f32 %v2167, %v2172
  %2174 = vset.pattern.permute.xlu0 1
  %2175 = vperm.xlu0 %2174, %v2080
  %v2176 = vpop.permute.xlu0 %2175
  %v2178 = vmul.f32 %v2176, %v1796
  %v2179 = vadd.f32 %v2173, %v2178
  %2180 = vset.pattern.permute.xlu0 1
  %2181 = vperm.xlu0 %2180, %v2081
  %v2182 = vpop.permute.xlu0 %2181
  %v2184 = vmul.f32 %v2182, %v1805
  %v2185 = vadd.f32 %v2179, %v2184
  %2186 = vset.pattern.permute.xlu0 2
  %2187 = vperm.xlu0 %2186, %v2074
  %v2188 = vpop.permute.xlu0 %2187
  %v2190 = vmul.f32 %v2188, %v1742
  %v2191 = vadd.f32 %v2190, 0.0
  %2192 = vset.pattern.permute.xlu0 2
  %2193 = vperm.xlu0 %2192, %v2075
  %v2194 = vpop.permute.xlu0 %2193
  %v2196 = vmul.f32 %v2194, %v1751
  %v2197 = vadd.f32 %v2191, %v2196
  %2198 = vset.pattern.permute.xlu0 2
  %2199 = vperm.xlu0 %2198, %v2076
  %v2200 = vpop.permute.xlu0 %2199
  %v2202 = vmul.f32 %v2200, %v1760
  %v2203 = vadd.f32 %v2197, %v2202
  %2204 = vset.pattern.permute.xlu0 2
  %2205 = vperm.xlu0 %2204, %v2077
  %v2206 = vpop.permute.xlu0 %2205
  %v2208 = vmul.f32 %v2206, %v1769
  %v2209 = vadd.f32 %v2203, %v2208
  %2210 = vset.pattern.permute.xlu0 2
  %2211 = vperm.xlu0 %2210, %v2078
  %v2212 = vpop.permute.xlu0 %2211
  %v2214 = vmul.f32 %v2212, %v1778
  %v2215 = vadd.f32 %v2209, %v2214
  %2216 = vset.pattern.permute.xlu0 2
  %2217 = vperm.xlu0 %2216, %v2079
  %v2218 = vpop.permute.xlu0 %2217
  %v2220 = vmul.f32 %v2218, %v1787
  %v2221 = vadd.f32 %v2215, %v2220
  %2222 = vset.pattern.permute.xlu0 2
  %2223 = vperm.xlu0 %2222, %v2080
  %v2224 = vpop.permute.xlu0 %2223
  %v2226 = vmul.f32 %v2224, %v1796
  %v2227 = vadd.f32 %v2221, %v2226
  %2228 = vset.pattern.permute.xlu0 2
  %2229 = vperm.xlu0 %2228, %v2081
  %v2230 = vpop.permute.xlu0 %2229
  %v2232 = vmul.f32 %v2230, %v1805
  %v2233 = vadd.f32 %v2227, %v2232
  %2234 = vset.pattern.permute.xlu0 3
  %2235 = vperm.xlu0 %2234, %v2074
  %v2236 = vpop.permute.xlu0 %2235
  %v2238 = vmul.f32 %v2236, %v1742
  %v2239 = vadd.f32 %v2238, 0.0
  %2240 = vset.pattern.permute.xlu0 3
  %2241 = vperm.xlu0 %2240, %v2075
  %v2242 = vpop.permute.xlu0 %2241
  %v2244 = vmul.f32 %v2242, %v1751
  %v2245 = vadd.f32 %v2239, %v2244
  %2246 = vset.pattern.permute.xlu0 3
  %2247 = vperm.xlu0 %2246, %v2076
  %v2248 = vpop.permute.xlu0 %2247
  %v2250 = vmul.f32 %v2248, %v1760
  %v2251 = vadd.f32 %v2245, %v2250
  %2252 = vset.pattern.permute.xlu0 3
  %2253 = vperm.xlu0 %2252, %v2077
  %v2254 = vpop.permute.xlu0 %2253
  %v2256 = vmul.f32 %v2254, %v1769
  %v2257 = vadd.f32 %v2251, %v2256
  %2258 = vset.pattern.permute.xlu0 3
  %2259 = vperm.xlu0 %2258, %v2078
  %v2260 = vpop.permute.xlu0 %2259
  %v2262 = vmul.f32 %v2260, %v1778
  %v2263 = vadd.f32 %v2257, %v2262
  %2264 = vset.pattern.permute.xlu0 3
  %2265 = vperm.xlu0 %2264, %v2079
  %v2266 = vpop.permute.xlu0 %2265
  %v2268 = vmul.f32 %v2266, %v1787
  %v2269 = vadd.f32 %v2263, %v2268
  %2270 = vset.pattern.permute.xlu0 3
  %2271 = vperm.xlu0 %2270, %v2080
  %v2272 = vpop.permute.xlu0 %2271
  %v2274 = vmul.f32 %v2272, %v1796
  %v2275 = vadd.f32 %v2269, %v2274
  %2276 = vset.pattern.permute.xlu0 3
  %2277 = vperm.xlu0 %2276, %v2081
  %v2278 = vpop.permute.xlu0 %2277
  %v2280 = vmul.f32 %v2278, %v1805
  %v2281 = vadd.f32 %v2275, %v2280
  %2283 = vrot.lane.b32.xlu0 %v2185, 64
  %v2284 = vpop.permute.xlu0 %2283
  %2287 = vrot.lane.b32.xlu0 %v2281, 64
  %v2288 = vpop.permute.xlu0 %2287
  %v2290 = vsel %vm1842, %v2137, %v2284
  %v2291 = vsel %vm1842, %v2233, %v2288
  %v2292 = vpack.c.bf16 %v2290, %v2290
  %v2293 = vpack.c.bf16 %v2291, %v2291
  %v2294 = vld [vmem:[%s12] sm:$0xf]
  %v2295 = vld [vmem:[%s12 + $0x4] sm:$0xf]
  %v2296 = vld [vmem:[%s12 + $0x8] sm:$0xf]
  %v2297 = vld [vmem:[%s12 + $0xc] sm:$0xf]
  %v2298 = vld [vmem:[%s12 + $0x10] sm:$0xf]
  %v2299 = vld [vmem:[%s12 + $0x14] sm:$0xf]
  %v2300 = vld [vmem:[%s12 + $0x18] sm:$0xf]
  %v2301 = vld [vmem:[%s12 + $0x1c] sm:$0xf]
  %v2302 = vld [vmem:[%s12 + $0x20] sm:$0xf]
  %v2303 = vld [vmem:[%s12 + $0x24] sm:$0xf]
  %v2304 = vld [vmem:[%s12 + $0x28] sm:$0xf]
  %v2305 = vld [vmem:[%s12 + $0x2c] sm:$0xf]
  %v2306 = vld [vmem:[%s12 + $0x30] sm:$0xf]
  %v2307 = vld [vmem:[%s12 + $0x34] sm:$0xf]
  %v2308 = vld [vmem:[%s12 + $0x38] sm:$0xf]
  %v2309 = vld [vmem:[%s12 + $0x3c] sm:$0xf]
  %v2310 = vld [vmem:[%s12 + $0x40] sm:$0xf]
  %v2311 = vld [vmem:[%s12 + $0x44] sm:$0xf]
  %v2312 = vld [vmem:[%s12 + $0x48] sm:$0xf]
  %v2313 = vld [vmem:[%s12 + $0x4c] sm:$0xf]
  %v2314 = vld [vmem:[%s12 + $0x50] sm:$0xf]
  %v2315 = vld [vmem:[%s12 + $0x54] sm:$0xf]
  %v2316 = vld [vmem:[%s12 + $0x58] sm:$0xf]
  %v2317 = vld [vmem:[%s12 + $0x5c] sm:$0xf]
  %v2318 = vld [vmem:[%s12 + $0x60] sm:$0xf]
  %v2319 = vld [vmem:[%s12 + $0x64] sm:$0xf]
  %v2320 = vld [vmem:[%s12 + $0x68] sm:$0xf]
  %v2321 = vld [vmem:[%s12 + $0x6c] sm:$0xf]
  %v2322 = vld [vmem:[%s12 + $0x70] sm:$0xf]
  %v2323 = vld [vmem:[%s12 + $0x74] sm:$0xf]
  %v2324 = vld [vmem:[%s12 + $0x78] sm:$0xf]
  %v2325 = vld [vmem:[%s12 + $0x7c] sm:$0xf]
  %v2326 = vld [vmem:[%s13] sm:$0x1]
  %v2328 = vlaneseq
  %v2329 = vshrl.u32 %v2328, 7
  %v2330 = vsub.s32 0, %v2329
  %v2331 = vrot.slane %v2326, %v2330
  %v2365 = vunpack.c.l.b16 %v2294
  %v2366 = vunpack.c.l.b16 %v2295
  %v2367 = vunpack.c.l.b16 %v2296
  %v2368 = vunpack.c.l.b16 %v2297
  %v2369 = vunpack.c.l.b16 %v2298
  %v2370 = vunpack.c.l.b16 %v2299
  %v2371 = vunpack.c.l.b16 %v2300
  %v2372 = vunpack.c.l.b16 %v2301
  %v2373 = vunpack.c.l.b16 %v2302
  %v2374 = vunpack.c.l.b16 %v2303
  %v2375 = vunpack.c.l.b16 %v2304
  %v2376 = vunpack.c.l.b16 %v2305
  %v2377 = vunpack.c.l.b16 %v2306
  %v2378 = vunpack.c.l.b16 %v2307
  %v2379 = vunpack.c.l.b16 %v2308
  %v2380 = vunpack.c.l.b16 %v2309
  %v2381 = vunpack.c.l.b16 %v2310
  %v2382 = vunpack.c.l.b16 %v2311
  %v2383 = vunpack.c.l.b16 %v2312
  %v2384 = vunpack.c.l.b16 %v2313
  %v2385 = vunpack.c.l.b16 %v2314
  %v2386 = vunpack.c.l.b16 %v2315
  %v2387 = vunpack.c.l.b16 %v2316
  %v2388 = vunpack.c.l.b16 %v2317
  %v2389 = vunpack.c.l.b16 %v2318
  %v2390 = vunpack.c.l.b16 %v2319
  %v2391 = vunpack.c.l.b16 %v2320
  %v2392 = vunpack.c.l.b16 %v2321
  %v2393 = vunpack.c.l.b16 %v2322
  %v2394 = vunpack.c.l.b16 %v2323
  %v2395 = vunpack.c.l.b16 %v2324
  %v2396 = vunpack.c.l.b16 %v2325
  %v2397 = vpack.c.b16 %v2366, %v2365
  %v2398 = vpack.c.b16 %v2368, %v2367
  %v2399 = vpack.c.b16 %v2370, %v2369
  %v2400 = vpack.c.b16 %v2372, %v2371
  %v2401 = vpack.c.b16 %v2374, %v2373
  %v2402 = vpack.c.b16 %v2376, %v2375
  %v2403 = vpack.c.b16 %v2378, %v2377
  %v2404 = vpack.c.b16 %v2380, %v2379
  %v2405 = vpack.c.b16 %v2382, %v2381
  %v2406 = vpack.c.b16 %v2384, %v2383
  %v2407 = vpack.c.b16 %v2386, %v2385
  %v2408 = vpack.c.b16 %v2388, %v2387
  %v2409 = vpack.c.b16 %v2390, %v2389
  %v2410 = vpack.c.b16 %v2392, %v2391
  %v2411 = vpack.c.b16 %v2394, %v2393
  %v2412 = vpack.c.b16 %v2396, %v2395
  %2429 = vmatprep.subr.bf16.mxu0 0
  %2430 = vmatpush1.bf16.msra.mxu0 %v2404
  %2431 = vmatprep.subr.bf16.mxu0 0
  %2432 = vmatpush1.bf16.msra.mxu0 %v2403
  %2433 = vmatprep.subr.bf16.mxu0 0
  %2434 = vmatpush1.bf16.msra.mxu0 %v2402
  %2435 = vmatprep.subr.bf16.mxu0 0
  %2436 = vmatpush1.bf16.msra.mxu0 %v2401
  %2437 = vmatprep.subr.bf16.mxu0 0
  %2438 = vmatpush1.bf16.msra.mxu0 %v2400
  %2439 = vmatprep.subr.bf16.mxu0 0
  %2440 = vmatpush1.bf16.msra.mxu0 %v2399
  %2441 = vmatprep.subr.bf16.mxu0 0
  %2442 = vmatpush1.bf16.msra.mxu0 %v2398
  %2443 = vmatprep.subr.bf16.mxu0 0
  %2444 = vmatpush1.bf16.msra.mxu0 %v2397
  %2445 = vmatprep.subr.bf16.mxu0 0
  %2446 = vmatpush2.bf16.msra.mxu0 %v2412
  %2447 = vmatprep.subr.bf16.mxu0 0
  %2448 = vmatpush2.bf16.msra.mxu0 %v2411
  %2449 = vmatprep.subr.bf16.mxu0 0
  %2450 = vmatpush2.bf16.msra.mxu0 %v2410
  %2451 = vmatprep.subr.bf16.mxu0 0
  %2452 = vmatpush2.bf16.msra.mxu0 %v2409
  %2453 = vmatprep.subr.bf16.mxu0 0
  %2454 = vmatpush2.bf16.msra.mxu0 %v2408
  %2455 = vmatprep.subr.bf16.mxu0 0
  %2456 = vmatpush2.bf16.msra.mxu0 %v2407
  %2457 = vmatprep.subr.bf16.mxu0 0
  %2458 = vmatpush2.bf16.msra.mxu0 %v2406
  %2459 = vmatprep.subr.bf16.mxu0 0
  %2460 = vmatpush2.bf16.msra.mxu0 %v2405
  %2461 = vmatprep.mubr.bf16.mxu0 %v2293
  %2462 = vmatmul.mubr.bf16.gmra.mxu0 %v2292
  %v2463 = vpop.f32.mrf.mxu0
  %v2464 = vadd.f32 %v2331, %v2463
  %v2465 = vpop.f32.mrf.mxu0
  %v2466 = vpop.f32.mrf.mxu0
  %v2467 = vpop.f32.mrf.mxu0
  %2468 = vdwg.mxu0
  %v2469 = vmax.f32 %v2464, 0.0
  %v2470 = vpack.c.bf16 %v2469, %v2469
  %v2471 = vld [vmem:[%s14] sm:$0xf]
  %v2472 = vld [vmem:[%s14 + $0x4] sm:$0xf]
  %v2473 = vld [vmem:[%s14 + $0x8] sm:$0xf]
  %v2474 = vld [vmem:[%s14 + $0xc] sm:$0xf]
  %v2475 = vld [vmem:[%s14 + $0x10] sm:$0xf]
  %v2476 = vld [vmem:[%s14 + $0x14] sm:$0xf]
  %v2477 = vld [vmem:[%s14 + $0x18] sm:$0xf]
  %v2478 = vld [vmem:[%s14 + $0x1c] sm:$0xf]
  %v2479 = vld [vmem:[%s15] sm:$0x1]
  %v2481 = vlaneseq
  %v2482 = vshrl.u32 %v2481, 7
  %v2483 = vsub.s32 0, %v2482
  %v2484 = vrot.slane %v2479, %v2483
  %v2494 = vunpack.c.l.b16 %v2471
  %v2495 = vunpack.c.l.b16 %v2472
  %v2496 = vunpack.c.l.b16 %v2473
  %v2497 = vunpack.c.l.b16 %v2474
  %v2498 = vunpack.c.l.b16 %v2475
  %v2499 = vunpack.c.l.b16 %v2476
  %v2500 = vunpack.c.l.b16 %v2477
  %v2501 = vunpack.c.l.b16 %v2478
  %v2502 = vpack.c.b16 %v2495, %v2494
  %v2503 = vpack.c.b16 %v2497, %v2496
  %v2504 = vpack.c.b16 %v2499, %v2498
  %v2505 = vpack.c.b16 %v2501, %v2500
  %v2511 = vsel %vm1842, %v2470, 0
  %2513 = vmatprep.subr.bf16.mxu0 0
  %2514 = vmatpush1.bf16.msra.mxu0 0
  %2515 = vmatprep.subr.bf16.mxu0 0
  %2516 = vmatpush1.bf16.msra.mxu0 0
  %2517 = vmatprep.subr.bf16.mxu0 0
  %2518 = vmatpush1.bf16.msra.mxu0 0
  %2519 = vmatprep.subr.bf16.mxu0 0
  %2520 = vmatpush1.bf16.msra.mxu0 0
  %2521 = vmatprep.subr.bf16.mxu0 0
  %2522 = vmatpush1.bf16.msra.mxu0 %v2505
  %2523 = vmatprep.subr.bf16.mxu0 0
  %2524 = vmatpush1.bf16.msra.mxu0 %v2504
  %2525 = vmatprep.subr.bf16.mxu0 0
  %2526 = vmatpush1.bf16.msra.mxu0 %v2503
  %2527 = vmatprep.subr.bf16.mxu0 0
  %2528 = vmatpush1.bf16.msra.mxu0 %v2502
  %2529 = vmatprep.subr.bf16.mxu0 0
  %2530 = vmatpush2.bf16.msra.mxu0 0
  %2531 = vmatprep.subr.bf16.mxu0 0
  %2532 = vmatpush2.bf16.msra.mxu0 0
  %2533 = vmatprep.subr.bf16.mxu0 0
  %2534 = vmatpush2.bf16.msra.mxu0 0
  %2535 = vmatprep.subr.bf16.mxu0 0
  %2536 = vmatpush2.bf16.msra.mxu0 0
  %2537 = vmatprep.subr.bf16.mxu0 0
  %2538 = vmatpush2.bf16.msra.mxu0 0
  %2539 = vmatprep.subr.bf16.mxu0 0
  %2540 = vmatpush2.bf16.msra.mxu0 0
  %2541 = vmatprep.subr.bf16.mxu0 0
  %2542 = vmatpush2.bf16.msra.mxu0 0
  %2543 = vmatprep.subr.bf16.mxu0 0
  %2544 = vmatpush2.bf16.msra.mxu0 0
  %2545 = vmatprep.mubr.bf16.mxu0 0
  %2546 = vmatmul.mubr.bf16.gmra.mxu0 %v2511
  %v2547 = vpop.f32.mrf.mxu0
  %v2548 = vadd.f32 %v2484, %v2547
  %v2549 = vpop.f32.mrf.mxu0
  %v2550 = vpop.f32.mrf.mxu0
  %v2551 = vpop.f32.mrf.mxu0
  %2552 = vdwg.mxu0
  %v2553 = vmul.f32 %v2548, %v2548
  %v2554 = vsel %vm317, %v2553, 0.0
  %2555 = vadd.xlane.f32.xlu0 %v2554
  %v2556 = vpop.xlane.xlu0 %2555
  %v2557 = vmax.f32 %v2556, 1e-24
  %v2558 = vrsqrt.pop %v2557
  %v2559 = vmul.f32 %v2548, %v2558
  %2560 = vst.msk [vmem:[%s16] sm:$0xff] %vm317, %v2559
  // Predicated region
  $region66: #{safe_forward.1} parent=0 // pred_check
    _
  $region67: #{safe_forward.1} parent=0 // pred_check_branch
    %2562 = sbr.rel (0) target = $region69
  $region68: #{safe_forward.1} parent=0 // pred_region
    _
  $region69: #{safe_forward.1} parent=0 // pred_fallthru
    _
  // Predicated region
  $region70: #{safe_forward.1} parent=0 // pred_check
    _
  $region71: #{safe_forward.1} parent=0 // pred_check_branch
    %2564 = sbr.rel (0) target = $region73
  $region72: #{safe_forward.1} parent=0 // pred_region
    _
  $region73: #{safe_forward.1} parent=0 // pred_fallthru
    _

</llo_original>
